<compile_context>
chip_gen: v7x
topology: tpu7x:2x2x1
jax: 0.10.0
libtpu: 0.0.40
codegen_flags: <defaults>
</compile_context>

<pallas_src>
import functools

import jax
import jax.numpy as jnp
from jax import lax
from jax.experimental import pallas as pl
from jax.experimental.pallas import tpu as pltpu


# ------------------------------------------------------------------ fused kernel
def _build_fused_kernel(S, B, H, num_layers):
    """Whole LSTM-AE forward, gridless. Sequences live time-major in VMEM scratch."""
    H4 = 4 * H
    N = S * B
    f32 = jnp.float32
    bf16 = jnp.bfloat16

    def kernel(*refs):
        it = iter(refs)
        x_ref = next(it)                                              # (N, I)  f32
        enc = [(next(it), next(it), next(it)) for _ in range(num_layers)]
        fc_enc_w, fc_enc_b = next(it), next(it)
        fc_dec_w, fc_dec_b = next(it), next(it)
        dec = []
        for l in range(num_layers):
            if l == 0:
                dec.append((None, next(it), next(it)))                # zero-input layer: no W_ih
            else:
                dec.append((next(it), next(it), next(it)))
        out_w, out_b = next(it), next(it)                             # (H, Ipad) bf16 / (1, Ipad) f32
        out_ref = next(it)                                            # (N, Ipad) f32
        ys_sc = next(it)                                              # (S, B, H)  bf16 scratch
        xp_sc = next(it)                                              # (S, B, 4H) f32 scratch

        def input_proj(src_bf16, wih_ref, b_ref):
            # One lane-dense (N, in) @ (in, 4H) MXU matmul for ALL timesteps,
            # bias folded in once, stored time-major for leading-dim per-step reads.
            xp = jnp.dot(src_bf16, wih_ref[...], preferred_element_type=f32) + b_ref[...]
            xp_sc[...] = xp.reshape(S, B, H4)

        def recur(has_input, whh_ref, b_ref, h0, c0, write_seq):
            whh = whh_ref[...]                                        # (H, 4H) bf16, hoisted
            if not has_input:
                bias_b = jnp.broadcast_to(b_ref[...], (B, H4))        # hoisted out of the loop

            def step(t, carry):
                h, c = carry
                # single fused-gate matmul per step: (B, H) @ (H, 4H) -> (B, 4H)
                r = jnp.dot(h.astype(bf16), whh, preferred_element_type=f32)
                pre = (xp_sc[t] + r) if has_input else (bias_b + r)
                # two full-vreg EUP passes, gates picked by static lane slices
                sg = jax.nn.sigmoid(pre)
                th = jnp.tanh(pre)
                i_g = sg[:, 0 * H:1 * H]                              # PyTorch order: i, f, g, o
                f_g = sg[:, 1 * H:2 * H]
                g_g = th[:, 2 * H:3 * H]
                o_g = sg[:, 3 * H:4 * H]
                c_new = f_g * c + i_g * g_g
                h_new = o_g * jnp.tanh(c_new)
                if write_seq:
                    ys_sc[t] = h_new.astype(bf16)
                return h_new, c_new

            h, _ = lax.fori_loop(0, S, step, (h0, c0), unroll=True)
            return h

        zeros_bh = jnp.zeros((B, H), f32)

        # ---------------- encoder ----------------
        # TODO(synk): nn.LSTM inter-layer dropout (p=0.2) is training-only; eval-mode here.
        x_bf = x_ref[...].astype(bf16)
        h_last = zeros_bh
        for l in range(num_layers):
            wih_ref, whh_ref, b_ref = enc[l]
            src = x_bf if l == 0 else ys_sc[...].reshape(N, H)
            input_proj(src, wih_ref, b_ref)
            # only non-last layers need their full hidden sequence (next layer's input)
            h_last = recur(True, whh_ref, b_ref, zeros_bh, zeros_bh,
                           write_seq=(l < num_layers - 1))

        # ---------------- bottleneck ----------------
        latent = jnp.dot(h_last.astype(bf16), fc_enc_w[...],
                         preferred_element_type=f32) + fc_enc_b[...]             # (B, L)
        dec_h0 = jnp.dot(latent.astype(bf16), fc_dec_w[...],
                         preferred_element_type=f32) + fc_dec_b[...]             # (B, H)

        # ---------------- decoder (h0 = dec_h0 for every layer, c0 = 0, zero input) ----
        for l in range(num_layers):
            wih_ref, whh_ref, b_ref = dec[l]
            if l > 0:
                input_proj(ys_sc[...].reshape(N, H), wih_ref, b_ref)
            recur(l > 0, whh_ref, b_ref, dec_h0, zeros_bh, write_seq=True)

        # ---------------- output projection: lane-dense (N, H) @ (H, Ipad) -------------
        out = jnp.dot(ys_sc[...].reshape(N, H), out_w[...],
                      preferred_element_type=f32) + out_b[...]
        out_ref[...] = out.astype(out_ref.dtype)

    return kernel


# ------------------------------------------------------------------ forward wrapper
def lstm_autoencoder_forward(params, x, *, seq_len, hidden_dim, num_layers):
    B, S, I = x.shape
    assert S == seq_len
    H = hidden_dim
    H4 = 4 * H
    N = S * B
    L = params["fc_enc_b"].shape[-1]
    I_pad = params["out_b"].shape[-1]

    # time-major flatten (tiny XLA glue at these sizes)
    x_flat = jnp.transpose(x, (1, 0, 2)).reshape(N, I).astype(jnp.float32)

    args = [x_flat]
    for l in range(num_layers):
        args += list(params["enc"][l])
    args += [params["fc_enc_w"], params["fc_enc_b"],
             params["fc_dec_w"], params["fc_dec_b"]]
    for l in range(num_layers):
        wih, whh, b = params["dec"][l]
        if l == 0:
            args += [whh, b]          # zero-input layer: W_ih never used
        else:
            args += [wih, whh, b]
    args += [params["out_w"], params["out_b"]]

    # advisory cost estimate for the XLA scheduler around the fused call
    flops = 0
    for l in range(num_layers):
        in_d = I if l == 0 else H
        flops += 2 * N * in_d * H4 + 2 * N * H * H4          # encoder: proj + recurrence
    for l in range(num_layers):
        flops += (2 * N * H * H4 if l > 0 else 0) + 2 * N * H * H4   # decoder
    flops += 2 * B * H * L + 2 * B * L * H                   # fc_enc + fc_dec
    flops += 2 * N * H * I_pad                               # output projection
    transcendentals = 2 * num_layers * N * (2 * H4 + H)
    bytes_accessed = int(sum(int(a.size) * a.dtype.itemsize for a in args)) + N * I_pad * 4

    vmem = pl.BlockSpec(memory_space=pltpu.MemorySpace.VMEM)
    out_flat = pl.pallas_call(
        _build_fused_kernel(S, B, H, num_layers),
        out_shape=jax.ShapeDtypeStruct((N, I_pad), jnp.float32),
        in_specs=[vmem] * len(args),
        out_specs=vmem,
        scratch_shapes=[pltpu.VMEM((S, B, H), jnp.bfloat16),     # hidden sequence (bf16)
                        pltpu.VMEM((S, B, H4), jnp.float32)],    # hoisted input projection
        compiler_params=pltpu.CompilerParams(vmem_limit_bytes=64 * 1024 * 1024),
        cost_estimate=pl.CostEstimate(flops=int(flops),
                                      transcendentals=int(transcendentals),
                                      bytes_accessed=int(bytes_accessed)),
    )(*args)

    out = out_flat[:, :I]                                     # drop lane padding
    return jnp.transpose(out.reshape(S, B, I), (1, 0, 2))     # (B, S, I)


# ------------------------------------------------------------------ parameters
def init_params(key, input_dim, hidden_dim, latent_dim, num_layers, lane_pad=128):
    H = hidden_dim
    keys = iter(jax.random.split(key, 8 * num_layers + 6))

    def unif(shape, bound):
        return jax.random.uniform(next(keys), shape, jnp.float32, -bound, bound)

    def lstm_layer_params(in_dim):
        k = 1.0 / (H ** 0.5)
        w_ih = unif((4 * H, in_dim), k)          # PyTorch layout (4H, in)
        w_hh = unif((4 * H, H), k)               # PyTorch layout (4H, H)
        b_ih = unif((4 * H,), k)
        b_hh = unif((4 * H,), k)
        return (w_ih.T.astype(jnp.bfloat16),               # (in, 4H) bf16
                w_hh.T.astype(jnp.bfloat16),               # (H, 4H)  bf16  (fused gates)
                (b_ih + b_hh).reshape(1, 4 * H))            # (1, 4H)  f32

    params = {"enc": [], "dec": []}
    for l in range(num_layers):
        params["enc"].append(lstm_layer_params(input_dim if l == 0 else H))
    for _ in range(num_layers):
        params["dec"].append(lstm_layer_params(H))          # decoder input size == hidden_dim

    def linear_params(in_dim, out_dim, pad_to=None):
        k = 1.0 / (in_dim ** 0.5)
        w = unif((out_dim, in_dim), k).T                     # (in, out) f32
        b = unif((out_dim,), k).reshape(1, -1)
        if pad_to is not None and pad_to > out_dim:          # zero-pad to lane-dense width
            w = jnp.pad(w, ((0, 0), (0, pad_to - out_dim)))
            b = jnp.pad(b, ((0, 0), (0, pad_to - out_dim)))
        return w.astype(jnp.bfloat16), b

    params["fc_enc_w"], params["fc_enc_b"] = linear_params(H, latent_dim)
    params["fc_dec_w"], params["fc_dec_b"] = linear_params(latent_dim, H)
    params["out_w"], params["out_b"] = linear_params(H, input_dim, pad_to=lane_pad)
    return params


# ------------------------------------------------------------------ pure-JAX reference
def _reference_forward(params, x, *, seq_len, hidden_dim, num_layers):
    B = x.shape[0]
    H = hidden_dim

    def lstm_layer_ref(inp, wih_t, whh_t, bias, h0, c0):
        wih = wih_t.astype(jnp.float32)
        whh = whh_t.astype(jnp.float32)
        h, c = h0, c0
        ys = []
        for t in range(inp.shape[1]):
            pre = inp[:, t, :] @ wih + bias + h @ whh            # (B, 4H)
            i = jax.nn.sigmoid(pre[:, :H])
            f = jax.nn.sigmoid(pre[:, H:2 * H])
            g_ = jnp.tanh(pre[:, 2 * H:3 * H])
            o = jax.nn.sigmoid(pre[:, 3 * H:])
            c = f * c + i * g_
            h = o * jnp.tanh(c)
            ys.append(h)
        return jnp.stack(ys, axis=1), h

    zeros = jnp.zeros((B, H), jnp.float32)
    layer_in, h_last = x, zeros
    for l in range(num_layers):
        layer_in, h_last = lstm_layer_ref(layer_in, *params["enc"][l], zeros, zeros)
    latent = h_last @ params["fc_enc_w"].astype(jnp.float32) + params["fc_enc_b"]
    dec_h0 = latent @ params["fc_dec_w"].astype(jnp.float32) + params["fc_dec_b"]
    layer_in = jnp.zeros((B, seq_len, H), jnp.float32)
    for l in range(num_layers):
        layer_in, _ = lstm_layer_ref(layer_in, *params["dec"][l], dec_h0, zeros)
    return layer_in @ params["out_w"].astype(jnp.float32) + params["out_b"]   # (B, S, Ipad)


if __name__ == "__main__":
    seq_len, input_dim, hidden_dim, latent_dim, num_layers = 8, 8, 32, 16, 2
    batch = 8    # >= 8 so f32 sublanes / the MXU M-dim are actually filled

    key = jax.random.PRNGKey(0)
    pkey, xkey = jax.random.split(key)
    params = init_params(pkey, input_dim, hidden_dim, latent_dim, num_layers)
    x = jax.random.normal(xkey, (batch, seq_len, input_dim), jnp.float32)

    fwd = jax.jit(functools.partial(lstm_autoencoder_forward,
                                    seq_len=seq_len, hidden_dim=hidden_dim,
                                    num_layers=num_layers))
    out = jax.block_until_ready(fwd(params, x))

    assert out.shape == (batch, seq_len, input_dim), out.shape
    assert out.dtype == jnp.float32
    assert bool(jnp.all(jnp.isfinite(out)))

    # Loose check vs. a pure-JAX f32 reference (bf16 MXU matmuls / bf16 hidden-state
    # scratch cause small drift; cell state and nonlinearities are f32 in the kernel).
    ref = _reference_forward(params, x, seq_len=seq_len, hidden_dim=hidden_dim,
                             num_layers=num_layers)[..., :input_dim]
    max_err = float(jnp.max(jnp.abs(out - ref)))
    assert max_err < 0.1, f"max abs err vs reference: {max_err}"

    print("KERNEL_OK")
</pallas_src>

<mosaic_0001>
module attributes {stable_mosaic.version = 11 : i64} {
  func.func @kernel(%arg0: memref<64x8xf32, #tpu.memory_space<vmem>>, %arg1: memref<8x128xbf16, #tpu.memory_space<vmem>>, %arg2: memref<32x128xbf16, #tpu.memory_space<vmem>>, %arg3: memref<1x128xf32, #tpu.memory_space<vmem>>, %arg4: memref<32x128xbf16, #tpu.memory_space<vmem>>, %arg5: memref<32x128xbf16, #tpu.memory_space<vmem>>, %arg6: memref<1x128xf32, #tpu.memory_space<vmem>>, %arg7: memref<32x16xbf16, #tpu.memory_space<vmem>>, %arg8: memref<1x16xf32, #tpu.memory_space<vmem>>, %arg9: memref<16x32xbf16, #tpu.memory_space<vmem>>, %arg10: memref<1x32xf32, #tpu.memory_space<vmem>>, %arg11: memref<32x128xbf16, #tpu.memory_space<vmem>>, %arg12: memref<1x128xf32, #tpu.memory_space<vmem>>, %arg13: memref<32x128xbf16, #tpu.memory_space<vmem>>, %arg14: memref<32x128xbf16, #tpu.memory_space<vmem>>, %arg15: memref<1x128xf32, #tpu.memory_space<vmem>>, %arg16: memref<32x128xbf16, #tpu.memory_space<vmem>>, %arg17: memref<1x128xf32, #tpu.memory_space<vmem>>, %arg18: memref<64x128xf32, #tpu.memory_space<vmem>>, %arg19: memref<8x8x32xbf16, #tpu.memory_space<vmem>>, %arg20: memref<8x8x128xf32, #tpu.memory_space<vmem>>) attributes {dimension_semantics = [], scalar_prefetch = 0 : i64, scratch_operands = 2 : i64, tpu.core_type = #tpu.core_type<tc>} {
    %cst = arith.constant 0.000000e+00 : f32
    %0 = vector.broadcast %cst : f32 to vector<8x32xf32>
    %c0 = arith.constant 0 : index
    %c0_0 = arith.constant 0 : index
    %1 = vector.load %arg0[%c0, %c0_0] : memref<64x8xf32, #tpu.memory_space<vmem>>, vector<64x8xf32>
    %2 = arith.truncf %1 : vector<64x8xf32> to vector<64x8xbf16>
    %c0_1 = arith.constant 0 : index
    %c0_2 = arith.constant 0 : index
    %3 = vector.load %arg1[%c0_1, %c0_2] : memref<8x128xbf16, #tpu.memory_space<vmem>>, vector<8x128xbf16>
    %cst_3 = arith.constant dense<0.000000e+00> : vector<64x128xf32>
    %4 = tpu.matmul %2, %3, %cst_3 {dimension_numbers = #tpu.dot_dimension_numbers<[1], [0], [0], [1], [0, 0, 1, 1], [], []>} : vector<64x8xbf16>, vector<8x128xbf16>, vector<64x128xf32> -> vector<64x128xf32>
    %c0_4 = arith.constant 0 : index
    %c0_5 = arith.constant 0 : index
    %5 = vector.load %arg3[%c0_4, %c0_5] : memref<1x128xf32, #tpu.memory_space<vmem>>, vector<1x128xf32>
    %6 = vector.broadcast %5 : vector<1x128xf32> to vector<64x128xf32>
    %7 = arith.addf %4, %6 : vector<64x128xf32>
    %8 = vector.shape_cast %7 : vector<64x128xf32> to vector<8x8x128xf32>
    %c0_6 = arith.constant 0 : index
    %c0_7 = arith.constant 0 : index
    %c0_8 = arith.constant 0 : index
    %9 = vector.load %arg20[%c0_6, %c0_7, %c0_8] : memref<8x8x128xf32, #tpu.memory_space<vmem>>, vector<8x8x128xf32>
    tpu.vector_store %arg20[%c0_6, %c0_7, %c0_8], %8 {strides = array<i32>} : memref<8x8x128xf32, #tpu.memory_space<vmem>>, vector<8x8x128xf32>,
    %c0_9 = arith.constant 0 : index
    %c0_10 = arith.constant 0 : index
    %10 = vector.load %arg2[%c0_9, %c0_10] : memref<32x128xbf16, #tpu.memory_space<vmem>>, vector<32x128xbf16>
    %c0_i32 = arith.constant 0 : i32
    %11 = arith.truncf %0 : vector<8x32xf32> to vector<8x32xbf16>
    %cst_11 = arith.constant dense<0.000000e+00> : vector<8x128xf32>
    %12 = tpu.matmul %11, %10, %cst_11 {dimension_numbers = #tpu.dot_dimension_numbers<[1], [0], [0], [1], [0, 0, 1, 1], [], []>} : vector<8x32xbf16>, vector<32x128xbf16>, vector<8x128xf32> -> vector<8x128xf32>
    %13 = arith.index_cast %c0_i32 : i32 to index
    %c0_12 = arith.constant 0 : index
    %c0_13 = arith.constant 0 : index
    %14 = vector.load %arg20[%13, %c0_12, %c0_13] : memref<8x8x128xf32, #tpu.memory_space<vmem>>, vector<1x8x128xf32>
    %15 = vector.shape_cast %14 : vector<1x8x128xf32> to vector<8x128xf32>
    %16 = arith.addf %15, %12 : vector<8x128xf32>
    %17 = arith.negf %16 : vector<8x128xf32>
    %18 = math.exp %17 : vector<8x128xf32>
    %cst_14 = arith.constant 1.000000e+00 : f32
    %19 = vector.broadcast %cst_14 : f32 to vector<8x128xf32>
    %20 = arith.addf %19, %18 : vector<8x128xf32>
    %21 = arith.divf %19, %20 : vector<8x128xf32>
    %22 = math.tanh %16 : vector<8x128xf32>
    %23 = vector.extract_strided_slice %21 {offsets = [0, 0], sizes = [8, 32], strides = [1, 1]} : vector<8x128xf32> to vector<8x32xf32>
    %24 = vector.extract_strided_slice %21 {offsets = [0, 32], sizes = [8, 32], strides = [1, 1]} : vector<8x128xf32> to vector<8x32xf32>
    %25 = vector.extract_strided_slice %22 {offsets = [0, 64], sizes = [8, 32], strides = [1, 1]} : vector<8x128xf32> to vector<8x32xf32>
    %26 = vector.extract_strided_slice %21 {offsets = [0, 96], sizes = [8, 32], strides = [1, 1]} : vector<8x128xf32> to vector<8x32xf32>
    %27 = arith.mulf %24, %0 : vector<8x32xf32>
    %28 = arith.mulf %23, %25 : vector<8x32xf32>
    %29 = arith.addf %27, %28 : vector<8x32xf32>
    %30 = math.tanh %29 : vector<8x32xf32>
    %31 = arith.mulf %26, %30 : vector<8x32xf32>
    %32 = arith.truncf %31 : vector<8x32xf32> to vector<8x32xbf16>
    %33 = arith.index_cast %c0_i32 : i32 to index
    %c0_15 = arith.constant 0 : index
    %c0_16 = arith.constant 0 : index
    %34 = vector.load %arg19[%33, %c0_15, %c0_16] : memref<8x8x32xbf16, #tpu.memory_space<vmem>>, vector<1x8x32xbf16>
    %35 = vector.shape_cast %34 : vector<1x8x32xbf16> to vector<8x32xbf16>
    %36 = vector.shape_cast %32 : vector<8x32xbf16> to vector<1x8x32xbf16>
    tpu.vector_store %arg19[%33, %c0_15, %c0_16], %36 {strides = array<i32>} : memref<8x8x32xbf16, #tpu.memory_space<vmem>>, vector<1x8x32xbf16>,
    %c1_i32 = arith.constant 1 : i32
    %37 = arith.truncf %31 : vector<8x32xf32> to vector<8x32xbf16>
    %cst_17 = arith.constant dense<0.000000e+00> : vector<8x128xf32>
    %38 = tpu.matmul %37, %10, %cst_17 {dimension_numbers = #tpu.dot_dimension_numbers<[1], [0], [0], [1], [0, 0, 1, 1], [], []>} : vector<8x32xbf16>, vector<32x128xbf16>, vector<8x128xf32> -> vector<8x128xf32>
    %39 = arith.index_cast %c1_i32 : i32 to index
    %c0_18 = arith.constant 0 : index
    %c0_19 = arith.constant 0 : index
    %40 = vector.load %arg20[%39, %c0_18, %c0_19] : memref<8x8x128xf32, #tpu.memory_space<vmem>>, vector<1x8x128xf32>
    %41 = vector.shape_cast %40 : vector<1x8x128xf32> to vector<8x128xf32>
    %42 = arith.addf %41, %38 : vector<8x128xf32>
    %43 = arith.negf %42 : vector<8x128xf32>
    %44 = math.exp %43 : vector<8x128xf32>
    %cst_20 = arith.constant 1.000000e+00 : f32
    %45 = vector.broadcast %cst_20 : f32 to vector<8x128xf32>
    %46 = arith.addf %45, %44 : vector<8x128xf32>
    %47 = arith.divf %45, %46 : vector<8x128xf32>
    %48 = math.tanh %42 : vector<8x128xf32>
    %49 = vector.extract_strided_slice %47 {offsets = [0, 0], sizes = [8, 32], strides = [1, 1]} : vector<8x128xf32> to vector<8x32xf32>
    %50 = vector.extract_strided_slice %47 {offsets = [0, 32], sizes = [8, 32], strides = [1, 1]} : vector<8x128xf32> to vector<8x32xf32>
    %51 = vector.extract_strided_slice %48 {offsets = [0, 64], sizes = [8, 32], strides = [1, 1]} : vector<8x128xf32> to vector<8x32xf32>
    %52 = vector.extract_strided_slice %47 {offsets = [0, 96], sizes = [8, 32], strides = [1, 1]} : vector<8x128xf32> to vector<8x32xf32>
    %53 = arith.mulf %50, %29 : vector<8x32xf32>
    %54 = arith.mulf %49, %51 : vector<8x32xf32>
    %55 = arith.addf %53, %54 : vector<8x32xf32>
    %56 = math.tanh %55 : vector<8x32xf32>
    %57 = arith.mulf %52, %56 : vector<8x32xf32>
    %58 = arith.truncf %57 : vector<8x32xf32> to vector<8x32xbf16>
    %59 = arith.index_cast %c1_i32 : i32 to index
    %c0_21 = arith.constant 0 : index
    %c0_22 = arith.constant 0 : index
    %60 = vector.load %arg19[%59, %c0_21, %c0_22] : memref<8x8x32xbf16, #tpu.memory_space<vmem>>, vector<1x8x32xbf16>
    %61 = vector.shape_cast %60 : vector<1x8x32xbf16> to vector<8x32xbf16>
    %62 = vector.shape_cast %58 : vector<8x32xbf16> to vector<1x8x32xbf16>
    tpu.vector_store %arg19[%59, %c0_21, %c0_22], %62 {strides = array<i32>} : memref<8x8x32xbf16, #tpu.memory_space<vmem>>, vector<1x8x32xbf16>,
    %c2_i32 = arith.constant 2 : i32
    %63 = arith.truncf %57 : vector<8x32xf32> to vector<8x32xbf16>
    %cst_23 = arith.constant dense<0.000000e+00> : vector<8x128xf32>
    %64 = tpu.matmul %63, %10, %cst_23 {dimension_numbers = #tpu.dot_dimension_numbers<[1], [0], [0], [1], [0, 0, 1, 1], [], []>} : vector<8x32xbf16>, vector<32x128xbf16>, vector<8x128xf32> -> vector<8x128xf32>
    %65 = arith.index_cast %c2_i32 : i32 to index
    %c0_24 = arith.constant 0 : index
    %c0_25 = arith.constant 0 : index
    %66 = vector.load %arg20[%65, %c0_24, %c0_25] : memref<8x8x128xf32, #tpu.memory_space<vmem>>, vector<1x8x128xf32>
    %67 = vector.shape_cast %66 : vector<1x8x128xf32> to vector<8x128xf32>
    %68 = arith.addf %67, %64 : vector<8x128xf32>
    %69 = arith.negf %68 : vector<8x128xf32>
    %70 = math.exp %69 : vector<8x128xf32>
    %cst_26 = arith.constant 1.000000e+00 : f32
    %71 = vector.broadcast %cst_26 : f32 to vector<8x128xf32>
    %72 = arith.addf %71, %70 : vector<8x128xf32>
    %73 = arith.divf %71, %72 : vector<8x128xf32>
    %74 = math.tanh %68 : vector<8x128xf32>
    %75 = vector.extract_strided_slice %73 {offsets = [0, 0], sizes = [8, 32], strides = [1, 1]} : vector<8x128xf32> to vector<8x32xf32>
    %76 = vector.extract_strided_slice %73 {offsets = [0, 32], sizes = [8, 32], strides = [1, 1]} : vector<8x128xf32> to vector<8x32xf32>
    %77 = vector.extract_strided_slice %74 {offsets = [0, 64], sizes = [8, 32], strides = [1, 1]} : vector<8x128xf32> to vector<8x32xf32>
    %78 = vector.extract_strided_slice %73 {offsets = [0, 96], sizes = [8, 32], strides = [1, 1]} : vector<8x128xf32> to vector<8x32xf32>
    %79 = arith.mulf %76, %55 : vector<8x32xf32>
    %80 = arith.mulf %75, %77 : vector<8x32xf32>
    %81 = arith.addf %79, %80 : vector<8x32xf32>
    %82 = math.tanh %81 : vector<8x32xf32>
    %83 = arith.mulf %78, %82 : vector<8x32xf32>
    %84 = arith.truncf %83 : vector<8x32xf32> to vector<8x32xbf16>
    %85 = arith.index_cast %c2_i32 : i32 to index
    %c0_27 = arith.constant 0 : index
    %c0_28 = arith.constant 0 : index
    %86 = vector.load %arg19[%85, %c0_27, %c0_28] : memref<8x8x32xbf16, #tpu.memory_space<vmem>>, vector<1x8x32xbf16>
    %87 = vector.shape_cast %86 : vector<1x8x32xbf16> to vector<8x32xbf16>
    %88 = vector.shape_cast %84 : vector<8x32xbf16> to vector<1x8x32xbf16>
    tpu.vector_store %arg19[%85, %c0_27, %c0_28], %88 {strides = array<i32>} : memref<8x8x32xbf16, #tpu.memory_space<vmem>>, vector<1x8x32xbf16>,
    %c3_i32 = arith.constant 3 : i32
    %89 = arith.truncf %83 : vector<8x32xf32> to vector<8x32xbf16>
    %cst_29 = arith.constant dense<0.000000e+00> : vector<8x128xf32>
    %90 = tpu.matmul %89, %10, %cst_29 {dimension_numbers = #tpu.dot_dimension_numbers<[1], [0], [0], [1], [0, 0, 1, 1], [], []>} : vector<8x32xbf16>, vector<32x128xbf16>, vector<8x128xf32> -> vector<8x128xf32>
    %91 = arith.index_cast %c3_i32 : i32 to index
    %c0_30 = arith.constant 0 : index
    %c0_31 = arith.constant 0 : index
    %92 = vector.load %arg20[%91, %c0_30, %c0_31] : memref<8x8x128xf32, #tpu.memory_space<vmem>>, vector<1x8x128xf32>
    %93 = vector.shape_cast %92 : vector<1x8x128xf32> to vector<8x128xf32>
    %94 = arith.addf %93, %90 : vector<8x128xf32>
    %95 = arith.negf %94 : vector<8x128xf32>
    %96 = math.exp %95 : vector<8x128xf32>
    %cst_32 = arith.constant 1.000000e+00 : f32
    %97 = vector.broadcast %cst_32 : f32 to vector<8x128xf32>
    %98 = arith.addf %97, %96 : vector<8x128xf32>
    %99 = arith.divf %97, %98 : vector<8x128xf32>
    %100 = math.tanh %94 : vector<8x128xf32>
    %101 = vector.extract_strided_slice %99 {offsets = [0, 0], sizes = [8, 32], strides = [1, 1]} : vector<8x128xf32> to vector<8x32xf32>
    %102 = vector.extract_strided_slice %99 {offsets = [0, 32], sizes = [8, 32], strides = [1, 1]} : vector<8x128xf32> to vector<8x32xf32>
    %103 = vector.extract_strided_slice %100 {offsets = [0, 64], sizes = [8, 32], strides = [1, 1]} : vector<8x128xf32> to vector<8x32xf32>
    %104 = vector.extract_strided_slice %99 {offsets = [0, 96], sizes = [8, 32], strides = [1, 1]} : vector<8x128xf32> to vector<8x32xf32>
    %105 = arith.mulf %102, %81 : vector<8x32xf32>
    %106 = arith.mulf %101, %103 : vector<8x32xf32>
    %107 = arith.addf %105, %106 : vector<8x32xf32>
    %108 = math.tanh %107 : vector<8x32xf32>
    %109 = arith.mulf %104, %108 : vector<8x32xf32>
    %110 = arith.truncf %109 : vector<8x32xf32> to vector<8x32xbf16>
    %111 = arith.index_cast %c3_i32 : i32 to index
    %c0_33 = arith.constant 0 : index
    %c0_34 = arith.constant 0 : index
    %112 = vector.load %arg19[%111, %c0_33, %c0_34] : memref<8x8x32xbf16, #tpu.memory_space<vmem>>, vector<1x8x32xbf16>
    %113 = vector.shape_cast %112 : vector<1x8x32xbf16> to vector<8x32xbf16>
    %114 = vector.shape_cast %110 : vector<8x32xbf16> to vector<1x8x32xbf16>
    tpu.vector_store %arg19[%111, %c0_33, %c0_34], %114 {strides = array<i32>} : memref<8x8x32xbf16, #tpu.memory_space<vmem>>, vector<1x8x32xbf16>,
    %c4_i32 = arith.constant 4 : i32
    %115 = arith.truncf %109 : vector<8x32xf32> to vector<8x32xbf16>
    %cst_35 = arith.constant dense<0.000000e+00> : vector<8x128xf32>
    %116 = tpu.matmul %115, %10, %cst_35 {dimension_numbers = #tpu.dot_dimension_numbers<[1], [0], [0], [1], [0, 0, 1, 1], [], []>} : vector<8x32xbf16>, vector<32x128xbf16>, vector<8x128xf32> -> vector<8x128xf32>
    %117 = arith.index_cast %c4_i32 : i32 to index
    %c0_36 = arith.constant 0 : index
    %c0_37 = arith.constant 0 : index
    %118 = vector.load %arg20[%117, %c0_36, %c0_37] : memref<8x8x128xf32, #tpu.memory_space<vmem>>, vector<1x8x128xf32>
    %119 = vector.shape_cast %118 : vector<1x8x128xf32> to vector<8x128xf32>
    %120 = arith.addf %119, %116 : vector<8x128xf32>
    %121 = arith.negf %120 : vector<8x128xf32>
    %122 = math.exp %121 : vector<8x128xf32>
    %cst_38 = arith.constant 1.000000e+00 : f32
    %123 = vector.broadcast %cst_38 : f32 to vector<8x128xf32>
    %124 = arith.addf %123, %122 : vector<8x128xf32>
    %125 = arith.divf %123, %124 : vector<8x128xf32>
    %126 = math.tanh %120 : vector<8x128xf32>
    %127 = vector.extract_strided_slice %125 {offsets = [0, 0], sizes = [8, 32], strides = [1, 1]} : vector<8x128xf32> to vector<8x32xf32>
    %128 = vector.extract_strided_slice %125 {offsets = [0, 32], sizes = [8, 32], strides = [1, 1]} : vector<8x128xf32> to vector<8x32xf32>
    %129 = vector.extract_strided_slice %126 {offsets = [0, 64], sizes = [8, 32], strides = [1, 1]} : vector<8x128xf32> to vector<8x32xf32>
    %130 = vector.extract_strided_slice %125 {offsets = [0, 96], sizes = [8, 32], strides = [1, 1]} : vector<8x128xf32> to vector<8x32xf32>
    %131 = arith.mulf %128, %107 : vector<8x32xf32>
    %132 = arith.mulf %127, %129 : vector<8x32xf32>
    %133 = arith.addf %131, %132 : vector<8x32xf32>
    %134 = math.tanh %133 : vector<8x32xf32>
    %135 = arith.mulf %130, %134 : vector<8x32xf32>
    %136 = arith.truncf %135 : vector<8x32xf32> to vector<8x32xbf16>
    %137 = arith.index_cast %c4_i32 : i32 to index
    %c0_39 = arith.constant 0 : index
    %c0_40 = arith.constant 0 : index
    %138 = vector.load %arg19[%137, %c0_39, %c0_40] : memref<8x8x32xbf16, #tpu.memory_space<vmem>>, vector<1x8x32xbf16>
    %139 = vector.shape_cast %138 : vector<1x8x32xbf16> to vector<8x32xbf16>
    %140 = vector.shape_cast %136 : vector<8x32xbf16> to vector<1x8x32xbf16>
    tpu.vector_store %arg19[%137, %c0_39, %c0_40], %140 {strides = array<i32>} : memref<8x8x32xbf16, #tpu.memory_space<vmem>>, vector<1x8x32xbf16>,
    %c5_i32 = arith.constant 5 : i32
    %141 = arith.truncf %135 : vector<8x32xf32> to vector<8x32xbf16>
    %cst_41 = arith.constant dense<0.000000e+00> : vector<8x128xf32>
    %142 = tpu.matmul %141, %10, %cst_41 {dimension_numbers = #tpu.dot_dimension_numbers<[1], [0], [0], [1], [0, 0, 1, 1], [], []>} : vector<8x32xbf16>, vector<32x128xbf16>, vector<8x128xf32> -> vector<8x128xf32>
    %143 = arith.index_cast %c5_i32 : i32 to index
    %c0_42 = arith.constant 0 : index
    %c0_43 = arith.constant 0 : index
    %144 = vector.load %arg20[%143, %c0_42, %c0_43] : memref<8x8x128xf32, #tpu.memory_space<vmem>>, vector<1x8x128xf32>
    %145 = vector.shape_cast %144 : vector<1x8x128xf32> to vector<8x128xf32>
    %146 = arith.addf %145, %142 : vector<8x128xf32>
    %147 = arith.negf %146 : vector<8x128xf32>
    %148 = math.exp %147 : vector<8x128xf32>
    %cst_44 = arith.constant 1.000000e+00 : f32
    %149 = vector.broadcast %cst_44 : f32 to vector<8x128xf32>
    %150 = arith.addf %149, %148 : vector<8x128xf32>
    %151 = arith.divf %149, %150 : vector<8x128xf32>
    %152 = math.tanh %146 : vector<8x128xf32>
    %153 = vector.extract_strided_slice %151 {offsets = [0, 0], sizes = [8, 32], strides = [1, 1]} : vector<8x128xf32> to vector<8x32xf32>
    %154 = vector.extract_strided_slice %151 {offsets = [0, 32], sizes = [8, 32], strides = [1, 1]} : vector<8x128xf32> to vector<8x32xf32>
    %155 = vector.extract_strided_slice %152 {offsets = [0, 64], sizes = [8, 32], strides = [1, 1]} : vector<8x128xf32> to vector<8x32xf32>
    %156 = vector.extract_strided_slice %151 {offsets = [0, 96], sizes = [8, 32], strides = [1, 1]} : vector<8x128xf32> to vector<8x32xf32>
    %157 = arith.mulf %154, %133 : vector<8x32xf32>
    %158 = arith.mulf %153, %155 : vector<8x32xf32>
    %159 = arith.addf %157, %158 : vector<8x32xf32>
    %160 = math.tanh %159 : vector<8x32xf32>
    %161 = arith.mulf %156, %160 : vector<8x32xf32>
    %162 = arith.truncf %161 : vector<8x32xf32> to vector<8x32xbf16>
    %163 = arith.index_cast %c5_i32 : i32 to index
    %c0_45 = arith.constant 0 : index
    %c0_46 = arith.constant 0 : index
    %164 = vector.load %arg19[%163, %c0_45, %c0_46] : memref<8x8x32xbf16, #tpu.memory_space<vmem>>, vector<1x8x32xbf16>
    %165 = vector.shape_cast %164 : vector<1x8x32xbf16> to vector<8x32xbf16>
    %166 = vector.shape_cast %162 : vector<8x32xbf16> to vector<1x8x32xbf16>
    tpu.vector_store %arg19[%163, %c0_45, %c0_46], %166 {strides = array<i32>} : memref<8x8x32xbf16, #tpu.memory_space<vmem>>, vector<1x8x32xbf16>,
    %c6_i32 = arith.constant 6 : i32
    %167 = arith.truncf %161 : vector<8x32xf32> to vector<8x32xbf16>
    %cst_47 = arith.constant dense<0.000000e+00> : vector<8x128xf32>
    %168 = tpu.matmul %167, %10, %cst_47 {dimension_numbers = #tpu.dot_dimension_numbers<[1], [0], [0], [1], [0, 0, 1, 1], [], []>} : vector<8x32xbf16>, vector<32x128xbf16>, vector<8x128xf32> -> vector<8x128xf32>
    %169 = arith.index_cast %c6_i32 : i32 to index
    %c0_48 = arith.constant 0 : index
    %c0_49 = arith.constant 0 : index
    %170 = vector.load %arg20[%169, %c0_48, %c0_49] : memref<8x8x128xf32, #tpu.memory_space<vmem>>, vector<1x8x128xf32>
    %171 = vector.shape_cast %170 : vector<1x8x128xf32> to vector<8x128xf32>
    %172 = arith.addf %171, %168 : vector<8x128xf32>
    %173 = arith.negf %172 : vector<8x128xf32>
    %174 = math.exp %173 : vector<8x128xf32>
    %cst_50 = arith.constant 1.000000e+00 : f32
    %175 = vector.broadcast %cst_50 : f32 to vector<8x128xf32>
    %176 = arith.addf %175, %174 : vector<8x128xf32>
    %177 = arith.divf %175, %176 : vector<8x128xf32>
    %178 = math.tanh %172 : vector<8x128xf32>
    %179 = vector.extract_strided_slice %177 {offsets = [0, 0], sizes = [8, 32], strides = [1, 1]} : vector<8x128xf32> to vector<8x32xf32>
    %180 = vector.extract_strided_slice %177 {offsets = [0, 32], sizes = [8, 32], strides = [1, 1]} : vector<8x128xf32> to vector<8x32xf32>
    %181 = vector.extract_strided_slice %178 {offsets = [0, 64], sizes = [8, 32], strides = [1, 1]} : vector<8x128xf32> to vector<8x32xf32>
    %182 = vector.extract_strided_slice %177 {offsets = [0, 96], sizes = [8, 32], strides = [1, 1]} : vector<8x128xf32> to vector<8x32xf32>
    %183 = arith.mulf %180, %159 : vector<8x32xf32>
    %184 = arith.mulf %179, %181 : vector<8x32xf32>
    %185 = arith.addf %183, %184 : vector<8x32xf32>
    %186 = math.tanh %185 : vector<8x32xf32>
    %187 = arith.mulf %182, %186 : vector<8x32xf32>
    %188 = arith.truncf %187 : vector<8x32xf32> to vector<8x32xbf16>
    %189 = arith.index_cast %c6_i32 : i32 to index
    %c0_51 = arith.constant 0 : index
    %c0_52 = arith.constant 0 : index
    %190 = vector.load %arg19[%189, %c0_51, %c0_52] : memref<8x8x32xbf16, #tpu.memory_space<vmem>>, vector<1x8x32xbf16>
    %191 = vector.shape_cast %190 : vector<1x8x32xbf16> to vector<8x32xbf16>
    %192 = vector.shape_cast %188 : vector<8x32xbf16> to vector<1x8x32xbf16>
    tpu.vector_store %arg19[%189, %c0_51, %c0_52], %192 {strides = array<i32>} : memref<8x8x32xbf16, #tpu.memory_space<vmem>>, vector<1x8x32xbf16>,
    %c7_i32 = arith.constant 7 : i32
    %193 = arith.truncf %187 : vector<8x32xf32> to vector<8x32xbf16>
    %cst_53 = arith.constant dense<0.000000e+00> : vector<8x128xf32>
    %194 = tpu.matmul %193, %10, %cst_53 {dimension_numbers = #tpu.dot_dimension_numbers<[1], [0], [0], [1], [0, 0, 1, 1], [], []>} : vector<8x32xbf16>, vector<32x128xbf16>, vector<8x128xf32> -> vector<8x128xf32>
    %195 = arith.index_cast %c7_i32 : i32 to index
    %c0_54 = arith.constant 0 : index
    %c0_55 = arith.constant 0 : index
    %196 = vector.load %arg20[%195, %c0_54, %c0_55] : memref<8x8x128xf32, #tpu.memory_space<vmem>>, vector<1x8x128xf32>
    %197 = vector.shape_cast %196 : vector<1x8x128xf32> to vector<8x128xf32>
    %198 = arith.addf %197, %194 : vector<8x128xf32>
    %199 = arith.negf %198 : vector<8x128xf32>
    %200 = math.exp %199 : vector<8x128xf32>
    %cst_56 = arith.constant 1.000000e+00 : f32
    %201 = vector.broadcast %cst_56 : f32 to vector<8x128xf32>
    %202 = arith.addf %201, %200 : vector<8x128xf32>
    %203 = arith.divf %201, %202 : vector<8x128xf32>
    %204 = math.tanh %198 : vector<8x128xf32>
    %205 = vector.extract_strided_slice %203 {offsets = [0, 0], sizes = [8, 32], strides = [1, 1]} : vector<8x128xf32> to vector<8x32xf32>
    %206 = vector.extract_strided_slice %203 {offsets = [0, 32], sizes = [8, 32], strides = [1, 1]} : vector<8x128xf32> to vector<8x32xf32>
    %207 = vector.extract_strided_slice %204 {offsets = [0, 64], sizes = [8, 32], strides = [1, 1]} : vector<8x128xf32> to vector<8x32xf32>
    %208 = vector.extract_strided_slice %203 {offsets = [0, 96], sizes = [8, 32], strides = [1, 1]} : vector<8x128xf32> to vector<8x32xf32>
    %209 = arith.mulf %206, %185 : vector<8x32xf32>
    %210 = arith.mulf %205, %207 : vector<8x32xf32>
    %211 = arith.addf %209, %210 : vector<8x32xf32>
    %212 = math.tanh %211 : vector<8x32xf32>
    %213 = arith.mulf %208, %212 : vector<8x32xf32>
    %214 = arith.truncf %213 : vector<8x32xf32> to vector<8x32xbf16>
    %215 = arith.index_cast %c7_i32 : i32 to index
    %c0_57 = arith.constant 0 : index
    %c0_58 = arith.constant 0 : index
    %216 = vector.load %arg19[%215, %c0_57, %c0_58] : memref<8x8x32xbf16, #tpu.memory_space<vmem>>, vector<1x8x32xbf16>
    %217 = vector.shape_cast %216 : vector<1x8x32xbf16> to vector<8x32xbf16>
    %218 = vector.shape_cast %214 : vector<8x32xbf16> to vector<1x8x32xbf16>
    tpu.vector_store %arg19[%215, %c0_57, %c0_58], %218 {strides = array<i32>} : memref<8x8x32xbf16, #tpu.memory_space<vmem>>, vector<1x8x32xbf16>,
    %c8_i32 = arith.constant 8 : i32
    %c0_59 = arith.constant 0 : index
    %c0_60 = arith.constant 0 : index
    %c0_61 = arith.constant 0 : index
    %219 = vector.load %arg19[%c0_59, %c0_60, %c0_61] : memref<8x8x32xbf16, #tpu.memory_space<vmem>>, vector<8x8x32xbf16>
    %220 = vector.shape_cast %219 : vector<8x8x32xbf16> to vector<64x32xbf16>
    %c0_62 = arith.constant 0 : index
    %c0_63 = arith.constant 0 : index
    %221 = vector.load %arg4[%c0_62, %c0_63] : memref<32x128xbf16, #tpu.memory_space<vmem>>, vector<32x128xbf16>
    %cst_64 = arith.constant dense<0.000000e+00> : vector<64x128xf32>
    %222 = tpu.matmul %220, %221, %cst_64 {dimension_numbers = #tpu.dot_dimension_numbers<[1], [0], [0], [1], [0, 0, 1, 1], [], []>} : vector<64x32xbf16>, vector<32x128xbf16>, vector<64x128xf32> -> vector<64x128xf32>
    %c0_65 = arith.constant 0 : index
    %c0_66 = arith.constant 0 : index
    %223 = vector.load %arg6[%c0_65, %c0_66] : memref<1x128xf32, #tpu.memory_space<vmem>>, vector<1x128xf32>
    %224 = vector.broadcast %223 : vector<1x128xf32> to vector<64x128xf32>
    %225 = arith.addf %222, %224 : vector<64x128xf32>
    %226 = vector.shape_cast %225 : vector<64x128xf32> to vector<8x8x128xf32>
    %c0_67 = arith.constant 0 : index
    %c0_68 = arith.constant 0 : index
    %c0_69 = arith.constant 0 : index
    %227 = vector.load %arg20[%c0_67, %c0_68, %c0_69] : memref<8x8x128xf32, #tpu.memory_space<vmem>>, vector<8x8x128xf32>
    tpu.vector_store %arg20[%c0_67, %c0_68, %c0_69], %226 {strides = array<i32>} : memref<8x8x128xf32, #tpu.memory_space<vmem>>, vector<8x8x128xf32>,
    %c0_70 = arith.constant 0 : index
    %c0_71 = arith.constant 0 : index
    %228 = vector.load %arg5[%c0_70, %c0_71] : memref<32x128xbf16, #tpu.memory_space<vmem>>, vector<32x128xbf16>
    %c0_i32_72 = arith.constant 0 : i32
    %229 = arith.truncf %0 : vector<8x32xf32> to vector<8x32xbf16>
    %cst_73 = arith.constant dense<0.000000e+00> : vector<8x128xf32>
    %230 = tpu.matmul %229, %228, %cst_73 {dimension_numbers = #tpu.dot_dimension_numbers<[1], [0], [0], [1], [0, 0, 1, 1], [], []>} : vector<8x32xbf16>, vector<32x128xbf16>, vector<8x128xf32> -> vector<8x128xf32>
    %231 = arith.index_cast %c0_i32_72 : i32 to index
    %c0_74 = arith.constant 0 : index
    %c0_75 = arith.constant 0 : index
    %232 = vector.load %arg20[%231, %c0_74, %c0_75] : memref<8x8x128xf32, #tpu.memory_space<vmem>>, vector<1x8x128xf32>
    %233 = vector.shape_cast %232 : vector<1x8x128xf32> to vector<8x128xf32>
    %234 = arith.addf %233, %230 : vector<8x128xf32>
    %235 = arith.negf %234 : vector<8x128xf32>
    %236 = math.exp %235 : vector<8x128xf32>
    %cst_76 = arith.constant 1.000000e+00 : f32
    %237 = vector.broadcast %cst_76 : f32 to vector<8x128xf32>
    %238 = arith.addf %237, %236 : vector<8x128xf32>
    %239 = arith.divf %237, %238 : vector<8x128xf32>
    %240 = math.tanh %234 : vector<8x128xf32>
    %241 = vector.extract_strided_slice %239 {offsets = [0, 0], sizes = [8, 32], strides = [1, 1]} : vector<8x128xf32> to vector<8x32xf32>
    %242 = vector.extract_strided_slice %239 {offsets = [0, 32], sizes = [8, 32], strides = [1, 1]} : vector<8x128xf32> to vector<8x32xf32>
    %243 = vector.extract_strided_slice %240 {offsets = [0, 64], sizes = [8, 32], strides = [1, 1]} : vector<8x128xf32> to vector<8x32xf32>
    %244 = vector.extract_strided_slice %239 {offsets = [0, 96], sizes = [8, 32], strides = [1, 1]} : vector<8x128xf32> to vector<8x32xf32>
    %245 = arith.mulf %242, %0 : vector<8x32xf32>
    %246 = arith.mulf %241, %243 : vector<8x32xf32>
    %247 = arith.addf %245, %246 : vector<8x32xf32>
    %248 = math.tanh %247 : vector<8x32xf32>
    %249 = arith.mulf %244, %248 : vector<8x32xf32>
    %c1_i32_77 = arith.constant 1 : i32
    %250 = arith.truncf %249 : vector<8x32xf32> to vector<8x32xbf16>
    %cst_78 = arith.constant dense<0.000000e+00> : vector<8x128xf32>
    %251 = tpu.matmul %250, %228, %cst_78 {dimension_numbers = #tpu.dot_dimension_numbers<[1], [0], [0], [1], [0, 0, 1, 1], [], []>} : vector<8x32xbf16>, vector<32x128xbf16>, vector<8x128xf32> -> vector<8x128xf32>
    %252 = arith.index_cast %c1_i32_77 : i32 to index
    %c0_79 = arith.constant 0 : index
    %c0_80 = arith.constant 0 : index
    %253 = vector.load %arg20[%252, %c0_79, %c0_80] : memref<8x8x128xf32, #tpu.memory_space<vmem>>, vector<1x8x128xf32>
    %254 = vector.shape_cast %253 : vector<1x8x128xf32> to vector<8x128xf32>
    %255 = arith.addf %254, %251 : vector<8x128xf32>
    %256 = arith.negf %255 : vector<8x128xf32>
    %257 = math.exp %256 : vector<8x128xf32>
    %cst_81 = arith.constant 1.000000e+00 : f32
    %258 = vector.broadcast %cst_81 : f32 to vector<8x128xf32>
    %259 = arith.addf %258, %257 : vector<8x128xf32>
    %260 = arith.divf %258, %259 : vector<8x128xf32>
    %261 = math.tanh %255 : vector<8x128xf32>
    %262 = vector.extract_strided_slice %260 {offsets = [0, 0], sizes = [8, 32], strides = [1, 1]} : vector<8x128xf32> to vector<8x32xf32>
    %263 = vector.extract_strided_slice %260 {offsets = [0, 32], sizes = [8, 32], strides = [1, 1]} : vector<8x128xf32> to vector<8x32xf32>
    %264 = vector.extract_strided_slice %261 {offsets = [0, 64], sizes = [8, 32], strides = [1, 1]} : vector<8x128xf32> to vector<8x32xf32>
    %265 = vector.extract_strided_slice %260 {offsets = [0, 96], sizes = [8, 32], strides = [1, 1]} : vector<8x128xf32> to vector<8x32xf32>
    %266 = arith.mulf %263, %247 : vector<8x32xf32>
    %267 = arith.mulf %262, %264 : vector<8x32xf32>
    %268 = arith.addf %266, %267 : vector<8x32xf32>
    %269 = math.tanh %268 : vector<8x32xf32>
    %270 = arith.mulf %265, %269 : vector<8x32xf32>
    %c2_i32_82 = arith.constant 2 : i32
    %271 = arith.truncf %270 : vector<8x32xf32> to vector<8x32xbf16>
    %cst_83 = arith.constant dense<0.000000e+00> : vector<8x128xf32>
    %272 = tpu.matmul %271, %228, %cst_83 {dimension_numbers = #tpu.dot_dimension_numbers<[1], [0], [0], [1], [0, 0, 1, 1], [], []>} : vector<8x32xbf16>, vector<32x128xbf16>, vector<8x128xf32> -> vector<8x128xf32>
    %273 = arith.index_cast %c2_i32_82 : i32 to index
    %c0_84 = arith.constant 0 : index
    %c0_85 = arith.constant 0 : index
    %274 = vector.load %arg20[%273, %c0_84, %c0_85] : memref<8x8x128xf32, #tpu.memory_space<vmem>>, vector<1x8x128xf32>
    %275 = vector.shape_cast %274 : vector<1x8x128xf32> to vector<8x128xf32>
    %276 = arith.addf %275, %272 : vector<8x128xf32>
    %277 = arith.negf %276 : vector<8x128xf32>
    %278 = math.exp %277 : vector<8x128xf32>
    %cst_86 = arith.constant 1.000000e+00 : f32
    %279 = vector.broadcast %cst_86 : f32 to vector<8x128xf32>
    %280 = arith.addf %279, %278 : vector<8x128xf32>
    %281 = arith.divf %279, %280 : vector<8x128xf32>
    %282 = math.tanh %276 : vector<8x128xf32>
    %283 = vector.extract_strided_slice %281 {offsets = [0, 0], sizes = [8, 32], strides = [1, 1]} : vector<8x128xf32> to vector<8x32xf32>
    %284 = vector.extract_strided_slice %281 {offsets = [0, 32], sizes = [8, 32], strides = [1, 1]} : vector<8x128xf32> to vector<8x32xf32>
    %285 = vector.extract_strided_slice %282 {offsets = [0, 64], sizes = [8, 32], strides = [1, 1]} : vector<8x128xf32> to vector<8x32xf32>
    %286 = vector.extract_strided_slice %281 {offsets = [0, 96], sizes = [8, 32], strides = [1, 1]} : vector<8x128xf32> to vector<8x32xf32>
    %287 = arith.mulf %284, %268 : vector<8x32xf32>
    %288 = arith.mulf %283, %285 : vector<8x32xf32>
    %289 = arith.addf %287, %288 : vector<8x32xf32>
    %290 = math.tanh %289 : vector<8x32xf32>
    %291 = arith.mulf %286, %290 : vector<8x32xf32>
    %c3_i32_87 = arith.constant 3 : i32
    %292 = arith.truncf %291 : vector<8x32xf32> to vector<8x32xbf16>
    %cst_88 = arith.constant dense<0.000000e+00> : vector<8x128xf32>
    %293 = tpu.matmul %292, %228, %cst_88 {dimension_numbers = #tpu.dot_dimension_numbers<[1], [0], [0], [1], [0, 0, 1, 1], [], []>} : vector<8x32xbf16>, vector<32x128xbf16>, vector<8x128xf32> -> vector<8x128xf32>
    %294 = arith.index_cast %c3_i32_87 : i32 to index
    %c0_89 = arith.constant 0 : index
    %c0_90 = arith.constant 0 : index
    %295 = vector.load %arg20[%294, %c0_89, %c0_90] : memref<8x8x128xf32, #tpu.memory_space<vmem>>, vector<1x8x128xf32>
    %296 = vector.shape_cast %295 : vector<1x8x128xf32> to vector<8x128xf32>
    %297 = arith.addf %296, %293 : vector<8x128xf32>
    %298 = arith.negf %297 : vector<8x128xf32>
    %299 = math.exp %298 : vector<8x128xf32>
    %cst_91 = arith.constant 1.000000e+00 : f32
    %300 = vector.broadcast %cst_91 : f32 to vector<8x128xf32>
    %301 = arith.addf %300, %299 : vector<8x128xf32>
    %302 = arith.divf %300, %301 : vector<8x128xf32>
    %303 = math.tanh %297 : vector<8x128xf32>
    %304 = vector.extract_strided_slice %302 {offsets = [0, 0], sizes = [8, 32], strides = [1, 1]} : vector<8x128xf32> to vector<8x32xf32>
    %305 = vector.extract_strided_slice %302 {offsets = [0, 32], sizes = [8, 32], strides = [1, 1]} : vector<8x128xf32> to vector<8x32xf32>
    %306 = vector.extract_strided_slice %303 {offsets = [0, 64], sizes = [8, 32], strides = [1, 1]} : vector<8x128xf32> to vector<8x32xf32>
    %307 = vector.extract_strided_slice %302 {offsets = [0, 96], sizes = [8, 32], strides = [1, 1]} : vector<8x128xf32> to vector<8x32xf32>
    %308 = arith.mulf %305, %289 : vector<8x32xf32>
    %309 = arith.mulf %304, %306 : vector<8x32xf32>
    %310 = arith.addf %308, %309 : vector<8x32xf32>
    %311 = math.tanh %310 : vector<8x32xf32>
    %312 = arith.mulf %307, %311 : vector<8x32xf32>
    %c4_i32_92 = arith.constant 4 : i32
    %313 = arith.truncf %312 : vector<8x32xf32> to vector<8x32xbf16>
    %cst_93 = arith.constant dense<0.000000e+00> : vector<8x128xf32>
    %314 = tpu.matmul %313, %228, %cst_93 {dimension_numbers = #tpu.dot_dimension_numbers<[1], [0], [0], [1], [0, 0, 1, 1], [], []>} : vector<8x32xbf16>, vector<32x128xbf16>, vector<8x128xf32> -> vector<8x128xf32>
    %315 = arith.index_cast %c4_i32_92 : i32 to index
    %c0_94 = arith.constant 0 : index
    %c0_95 = arith.constant 0 : index
    %316 = vector.load %arg20[%315, %c0_94, %c0_95] : memref<8x8x128xf32, #tpu.memory_space<vmem>>, vector<1x8x128xf32>
    %317 = vector.shape_cast %316 : vector<1x8x128xf32> to vector<8x128xf32>
    %318 = arith.addf %317, %314 : vector<8x128xf32>
    %319 = arith.negf %318 : vector<8x128xf32>
    %320 = math.exp %319 : vector<8x128xf32>
    %cst_96 = arith.constant 1.000000e+00 : f32
    %321 = vector.broadcast %cst_96 : f32 to vector<8x128xf32>
    %322 = arith.addf %321, %320 : vector<8x128xf32>
    %323 = arith.divf %321, %322 : vector<8x128xf32>
    %324 = math.tanh %318 : vector<8x128xf32>
    %325 = vector.extract_strided_slice %323 {offsets = [0, 0], sizes = [8, 32], strides = [1, 1]} : vector<8x128xf32> to vector<8x32xf32>
    %326 = vector.extract_strided_slice %323 {offsets = [0, 32], sizes = [8, 32], strides = [1, 1]} : vector<8x128xf32> to vector<8x32xf32>
    %327 = vector.extract_strided_slice %324 {offsets = [0, 64], sizes = [8, 32], strides = [1, 1]} : vector<8x128xf32> to vector<8x32xf32>
    %328 = vector.extract_strided_slice %323 {offsets = [0, 96], sizes = [8, 32], strides = [1, 1]} : vector<8x128xf32> to vector<8x32xf32>
    %329 = arith.mulf %326, %310 : vector<8x32xf32>
    %330 = arith.mulf %325, %327 : vector<8x32xf32>
    %331 = arith.addf %329, %330 : vector<8x32xf32>
    %332 = math.tanh %331 : vector<8x32xf32>
    %333 = arith.mulf %328, %332 : vector<8x32xf32>
    %c5_i32_97 = arith.constant 5 : i32
    %334 = arith.truncf %333 : vector<8x32xf32> to vector<8x32xbf16>
    %cst_98 = arith.constant dense<0.000000e+00> : vector<8x128xf32>
    %335 = tpu.matmul %334, %228, %cst_98 {dimension_numbers = #tpu.dot_dimension_numbers<[1], [0], [0], [1], [0, 0, 1, 1], [], []>} : vector<8x32xbf16>, vector<32x128xbf16>, vector<8x128xf32> -> vector<8x128xf32>
    %336 = arith.index_cast %c5_i32_97 : i32 to index
    %c0_99 = arith.constant 0 : index
    %c0_100 = arith.constant 0 : index
    %337 = vector.load %arg20[%336, %c0_99, %c0_100] : memref<8x8x128xf32, #tpu.memory_space<vmem>>, vector<1x8x128xf32>
    %338 = vector.shape_cast %337 : vector<1x8x128xf32> to vector<8x128xf32>
    %339 = arith.addf %338, %335 : vector<8x128xf32>
    %340 = arith.negf %339 : vector<8x128xf32>
    %341 = math.exp %340 : vector<8x128xf32>
    %cst_101 = arith.constant 1.000000e+00 : f32
    %342 = vector.broadcast %cst_101 : f32 to vector<8x128xf32>
    %343 = arith.addf %342, %341 : vector<8x128xf32>
    %344 = arith.divf %342, %343 : vector<8x128xf32>
    %345 = math.tanh %339 : vector<8x128xf32>
    %346 = vector.extract_strided_slice %344 {offsets = [0, 0], sizes = [8, 32], strides = [1, 1]} : vector<8x128xf32> to vector<8x32xf32>
    %347 = vector.extract_strided_slice %344 {offsets = [0, 32], sizes = [8, 32], strides = [1, 1]} : vector<8x128xf32> to vector<8x32xf32>
    %348 = vector.extract_strided_slice %345 {offsets = [0, 64], sizes = [8, 32], strides = [1, 1]} : vector<8x128xf32> to vector<8x32xf32>
    %349 = vector.extract_strided_slice %344 {offsets = [0, 96], sizes = [8, 32], strides = [1, 1]} : vector<8x128xf32> to vector<8x32xf32>
    %350 = arith.mulf %347, %331 : vector<8x32xf32>
    %351 = arith.mulf %346, %348 : vector<8x32xf32>
    %352 = arith.addf %350, %351 : vector<8x32xf32>
    %353 = math.tanh %352 : vector<8x32xf32>
    %354 = arith.mulf %349, %353 : vector<8x32xf32>
    %c6_i32_102 = arith.constant 6 : i32
    %355 = arith.truncf %354 : vector<8x32xf32> to vector<8x32xbf16>
    %cst_103 = arith.constant dense<0.000000e+00> : vector<8x128xf32>
    %356 = tpu.matmul %355, %228, %cst_103 {dimension_numbers = #tpu.dot_dimension_numbers<[1], [0], [0], [1], [0, 0, 1, 1], [], []>} : vector<8x32xbf16>, vector<32x128xbf16>, vector<8x128xf32> -> vector<8x128xf32>
    %357 = arith.index_cast %c6_i32_102 : i32 to index
    %c0_104 = arith.constant 0 : index
    %c0_105 = arith.constant 0 : index
    %358 = vector.load %arg20[%357, %c0_104, %c0_105] : memref<8x8x128xf32, #tpu.memory_space<vmem>>, vector<1x8x128xf32>
    %359 = vector.shape_cast %358 : vector<1x8x128xf32> to vector<8x128xf32>
    %360 = arith.addf %359, %356 : vector<8x128xf32>
    %361 = arith.negf %360 : vector<8x128xf32>
    %362 = math.exp %361 : vector<8x128xf32>
    %cst_106 = arith.constant 1.000000e+00 : f32
    %363 = vector.broadcast %cst_106 : f32 to vector<8x128xf32>
    %364 = arith.addf %363, %362 : vector<8x128xf32>
    %365 = arith.divf %363, %364 : vector<8x128xf32>
    %366 = math.tanh %360 : vector<8x128xf32>
    %367 = vector.extract_strided_slice %365 {offsets = [0, 0], sizes = [8, 32], strides = [1, 1]} : vector<8x128xf32> to vector<8x32xf32>
    %368 = vector.extract_strided_slice %365 {offsets = [0, 32], sizes = [8, 32], strides = [1, 1]} : vector<8x128xf32> to vector<8x32xf32>
    %369 = vector.extract_strided_slice %366 {offsets = [0, 64], sizes = [8, 32], strides = [1, 1]} : vector<8x128xf32> to vector<8x32xf32>
    %370 = vector.extract_strided_slice %365 {offsets = [0, 96], sizes = [8, 32], strides = [1, 1]} : vector<8x128xf32> to vector<8x32xf32>
    %371 = arith.mulf %368, %352 : vector<8x32xf32>
    %372 = arith.mulf %367, %369 : vector<8x32xf32>
    %373 = arith.addf %371, %372 : vector<8x32xf32>
    %374 = math.tanh %373 : vector<8x32xf32>
    %375 = arith.mulf %370, %374 : vector<8x32xf32>
    %c7_i32_107 = arith.constant 7 : i32
    %376 = arith.truncf %375 : vector<8x32xf32> to vector<8x32xbf16>
    %cst_108 = arith.constant dense<0.000000e+00> : vector<8x128xf32>
    %377 = tpu.matmul %376, %228, %cst_108 {dimension_numbers = #tpu.dot_dimension_numbers<[1], [0], [0], [1], [0, 0, 1, 1], [], []>} : vector<8x32xbf16>, vector<32x128xbf16>, vector<8x128xf32> -> vector<8x128xf32>
    %378 = arith.index_cast %c7_i32_107 : i32 to index
    %c0_109 = arith.constant 0 : index
    %c0_110 = arith.constant 0 : index
    %379 = vector.load %arg20[%378, %c0_109, %c0_110] : memref<8x8x128xf32, #tpu.memory_space<vmem>>, vector<1x8x128xf32>
    %380 = vector.shape_cast %379 : vector<1x8x128xf32> to vector<8x128xf32>
    %381 = arith.addf %380, %377 : vector<8x128xf32>
    %382 = arith.negf %381 : vector<8x128xf32>
    %383 = math.exp %382 : vector<8x128xf32>
    %cst_111 = arith.constant 1.000000e+00 : f32
    %384 = vector.broadcast %cst_111 : f32 to vector<8x128xf32>
    %385 = arith.addf %384, %383 : vector<8x128xf32>
    %386 = arith.divf %384, %385 : vector<8x128xf32>
    %387 = math.tanh %381 : vector<8x128xf32>
    %388 = vector.extract_strided_slice %386 {offsets = [0, 0], sizes = [8, 32], strides = [1, 1]} : vector<8x128xf32> to vector<8x32xf32>
    %389 = vector.extract_strided_slice %386 {offsets = [0, 32], sizes = [8, 32], strides = [1, 1]} : vector<8x128xf32> to vector<8x32xf32>
    %390 = vector.extract_strided_slice %387 {offsets = [0, 64], sizes = [8, 32], strides = [1, 1]} : vector<8x128xf32> to vector<8x32xf32>
    %391 = vector.extract_strided_slice %386 {offsets = [0, 96], sizes = [8, 32], strides = [1, 1]} : vector<8x128xf32> to vector<8x32xf32>
    %392 = arith.mulf %389, %373 : vector<8x32xf32>
    %393 = arith.mulf %388, %390 : vector<8x32xf32>
    %394 = arith.addf %392, %393 : vector<8x32xf32>
    %395 = math.tanh %394 : vector<8x32xf32>
    %396 = arith.mulf %391, %395 : vector<8x32xf32>
    %c8_i32_112 = arith.constant 8 : i32
    %397 = arith.truncf %396 : vector<8x32xf32> to vector<8x32xbf16>
    %c0_113 = arith.constant 0 : index
    %c0_114 = arith.constant 0 : index
    %398 = vector.load %arg7[%c0_113, %c0_114] : memref<32x16xbf16, #tpu.memory_space<vmem>>, vector<32x16xbf16>
    %cst_115 = arith.constant dense<0.000000e+00> : vector<8x16xf32>
    %399 = tpu.matmul %397, %398, %cst_115 {dimension_numbers = #tpu.dot_dimension_numbers<[1], [0], [0], [1], [0, 0, 1, 1], [], []>} : vector<8x32xbf16>, vector<32x16xbf16>, vector<8x16xf32> -> vector<8x16xf32>
    %c0_116 = arith.constant 0 : index
    %c0_117 = arith.constant 0 : index
    %400 = vector.load %arg8[%c0_116, %c0_117] : memref<1x16xf32, #tpu.memory_space<vmem>>, vector<1x16xf32>
    %401 = vector.broadcast %400 : vector<1x16xf32> to vector<8x16xf32>
    %402 = arith.addf %399, %401 : vector<8x16xf32>
    %403 = arith.truncf %402 : vector<8x16xf32> to vector<8x16xbf16>
    %c0_118 = arith.constant 0 : index
    %c0_119 = arith.constant 0 : index
    %404 = vector.load %arg9[%c0_118, %c0_119] : memref<16x32xbf16, #tpu.memory_space<vmem>>, vector<16x32xbf16>
    %cst_120 = arith.constant dense<0.000000e+00> : vector<8x32xf32>
    %405 = tpu.matmul %403, %404, %cst_120 {dimension_numbers = #tpu.dot_dimension_numbers<[1], [0], [0], [1], [0, 0, 1, 1], [], []>} : vector<8x16xbf16>, vector<16x32xbf16>, vector<8x32xf32> -> vector<8x32xf32>
    %c0_121 = arith.constant 0 : index
    %c0_122 = arith.constant 0 : index
    %406 = vector.load %arg10[%c0_121, %c0_122] : memref<1x32xf32, #tpu.memory_space<vmem>>, vector<1x32xf32>
    %407 = vector.broadcast %406 : vector<1x32xf32> to vector<8x32xf32>
    %408 = arith.addf %405, %407 : vector<8x32xf32>
    %c0_123 = arith.constant 0 : index
    %c0_124 = arith.constant 0 : index
    %409 = vector.load %arg11[%c0_123, %c0_124] : memref<32x128xbf16, #tpu.memory_space<vmem>>, vector<32x128xbf16>
    %c0_125 = arith.constant 0 : index
    %c0_126 = arith.constant 0 : index
    %410 = vector.load %arg12[%c0_125, %c0_126] : memref<1x128xf32, #tpu.memory_space<vmem>>, vector<1x128xf32>
    %411 = vector.shape_cast %410 : vector<1x128xf32> to vector<1x128xf32>
    %412 = vector.broadcast %411 : vector<1x128xf32> to vector<8x128xf32>
    %c0_i32_127 = arith.constant 0 : i32
    %413 = arith.truncf %408 : vector<8x32xf32> to vector<8x32xbf16>
    %cst_128 = arith.constant dense<0.000000e+00> : vector<8x128xf32>
    %414 = tpu.matmul %413, %409, %cst_128 {dimension_numbers = #tpu.dot_dimension_numbers<[1], [0], [0], [1], [0, 0, 1, 1], [], []>} : vector<8x32xbf16>, vector<32x128xbf16>, vector<8x128xf32> -> vector<8x128xf32>
    %415 = arith.addf %412, %414 : vector<8x128xf32>
    %416 = arith.negf %415 : vector<8x128xf32>
    %417 = math.exp %416 : vector<8x128xf32>
    %cst_129 = arith.constant 1.000000e+00 : f32
    %418 = vector.broadcast %cst_129 : f32 to vector<8x128xf32>
    %419 = arith.addf %418, %417 : vector<8x128xf32>
    %420 = arith.divf %418, %419 : vector<8x128xf32>
    %421 = math.tanh %415 : vector<8x128xf32>
    %422 = vector.extract_strided_slice %420 {offsets = [0, 0], sizes = [8, 32], strides = [1, 1]} : vector<8x128xf32> to vector<8x32xf32>
    %423 = vector.extract_strided_slice %420 {offsets = [0, 32], sizes = [8, 32], strides = [1, 1]} : vector<8x128xf32> to vector<8x32xf32>
    %424 = vector.extract_strided_slice %421 {offsets = [0, 64], sizes = [8, 32], strides = [1, 1]} : vector<8x128xf32> to vector<8x32xf32>
    %425 = vector.extract_strided_slice %420 {offsets = [0, 96], sizes = [8, 32], strides = [1, 1]} : vector<8x128xf32> to vector<8x32xf32>
    %426 = arith.mulf %423, %0 : vector<8x32xf32>
    %427 = arith.mulf %422, %424 : vector<8x32xf32>
    %428 = arith.addf %426, %427 : vector<8x32xf32>
    %429 = math.tanh %428 : vector<8x32xf32>
    %430 = arith.mulf %425, %429 : vector<8x32xf32>
    %431 = arith.truncf %430 : vector<8x32xf32> to vector<8x32xbf16>
    %432 = arith.index_cast %c0_i32_127 : i32 to index
    %c0_130 = arith.constant 0 : index
    %c0_131 = arith.constant 0 : index
    %433 = vector.load %arg19[%432, %c0_130, %c0_131] : memref<8x8x32xbf16, #tpu.memory_space<vmem>>, vector<1x8x32xbf16>
    %434 = vector.shape_cast %433 : vector<1x8x32xbf16> to vector<8x32xbf16>
    %435 = vector.shape_cast %431 : vector<8x32xbf16> to vector<1x8x32xbf16>
    tpu.vector_store %arg19[%432, %c0_130, %c0_131], %435 {strides = array<i32>} : memref<8x8x32xbf16, #tpu.memory_space<vmem>>, vector<1x8x32xbf16>,
    %c1_i32_132 = arith.constant 1 : i32
    %436 = arith.truncf %430 : vector<8x32xf32> to vector<8x32xbf16>
    %cst_133 = arith.constant dense<0.000000e+00> : vector<8x128xf32>
    %437 = tpu.matmul %436, %409, %cst_133 {dimension_numbers = #tpu.dot_dimension_numbers<[1], [0], [0], [1], [0, 0, 1, 1], [], []>} : vector<8x32xbf16>, vector<32x128xbf16>, vector<8x128xf32> -> vector<8x128xf32>
    %438 = arith.addf %412, %437 : vector<8x128xf32>
    %439 = arith.negf %438 : vector<8x128xf32>
    %440 = math.exp %439 : vector<8x128xf32>
    %cst_134 = arith.constant 1.000000e+00 : f32
    %441 = vector.broadcast %cst_134 : f32 to vector<8x128xf32>
    %442 = arith.addf %441, %440 : vector<8x128xf32>
    %443 = arith.divf %441, %442 : vector<8x128xf32>
    %444 = math.tanh %438 : vector<8x128xf32>
    %445 = vector.extract_strided_slice %443 {offsets = [0, 0], sizes = [8, 32], strides = [1, 1]} : vector<8x128xf32> to vector<8x32xf32>
    %446 = vector.extract_strided_slice %443 {offsets = [0, 32], sizes = [8, 32], strides = [1, 1]} : vector<8x128xf32> to vector<8x32xf32>
    %447 = vector.extract_strided_slice %444 {offsets = [0, 64], sizes = [8, 32], strides = [1, 1]} : vector<8x128xf32> to vector<8x32xf32>
    %448 = vector.extract_strided_slice %443 {offsets = [0, 96], sizes = [8, 32], strides = [1, 1]} : vector<8x128xf32> to vector<8x32xf32>
    %449 = arith.mulf %446, %428 : vector<8x32xf32>
    %450 = arith.mulf %445, %447 : vector<8x32xf32>
    %451 = arith.addf %449, %450 : vector<8x32xf32>
    %452 = math.tanh %451 : vector<8x32xf32>
    %453 = arith.mulf %448, %452 : vector<8x32xf32>
    %454 = arith.truncf %453 : vector<8x32xf32> to vector<8x32xbf16>
    %455 = arith.index_cast %c1_i32_132 : i32 to index
    %c0_135 = arith.constant 0 : index
    %c0_136 = arith.constant 0 : index
    %456 = vector.load %arg19[%455, %c0_135, %c0_136] : memref<8x8x32xbf16, #tpu.memory_space<vmem>>, vector<1x8x32xbf16>
    %457 = vector.shape_cast %456 : vector<1x8x32xbf16> to vector<8x32xbf16>
    %458 = vector.shape_cast %454 : vector<8x32xbf16> to vector<1x8x32xbf16>
    tpu.vector_store %arg19[%455, %c0_135, %c0_136], %458 {strides = array<i32>} : memref<8x8x32xbf16, #tpu.memory_space<vmem>>, vector<1x8x32xbf16>,
    %c2_i32_137 = arith.constant 2 : i32
    %459 = arith.truncf %453 : vector<8x32xf32> to vector<8x32xbf16>
    %cst_138 = arith.constant dense<0.000000e+00> : vector<8x128xf32>
    %460 = tpu.matmul %459, %409, %cst_138 {dimension_numbers = #tpu.dot_dimension_numbers<[1], [0], [0], [1], [0, 0, 1, 1], [], []>} : vector<8x32xbf16>, vector<32x128xbf16>, vector<8x128xf32> -> vector<8x128xf32>
    %461 = arith.addf %412, %460 : vector<8x128xf32>
    %462 = arith.negf %461 : vector<8x128xf32>
    %463 = math.exp %462 : vector<8x128xf32>
    %cst_139 = arith.constant 1.000000e+00 : f32
    %464 = vector.broadcast %cst_139 : f32 to vector<8x128xf32>
    %465 = arith.addf %464, %463 : vector<8x128xf32>
    %466 = arith.divf %464, %465 : vector<8x128xf32>
    %467 = math.tanh %461 : vector<8x128xf32>
    %468 = vector.extract_strided_slice %466 {offsets = [0, 0], sizes = [8, 32], strides = [1, 1]} : vector<8x128xf32> to vector<8x32xf32>
    %469 = vector.extract_strided_slice %466 {offsets = [0, 32], sizes = [8, 32], strides = [1, 1]} : vector<8x128xf32> to vector<8x32xf32>
    %470 = vector.extract_strided_slice %467 {offsets = [0, 64], sizes = [8, 32], strides = [1, 1]} : vector<8x128xf32> to vector<8x32xf32>
    %471 = vector.extract_strided_slice %466 {offsets = [0, 96], sizes = [8, 32], strides = [1, 1]} : vector<8x128xf32> to vector<8x32xf32>
    %472 = arith.mulf %469, %451 : vector<8x32xf32>
    %473 = arith.mulf %468, %470 : vector<8x32xf32>
    %474 = arith.addf %472, %473 : vector<8x32xf32>
    %475 = math.tanh %474 : vector<8x32xf32>
    %476 = arith.mulf %471, %475 : vector<8x32xf32>
    %477 = arith.truncf %476 : vector<8x32xf32> to vector<8x32xbf16>
    %478 = arith.index_cast %c2_i32_137 : i32 to index
    %c0_140 = arith.constant 0 : index
    %c0_141 = arith.constant 0 : index
    %479 = vector.load %arg19[%478, %c0_140, %c0_141] : memref<8x8x32xbf16, #tpu.memory_space<vmem>>, vector<1x8x32xbf16>
    %480 = vector.shape_cast %479 : vector<1x8x32xbf16> to vector<8x32xbf16>
    %481 = vector.shape_cast %477 : vector<8x32xbf16> to vector<1x8x32xbf16>
    tpu.vector_store %arg19[%478, %c0_140, %c0_141], %481 {strides = array<i32>} : memref<8x8x32xbf16, #tpu.memory_space<vmem>>, vector<1x8x32xbf16>,
    %c3_i32_142 = arith.constant 3 : i32
    %482 = arith.truncf %476 : vector<8x32xf32> to vector<8x32xbf16>
    %cst_143 = arith.constant dense<0.000000e+00> : vector<8x128xf32>
    %483 = tpu.matmul %482, %409, %cst_143 {dimension_numbers = #tpu.dot_dimension_numbers<[1], [0], [0], [1], [0, 0, 1, 1], [], []>} : vector<8x32xbf16>, vector<32x128xbf16>, vector<8x128xf32> -> vector<8x128xf32>
    %484 = arith.addf %412, %483 : vector<8x128xf32>
    %485 = arith.negf %484 : vector<8x128xf32>
    %486 = math.exp %485 : vector<8x128xf32>
    %cst_144 = arith.constant 1.000000e+00 : f32
    %487 = vector.broadcast %cst_144 : f32 to vector<8x128xf32>
    %488 = arith.addf %487, %486 : vector<8x128xf32>
    %489 = arith.divf %487, %488 : vector<8x128xf32>
    %490 = math.tanh %484 : vector<8x128xf32>
    %491 = vector.extract_strided_slice %489 {offsets = [0, 0], sizes = [8, 32], strides = [1, 1]} : vector<8x128xf32> to vector<8x32xf32>
    %492 = vector.extract_strided_slice %489 {offsets = [0, 32], sizes = [8, 32], strides = [1, 1]} : vector<8x128xf32> to vector<8x32xf32>
    %493 = vector.extract_strided_slice %490 {offsets = [0, 64], sizes = [8, 32], strides = [1, 1]} : vector<8x128xf32> to vector<8x32xf32>
    %494 = vector.extract_strided_slice %489 {offsets = [0, 96], sizes = [8, 32], strides = [1, 1]} : vector<8x128xf32> to vector<8x32xf32>
    %495 = arith.mulf %492, %474 : vector<8x32xf32>
    %496 = arith.mulf %491, %493 : vector<8x32xf32>
    %497 = arith.addf %495, %496 : vector<8x32xf32>
    %498 = math.tanh %497 : vector<8x32xf32>
    %499 = arith.mulf %494, %498 : vector<8x32xf32>
    %500 = arith.truncf %499 : vector<8x32xf32> to vector<8x32xbf16>
    %501 = arith.index_cast %c3_i32_142 : i32 to index
    %c0_145 = arith.constant 0 : index
    %c0_146 = arith.constant 0 : index
    %502 = vector.load %arg19[%501, %c0_145, %c0_146] : memref<8x8x32xbf16, #tpu.memory_space<vmem>>, vector<1x8x32xbf16>
    %503 = vector.shape_cast %502 : vector<1x8x32xbf16> to vector<8x32xbf16>
    %504 = vector.shape_cast %500 : vector<8x32xbf16> to vector<1x8x32xbf16>
    tpu.vector_store %arg19[%501, %c0_145, %c0_146], %504 {strides = array<i32>} : memref<8x8x32xbf16, #tpu.memory_space<vmem>>, vector<1x8x32xbf16>,
    %c4_i32_147 = arith.constant 4 : i32
    %505 = arith.truncf %499 : vector<8x32xf32> to vector<8x32xbf16>
    %cst_148 = arith.constant dense<0.000000e+00> : vector<8x128xf32>
    %506 = tpu.matmul %505, %409, %cst_148 {dimension_numbers = #tpu.dot_dimension_numbers<[1], [0], [0], [1], [0, 0, 1, 1], [], []>} : vector<8x32xbf16>, vector<32x128xbf16>, vector<8x128xf32> -> vector<8x128xf32>
    %507 = arith.addf %412, %506 : vector<8x128xf32>
    %508 = arith.negf %507 : vector<8x128xf32>
    %509 = math.exp %508 : vector<8x128xf32>
    %cst_149 = arith.constant 1.000000e+00 : f32
    %510 = vector.broadcast %cst_149 : f32 to vector<8x128xf32>
    %511 = arith.addf %510, %509 : vector<8x128xf32>
    %512 = arith.divf %510, %511 : vector<8x128xf32>
    %513 = math.tanh %507 : vector<8x128xf32>
    %514 = vector.extract_strided_slice %512 {offsets = [0, 0], sizes = [8, 32], strides = [1, 1]} : vector<8x128xf32> to vector<8x32xf32>
    %515 = vector.extract_strided_slice %512 {offsets = [0, 32], sizes = [8, 32], strides = [1, 1]} : vector<8x128xf32> to vector<8x32xf32>
    %516 = vector.extract_strided_slice %513 {offsets = [0, 64], sizes = [8, 32], strides = [1, 1]} : vector<8x128xf32> to vector<8x32xf32>
    %517 = vector.extract_strided_slice %512 {offsets = [0, 96], sizes = [8, 32], strides = [1, 1]} : vector<8x128xf32> to vector<8x32xf32>
    %518 = arith.mulf %515, %497 : vector<8x32xf32>
    %519 = arith.mulf %514, %516 : vector<8x32xf32>
    %520 = arith.addf %518, %519 : vector<8x32xf32>
    %521 = math.tanh %520 : vector<8x32xf32>
    %522 = arith.mulf %517, %521 : vector<8x32xf32>
    %523 = arith.truncf %522 : vector<8x32xf32> to vector<8x32xbf16>
    %524 = arith.index_cast %c4_i32_147 : i32 to index
    %c0_150 = arith.constant 0 : index
    %c0_151 = arith.constant 0 : index
    %525 = vector.load %arg19[%524, %c0_150, %c0_151] : memref<8x8x32xbf16, #tpu.memory_space<vmem>>, vector<1x8x32xbf16>
    %526 = vector.shape_cast %525 : vector<1x8x32xbf16> to vector<8x32xbf16>
    %527 = vector.shape_cast %523 : vector<8x32xbf16> to vector<1x8x32xbf16>
    tpu.vector_store %arg19[%524, %c0_150, %c0_151], %527 {strides = array<i32>} : memref<8x8x32xbf16, #tpu.memory_space<vmem>>, vector<1x8x32xbf16>,
    %c5_i32_152 = arith.constant 5 : i32
    %528 = arith.truncf %522 : vector<8x32xf32> to vector<8x32xbf16>
    %cst_153 = arith.constant dense<0.000000e+00> : vector<8x128xf32>
    %529 = tpu.matmul %528, %409, %cst_153 {dimension_numbers = #tpu.dot_dimension_numbers<[1], [0], [0], [1], [0, 0, 1, 1], [], []>} : vector<8x32xbf16>, vector<32x128xbf16>, vector<8x128xf32> -> vector<8x128xf32>
    %530 = arith.addf %412, %529 : vector<8x128xf32>
    %531 = arith.negf %530 : vector<8x128xf32>
    %532 = math.exp %531 : vector<8x128xf32>
    %cst_154 = arith.constant 1.000000e+00 : f32
    %533 = vector.broadcast %cst_154 : f32 to vector<8x128xf32>
    %534 = arith.addf %533, %532 : vector<8x128xf32>
    %535 = arith.divf %533, %534 : vector<8x128xf32>
    %536 = math.tanh %530 : vector<8x128xf32>
    %537 = vector.extract_strided_slice %535 {offsets = [0, 0], sizes = [8, 32], strides = [1, 1]} : vector<8x128xf32> to vector<8x32xf32>
    %538 = vector.extract_strided_slice %535 {offsets = [0, 32], sizes = [8, 32], strides = [1, 1]} : vector<8x128xf32> to vector<8x32xf32>
    %539 = vector.extract_strided_slice %536 {offsets = [0, 64], sizes = [8, 32], strides = [1, 1]} : vector<8x128xf32> to vector<8x32xf32>
    %540 = vector.extract_strided_slice %535 {offsets = [0, 96], sizes = [8, 32], strides = [1, 1]} : vector<8x128xf32> to vector<8x32xf32>
    %541 = arith.mulf %538, %520 : vector<8x32xf32>
    %542 = arith.mulf %537, %539 : vector<8x32xf32>
    %543 = arith.addf %541, %542 : vector<8x32xf32>
    %544 = math.tanh %543 : vector<8x32xf32>
    %545 = arith.mulf %540, %544 : vector<8x32xf32>
    %546 = arith.truncf %545 : vector<8x32xf32> to vector<8x32xbf16>
    %547 = arith.index_cast %c5_i32_152 : i32 to index
    %c0_155 = arith.constant 0 : index
    %c0_156 = arith.constant 0 : index
    %548 = vector.load %arg19[%547, %c0_155, %c0_156] : memref<8x8x32xbf16, #tpu.memory_space<vmem>>, vector<1x8x32xbf16>
    %549 = vector.shape_cast %548 : vector<1x8x32xbf16> to vector<8x32xbf16>
    %550 = vector.shape_cast %546 : vector<8x32xbf16> to vector<1x8x32xbf16>
    tpu.vector_store %arg19[%547, %c0_155, %c0_156], %550 {strides = array<i32>} : memref<8x8x32xbf16, #tpu.memory_space<vmem>>, vector<1x8x32xbf16>,
    %c6_i32_157 = arith.constant 6 : i32
    %551 = arith.truncf %545 : vector<8x32xf32> to vector<8x32xbf16>
    %cst_158 = arith.constant dense<0.000000e+00> : vector<8x128xf32>
    %552 = tpu.matmul %551, %409, %cst_158 {dimension_numbers = #tpu.dot_dimension_numbers<[1], [0], [0], [1], [0, 0, 1, 1], [], []>} : vector<8x32xbf16>, vector<32x128xbf16>, vector<8x128xf32> -> vector<8x128xf32>
    %553 = arith.addf %412, %552 : vector<8x128xf32>
    %554 = arith.negf %553 : vector<8x128xf32>
    %555 = math.exp %554 : vector<8x128xf32>
    %cst_159 = arith.constant 1.000000e+00 : f32
    %556 = vector.broadcast %cst_159 : f32 to vector<8x128xf32>
    %557 = arith.addf %556, %555 : vector<8x128xf32>
    %558 = arith.divf %556, %557 : vector<8x128xf32>
    %559 = math.tanh %553 : vector<8x128xf32>
    %560 = vector.extract_strided_slice %558 {offsets = [0, 0], sizes = [8, 32], strides = [1, 1]} : vector<8x128xf32> to vector<8x32xf32>
    %561 = vector.extract_strided_slice %558 {offsets = [0, 32], sizes = [8, 32], strides = [1, 1]} : vector<8x128xf32> to vector<8x32xf32>
    %562 = vector.extract_strided_slice %559 {offsets = [0, 64], sizes = [8, 32], strides = [1, 1]} : vector<8x128xf32> to vector<8x32xf32>
    %563 = vector.extract_strided_slice %558 {offsets = [0, 96], sizes = [8, 32], strides = [1, 1]} : vector<8x128xf32> to vector<8x32xf32>
    %564 = arith.mulf %561, %543 : vector<8x32xf32>
    %565 = arith.mulf %560, %562 : vector<8x32xf32>
    %566 = arith.addf %564, %565 : vector<8x32xf32>
    %567 = math.tanh %566 : vector<8x32xf32>
    %568 = arith.mulf %563, %567 : vector<8x32xf32>
    %569 = arith.truncf %568 : vector<8x32xf32> to vector<8x32xbf16>
    %570 = arith.index_cast %c6_i32_157 : i32 to index
    %c0_160 = arith.constant 0 : index
    %c0_161 = arith.constant 0 : index
    %571 = vector.load %arg19[%570, %c0_160, %c0_161] : memref<8x8x32xbf16, #tpu.memory_space<vmem>>, vector<1x8x32xbf16>
    %572 = vector.shape_cast %571 : vector<1x8x32xbf16> to vector<8x32xbf16>
    %573 = vector.shape_cast %569 : vector<8x32xbf16> to vector<1x8x32xbf16>
    tpu.vector_store %arg19[%570, %c0_160, %c0_161], %573 {strides = array<i32>} : memref<8x8x32xbf16, #tpu.memory_space<vmem>>, vector<1x8x32xbf16>,
    %c7_i32_162 = arith.constant 7 : i32
    %574 = arith.truncf %568 : vector<8x32xf32> to vector<8x32xbf16>
    %cst_163 = arith.constant dense<0.000000e+00> : vector<8x128xf32>
    %575 = tpu.matmul %574, %409, %cst_163 {dimension_numbers = #tpu.dot_dimension_numbers<[1], [0], [0], [1], [0, 0, 1, 1], [], []>} : vector<8x32xbf16>, vector<32x128xbf16>, vector<8x128xf32> -> vector<8x128xf32>
    %576 = arith.addf %412, %575 : vector<8x128xf32>
    %577 = arith.negf %576 : vector<8x128xf32>
    %578 = math.exp %577 : vector<8x128xf32>
    %cst_164 = arith.constant 1.000000e+00 : f32
    %579 = vector.broadcast %cst_164 : f32 to vector<8x128xf32>
    %580 = arith.addf %579, %578 : vector<8x128xf32>
    %581 = arith.divf %579, %580 : vector<8x128xf32>
    %582 = math.tanh %576 : vector<8x128xf32>
    %583 = vector.extract_strided_slice %581 {offsets = [0, 0], sizes = [8, 32], strides = [1, 1]} : vector<8x128xf32> to vector<8x32xf32>
    %584 = vector.extract_strided_slice %581 {offsets = [0, 32], sizes = [8, 32], strides = [1, 1]} : vector<8x128xf32> to vector<8x32xf32>
    %585 = vector.extract_strided_slice %582 {offsets = [0, 64], sizes = [8, 32], strides = [1, 1]} : vector<8x128xf32> to vector<8x32xf32>
    %586 = vector.extract_strided_slice %581 {offsets = [0, 96], sizes = [8, 32], strides = [1, 1]} : vector<8x128xf32> to vector<8x32xf32>
    %587 = arith.mulf %584, %566 : vector<8x32xf32>
    %588 = arith.mulf %583, %585 : vector<8x32xf32>
    %589 = arith.addf %587, %588 : vector<8x32xf32>
    %590 = math.tanh %589 : vector<8x32xf32>
    %591 = arith.mulf %586, %590 : vector<8x32xf32>
    %592 = arith.truncf %591 : vector<8x32xf32> to vector<8x32xbf16>
    %593 = arith.index_cast %c7_i32_162 : i32 to index
    %c0_165 = arith.constant 0 : index
    %c0_166 = arith.constant 0 : index
    %594 = vector.load %arg19[%593, %c0_165, %c0_166] : memref<8x8x32xbf16, #tpu.memory_space<vmem>>, vector<1x8x32xbf16>
    %595 = vector.shape_cast %594 : vector<1x8x32xbf16> to vector<8x32xbf16>
    %596 = vector.shape_cast %592 : vector<8x32xbf16> to vector<1x8x32xbf16>
    tpu.vector_store %arg19[%593, %c0_165, %c0_166], %596 {strides = array<i32>} : memref<8x8x32xbf16, #tpu.memory_space<vmem>>, vector<1x8x32xbf16>,
    %c8_i32_167 = arith.constant 8 : i32
    %c0_168 = arith.constant 0 : index
    %c0_169 = arith.constant 0 : index
    %c0_170 = arith.constant 0 : index
    %597 = vector.load %arg19[%c0_168, %c0_169, %c0_170] : memref<8x8x32xbf16, #tpu.memory_space<vmem>>, vector<8x8x32xbf16>
    %598 = vector.shape_cast %597 : vector<8x8x32xbf16> to vector<64x32xbf16>
    %c0_171 = arith.constant 0 : index
    %c0_172 = arith.constant 0 : index
    %599 = vector.load %arg13[%c0_171, %c0_172] : memref<32x128xbf16, #tpu.memory_space<vmem>>, vector<32x128xbf16>
    %cst_173 = arith.constant dense<0.000000e+00> : vector<64x128xf32>
    %600 = tpu.matmul %598, %599, %cst_173 {dimension_numbers = #tpu.dot_dimension_numbers<[1], [0], [0], [1], [0, 0, 1, 1], [], []>} : vector<64x32xbf16>, vector<32x128xbf16>, vector<64x128xf32> -> vector<64x128xf32>
    %c0_174 = arith.constant 0 : index
    %c0_175 = arith.constant 0 : index
    %601 = vector.load %arg15[%c0_174, %c0_175] : memref<1x128xf32, #tpu.memory_space<vmem>>, vector<1x128xf32>
    %602 = vector.broadcast %601 : vector<1x128xf32> to vector<64x128xf32>
    %603 = arith.addf %600, %602 : vector<64x128xf32>
    %604 = vector.shape_cast %603 : vector<64x128xf32> to vector<8x8x128xf32>
    %c0_176 = arith.constant 0 : index
    %c0_177 = arith.constant 0 : index
    %c0_178 = arith.constant 0 : index
    %605 = vector.load %arg20[%c0_176, %c0_177, %c0_178] : memref<8x8x128xf32, #tpu.memory_space<vmem>>, vector<8x8x128xf32>
    tpu.vector_store %arg20[%c0_176, %c0_177, %c0_178], %604 {strides = array<i32>} : memref<8x8x128xf32, #tpu.memory_space<vmem>>, vector<8x8x128xf32>,
    %c0_179 = arith.constant 0 : index
    %c0_180 = arith.constant 0 : index
    %606 = vector.load %arg14[%c0_179, %c0_180] : memref<32x128xbf16, #tpu.memory_space<vmem>>, vector<32x128xbf16>
    %c0_i32_181 = arith.constant 0 : i32
    %607 = arith.truncf %408 : vector<8x32xf32> to vector<8x32xbf16>
    %cst_182 = arith.constant dense<0.000000e+00> : vector<8x128xf32>
    %608 = tpu.matmul %607, %606, %cst_182 {dimension_numbers = #tpu.dot_dimension_numbers<[1], [0], [0], [1], [0, 0, 1, 1], [], []>} : vector<8x32xbf16>, vector<32x128xbf16>, vector<8x128xf32> -> vector<8x128xf32>
    %609 = arith.index_cast %c0_i32_181 : i32 to index
    %c0_183 = arith.constant 0 : index
    %c0_184 = arith.constant 0 : index
    %610 = vector.load %arg20[%609, %c0_183, %c0_184] : memref<8x8x128xf32, #tpu.memory_space<vmem>>, vector<1x8x128xf32>
    %611 = vector.shape_cast %610 : vector<1x8x128xf32> to vector<8x128xf32>
    %612 = arith.addf %611, %608 : vector<8x128xf32>
    %613 = arith.negf %612 : vector<8x128xf32>
    %614 = math.exp %613 : vector<8x128xf32>
    %cst_185 = arith.constant 1.000000e+00 : f32
    %615 = vector.broadcast %cst_185 : f32 to vector<8x128xf32>
    %616 = arith.addf %615, %614 : vector<8x128xf32>
    %617 = arith.divf %615, %616 : vector<8x128xf32>
    %618 = math.tanh %612 : vector<8x128xf32>
    %619 = vector.extract_strided_slice %617 {offsets = [0, 0], sizes = [8, 32], strides = [1, 1]} : vector<8x128xf32> to vector<8x32xf32>
    %620 = vector.extract_strided_slice %617 {offsets = [0, 32], sizes = [8, 32], strides = [1, 1]} : vector<8x128xf32> to vector<8x32xf32>
    %621 = vector.extract_strided_slice %618 {offsets = [0, 64], sizes = [8, 32], strides = [1, 1]} : vector<8x128xf32> to vector<8x32xf32>
    %622 = vector.extract_strided_slice %617 {offsets = [0, 96], sizes = [8, 32], strides = [1, 1]} : vector<8x128xf32> to vector<8x32xf32>
    %623 = arith.mulf %620, %0 : vector<8x32xf32>
    %624 = arith.mulf %619, %621 : vector<8x32xf32>
    %625 = arith.addf %623, %624 : vector<8x32xf32>
    %626 = math.tanh %625 : vector<8x32xf32>
    %627 = arith.mulf %622, %626 : vector<8x32xf32>
    %628 = arith.truncf %627 : vector<8x32xf32> to vector<8x32xbf16>
    %629 = arith.index_cast %c0_i32_181 : i32 to index
    %c0_186 = arith.constant 0 : index
    %c0_187 = arith.constant 0 : index
    %630 = vector.load %arg19[%629, %c0_186, %c0_187] : memref<8x8x32xbf16, #tpu.memory_space<vmem>>, vector<1x8x32xbf16>
    %631 = vector.shape_cast %630 : vector<1x8x32xbf16> to vector<8x32xbf16>
    %632 = vector.shape_cast %628 : vector<8x32xbf16> to vector<1x8x32xbf16>
    tpu.vector_store %arg19[%629, %c0_186, %c0_187], %632 {strides = array<i32>} : memref<8x8x32xbf16, #tpu.memory_space<vmem>>, vector<1x8x32xbf16>,
    %c1_i32_188 = arith.constant 1 : i32
    %633 = arith.truncf %627 : vector<8x32xf32> to vector<8x32xbf16>
    %cst_189 = arith.constant dense<0.000000e+00> : vector<8x128xf32>
    %634 = tpu.matmul %633, %606, %cst_189 {dimension_numbers = #tpu.dot_dimension_numbers<[1], [0], [0], [1], [0, 0, 1, 1], [], []>} : vector<8x32xbf16>, vector<32x128xbf16>, vector<8x128xf32> -> vector<8x128xf32>
    %635 = arith.index_cast %c1_i32_188 : i32 to index
    %c0_190 = arith.constant 0 : index
    %c0_191 = arith.constant 0 : index
    %636 = vector.load %arg20[%635, %c0_190, %c0_191] : memref<8x8x128xf32, #tpu.memory_space<vmem>>, vector<1x8x128xf32>
    %637 = vector.shape_cast %636 : vector<1x8x128xf32> to vector<8x128xf32>
    %638 = arith.addf %637, %634 : vector<8x128xf32>
    %639 = arith.negf %638 : vector<8x128xf32>
    %640 = math.exp %639 : vector<8x128xf32>
    %cst_192 = arith.constant 1.000000e+00 : f32
    %641 = vector.broadcast %cst_192 : f32 to vector<8x128xf32>
    %642 = arith.addf %641, %640 : vector<8x128xf32>
    %643 = arith.divf %641, %642 : vector<8x128xf32>
    %644 = math.tanh %638 : vector<8x128xf32>
    %645 = vector.extract_strided_slice %643 {offsets = [0, 0], sizes = [8, 32], strides = [1, 1]} : vector<8x128xf32> to vector<8x32xf32>
    %646 = vector.extract_strided_slice %643 {offsets = [0, 32], sizes = [8, 32], strides = [1, 1]} : vector<8x128xf32> to vector<8x32xf32>
    %647 = vector.extract_strided_slice %644 {offsets = [0, 64], sizes = [8, 32], strides = [1, 1]} : vector<8x128xf32> to vector<8x32xf32>
    %648 = vector.extract_strided_slice %643 {offsets = [0, 96], sizes = [8, 32], strides = [1, 1]} : vector<8x128xf32> to vector<8x32xf32>
    %649 = arith.mulf %646, %625 : vector<8x32xf32>
    %650 = arith.mulf %645, %647 : vector<8x32xf32>
    %651 = arith.addf %649, %650 : vector<8x32xf32>
    %652 = math.tanh %651 : vector<8x32xf32>
    %653 = arith.mulf %648, %652 : vector<8x32xf32>
    %654 = arith.truncf %653 : vector<8x32xf32> to vector<8x32xbf16>
    %655 = arith.index_cast %c1_i32_188 : i32 to index
    %c0_193 = arith.constant 0 : index
    %c0_194 = arith.constant 0 : index
    %656 = vector.load %arg19[%655, %c0_193, %c0_194] : memref<8x8x32xbf16, #tpu.memory_space<vmem>>, vector<1x8x32xbf16>
    %657 = vector.shape_cast %656 : vector<1x8x32xbf16> to vector<8x32xbf16>
    %658 = vector.shape_cast %654 : vector<8x32xbf16> to vector<1x8x32xbf16>
    tpu.vector_store %arg19[%655, %c0_193, %c0_194], %658 {strides = array<i32>} : memref<8x8x32xbf16, #tpu.memory_space<vmem>>, vector<1x8x32xbf16>,
    %c2_i32_195 = arith.constant 2 : i32
    %659 = arith.truncf %653 : vector<8x32xf32> to vector<8x32xbf16>
    %cst_196 = arith.constant dense<0.000000e+00> : vector<8x128xf32>
    %660 = tpu.matmul %659, %606, %cst_196 {dimension_numbers = #tpu.dot_dimension_numbers<[1], [0], [0], [1], [0, 0, 1, 1], [], []>} : vector<8x32xbf16>, vector<32x128xbf16>, vector<8x128xf32> -> vector<8x128xf32>
    %661 = arith.index_cast %c2_i32_195 : i32 to index
    %c0_197 = arith.constant 0 : index
    %c0_198 = arith.constant 0 : index
    %662 = vector.load %arg20[%661, %c0_197, %c0_198] : memref<8x8x128xf32, #tpu.memory_space<vmem>>, vector<1x8x128xf32>
    %663 = vector.shape_cast %662 : vector<1x8x128xf32> to vector<8x128xf32>
    %664 = arith.addf %663, %660 : vector<8x128xf32>
    %665 = arith.negf %664 : vector<8x128xf32>
    %666 = math.exp %665 : vector<8x128xf32>
    %cst_199 = arith.constant 1.000000e+00 : f32
    %667 = vector.broadcast %cst_199 : f32 to vector<8x128xf32>
    %668 = arith.addf %667, %666 : vector<8x128xf32>
    %669 = arith.divf %667, %668 : vector<8x128xf32>
    %670 = math.tanh %664 : vector<8x128xf32>
    %671 = vector.extract_strided_slice %669 {offsets = [0, 0], sizes = [8, 32], strides = [1, 1]} : vector<8x128xf32> to vector<8x32xf32>
    %672 = vector.extract_strided_slice %669 {offsets = [0, 32], sizes = [8, 32], strides = [1, 1]} : vector<8x128xf32> to vector<8x32xf32>
    %673 = vector.extract_strided_slice %670 {offsets = [0, 64], sizes = [8, 32], strides = [1, 1]} : vector<8x128xf32> to vector<8x32xf32>
    %674 = vector.extract_strided_slice %669 {offsets = [0, 96], sizes = [8, 32], strides = [1, 1]} : vector<8x128xf32> to vector<8x32xf32>
    %675 = arith.mulf %672, %651 : vector<8x32xf32>
    %676 = arith.mulf %671, %673 : vector<8x32xf32>
    %677 = arith.addf %675, %676 : vector<8x32xf32>
    %678 = math.tanh %677 : vector<8x32xf32>
    %679 = arith.mulf %674, %678 : vector<8x32xf32>
    %680 = arith.truncf %679 : vector<8x32xf32> to vector<8x32xbf16>
    %681 = arith.index_cast %c2_i32_195 : i32 to index
    %c0_200 = arith.constant 0 : index
    %c0_201 = arith.constant 0 : index
    %682 = vector.load %arg19[%681, %c0_200, %c0_201] : memref<8x8x32xbf16, #tpu.memory_space<vmem>>, vector<1x8x32xbf16>
    %683 = vector.shape_cast %682 : vector<1x8x32xbf16> to vector<8x32xbf16>
    %684 = vector.shape_cast %680 : vector<8x32xbf16> to vector<1x8x32xbf16>
    tpu.vector_store %arg19[%681, %c0_200, %c0_201], %684 {strides = array<i32>} : memref<8x8x32xbf16, #tpu.memory_space<vmem>>, vector<1x8x32xbf16>,
    %c3_i32_202 = arith.constant 3 : i32
    %685 = arith.truncf %679 : vector<8x32xf32> to vector<8x32xbf16>
    %cst_203 = arith.constant dense<0.000000e+00> : vector<8x128xf32>
    %686 = tpu.matmul %685, %606, %cst_203 {dimension_numbers = #tpu.dot_dimension_numbers<[1], [0], [0], [1], [0, 0, 1, 1], [], []>} : vector<8x32xbf16>, vector<32x128xbf16>, vector<8x128xf32> -> vector<8x128xf32>
    %687 = arith.index_cast %c3_i32_202 : i32 to index
    %c0_204 = arith.constant 0 : index
    %c0_205 = arith.constant 0 : index
    %688 = vector.load %arg20[%687, %c0_204, %c0_205] : memref<8x8x128xf32, #tpu.memory_space<vmem>>, vector<1x8x128xf32>
    %689 = vector.shape_cast %688 : vector<1x8x128xf32> to vector<8x128xf32>
    %690 = arith.addf %689, %686 : vector<8x128xf32>
    %691 = arith.negf %690 : vector<8x128xf32>
    %692 = math.exp %691 : vector<8x128xf32>
    %cst_206 = arith.constant 1.000000e+00 : f32
    %693 = vector.broadcast %cst_206 : f32 to vector<8x128xf32>
    %694 = arith.addf %693, %692 : vector<8x128xf32>
    %695 = arith.divf %693, %694 : vector<8x128xf32>
    %696 = math.tanh %690 : vector<8x128xf32>
    %697 = vector.extract_strided_slice %695 {offsets = [0, 0], sizes = [8, 32], strides = [1, 1]} : vector<8x128xf32> to vector<8x32xf32>
    %698 = vector.extract_strided_slice %695 {offsets = [0, 32], sizes = [8, 32], strides = [1, 1]} : vector<8x128xf32> to vector<8x32xf32>
    %699 = vector.extract_strided_slice %696 {offsets = [0, 64], sizes = [8, 32], strides = [1, 1]} : vector<8x128xf32> to vector<8x32xf32>
    %700 = vector.extract_strided_slice %695 {offsets = [0, 96], sizes = [8, 32], strides = [1, 1]} : vector<8x128xf32> to vector<8x32xf32>
    %701 = arith.mulf %698, %677 : vector<8x32xf32>
    %702 = arith.mulf %697, %699 : vector<8x32xf32>
    %703 = arith.addf %701, %702 : vector<8x32xf32>
    %704 = math.tanh %703 : vector<8x32xf32>
    %705 = arith.mulf %700, %704 : vector<8x32xf32>
    %706 = arith.truncf %705 : vector<8x32xf32> to vector<8x32xbf16>
    %707 = arith.index_cast %c3_i32_202 : i32 to index
    %c0_207 = arith.constant 0 : index
    %c0_208 = arith.constant 0 : index
    %708 = vector.load %arg19[%707, %c0_207, %c0_208] : memref<8x8x32xbf16, #tpu.memory_space<vmem>>, vector<1x8x32xbf16>
    %709 = vector.shape_cast %708 : vector<1x8x32xbf16> to vector<8x32xbf16>
    %710 = vector.shape_cast %706 : vector<8x32xbf16> to vector<1x8x32xbf16>
    tpu.vector_store %arg19[%707, %c0_207, %c0_208], %710 {strides = array<i32>} : memref<8x8x32xbf16, #tpu.memory_space<vmem>>, vector<1x8x32xbf16>,
    %c4_i32_209 = arith.constant 4 : i32
    %711 = arith.truncf %705 : vector<8x32xf32> to vector<8x32xbf16>
    %cst_210 = arith.constant dense<0.000000e+00> : vector<8x128xf32>
    %712 = tpu.matmul %711, %606, %cst_210 {dimension_numbers = #tpu.dot_dimension_numbers<[1], [0], [0], [1], [0, 0, 1, 1], [], []>} : vector<8x32xbf16>, vector<32x128xbf16>, vector<8x128xf32> -> vector<8x128xf32>
    %713 = arith.index_cast %c4_i32_209 : i32 to index
    %c0_211 = arith.constant 0 : index
    %c0_212 = arith.constant 0 : index
    %714 = vector.load %arg20[%713, %c0_211, %c0_212] : memref<8x8x128xf32, #tpu.memory_space<vmem>>, vector<1x8x128xf32>
    %715 = vector.shape_cast %714 : vector<1x8x128xf32> to vector<8x128xf32>
    %716 = arith.addf %715, %712 : vector<8x128xf32>
    %717 = arith.negf %716 : vector<8x128xf32>
    %718 = math.exp %717 : vector<8x128xf32>
    %cst_213 = arith.constant 1.000000e+00 : f32
    %719 = vector.broadcast %cst_213 : f32 to vector<8x128xf32>
    %720 = arith.addf %719, %718 : vector<8x128xf32>
    %721 = arith.divf %719, %720 : vector<8x128xf32>
    %722 = math.tanh %716 : vector<8x128xf32>
    %723 = vector.extract_strided_slice %721 {offsets = [0, 0], sizes = [8, 32], strides = [1, 1]} : vector<8x128xf32> to vector<8x32xf32>
    %724 = vector.extract_strided_slice %721 {offsets = [0, 32], sizes = [8, 32], strides = [1, 1]} : vector<8x128xf32> to vector<8x32xf32>
    %725 = vector.extract_strided_slice %722 {offsets = [0, 64], sizes = [8, 32], strides = [1, 1]} : vector<8x128xf32> to vector<8x32xf32>
    %726 = vector.extract_strided_slice %721 {offsets = [0, 96], sizes = [8, 32], strides = [1, 1]} : vector<8x128xf32> to vector<8x32xf32>
    %727 = arith.mulf %724, %703 : vector<8x32xf32>
    %728 = arith.mulf %723, %725 : vector<8x32xf32>
    %729 = arith.addf %727, %728 : vector<8x32xf32>
    %730 = math.tanh %729 : vector<8x32xf32>
    %731 = arith.mulf %726, %730 : vector<8x32xf32>
    %732 = arith.truncf %731 : vector<8x32xf32> to vector<8x32xbf16>
    %733 = arith.index_cast %c4_i32_209 : i32 to index
    %c0_214 = arith.constant 0 : index
    %c0_215 = arith.constant 0 : index
    %734 = vector.load %arg19[%733, %c0_214, %c0_215] : memref<8x8x32xbf16, #tpu.memory_space<vmem>>, vector<1x8x32xbf16>
    %735 = vector.shape_cast %734 : vector<1x8x32xbf16> to vector<8x32xbf16>
    %736 = vector.shape_cast %732 : vector<8x32xbf16> to vector<1x8x32xbf16>
    tpu.vector_store %arg19[%733, %c0_214, %c0_215], %736 {strides = array<i32>} : memref<8x8x32xbf16, #tpu.memory_space<vmem>>, vector<1x8x32xbf16>,
    %c5_i32_216 = arith.constant 5 : i32
    %737 = arith.truncf %731 : vector<8x32xf32> to vector<8x32xbf16>
    %cst_217 = arith.constant dense<0.000000e+00> : vector<8x128xf32>
    %738 = tpu.matmul %737, %606, %cst_217 {dimension_numbers = #tpu.dot_dimension_numbers<[1], [0], [0], [1], [0, 0, 1, 1], [], []>} : vector<8x32xbf16>, vector<32x128xbf16>, vector<8x128xf32> -> vector<8x128xf32>
    %739 = arith.index_cast %c5_i32_216 : i32 to index
    %c0_218 = arith.constant 0 : index
    %c0_219 = arith.constant 0 : index
    %740 = vector.load %arg20[%739, %c0_218, %c0_219] : memref<8x8x128xf32, #tpu.memory_space<vmem>>, vector<1x8x128xf32>
    %741 = vector.shape_cast %740 : vector<1x8x128xf32> to vector<8x128xf32>
    %742 = arith.addf %741, %738 : vector<8x128xf32>
    %743 = arith.negf %742 : vector<8x128xf32>
    %744 = math.exp %743 : vector<8x128xf32>
    %cst_220 = arith.constant 1.000000e+00 : f32
    %745 = vector.broadcast %cst_220 : f32 to vector<8x128xf32>
    %746 = arith.addf %745, %744 : vector<8x128xf32>
    %747 = arith.divf %745, %746 : vector<8x128xf32>
    %748 = math.tanh %742 : vector<8x128xf32>
    %749 = vector.extract_strided_slice %747 {offsets = [0, 0], sizes = [8, 32], strides = [1, 1]} : vector<8x128xf32> to vector<8x32xf32>
    %750 = vector.extract_strided_slice %747 {offsets = [0, 32], sizes = [8, 32], strides = [1, 1]} : vector<8x128xf32> to vector<8x32xf32>
    %751 = vector.extract_strided_slice %748 {offsets = [0, 64], sizes = [8, 32], strides = [1, 1]} : vector<8x128xf32> to vector<8x32xf32>
    %752 = vector.extract_strided_slice %747 {offsets = [0, 96], sizes = [8, 32], strides = [1, 1]} : vector<8x128xf32> to vector<8x32xf32>
    %753 = arith.mulf %750, %729 : vector<8x32xf32>
    %754 = arith.mulf %749, %751 : vector<8x32xf32>
    %755 = arith.addf %753, %754 : vector<8x32xf32>
    %756 = math.tanh %755 : vector<8x32xf32>
    %757 = arith.mulf %752, %756 : vector<8x32xf32>
    %758 = arith.truncf %757 : vector<8x32xf32> to vector<8x32xbf16>
    %759 = arith.index_cast %c5_i32_216 : i32 to index
    %c0_221 = arith.constant 0 : index
    %c0_222 = arith.constant 0 : index
    %760 = vector.load %arg19[%759, %c0_221, %c0_222] : memref<8x8x32xbf16, #tpu.memory_space<vmem>>, vector<1x8x32xbf16>
    %761 = vector.shape_cast %760 : vector<1x8x32xbf16> to vector<8x32xbf16>
    %762 = vector.shape_cast %758 : vector<8x32xbf16> to vector<1x8x32xbf16>
    tpu.vector_store %arg19[%759, %c0_221, %c0_222], %762 {strides = array<i32>} : memref<8x8x32xbf16, #tpu.memory_space<vmem>>, vector<1x8x32xbf16>,
    %c6_i32_223 = arith.constant 6 : i32
    %763 = arith.truncf %757 : vector<8x32xf32> to vector<8x32xbf16>
    %cst_224 = arith.constant dense<0.000000e+00> : vector<8x128xf32>
    %764 = tpu.matmul %763, %606, %cst_224 {dimension_numbers = #tpu.dot_dimension_numbers<[1], [0], [0], [1], [0, 0, 1, 1], [], []>} : vector<8x32xbf16>, vector<32x128xbf16>, vector<8x128xf32> -> vector<8x128xf32>
    %765 = arith.index_cast %c6_i32_223 : i32 to index
    %c0_225 = arith.constant 0 : index
    %c0_226 = arith.constant 0 : index
    %766 = vector.load %arg20[%765, %c0_225, %c0_226] : memref<8x8x128xf32, #tpu.memory_space<vmem>>, vector<1x8x128xf32>
    %767 = vector.shape_cast %766 : vector<1x8x128xf32> to vector<8x128xf32>
    %768 = arith.addf %767, %764 : vector<8x128xf32>
    %769 = arith.negf %768 : vector<8x128xf32>
    %770 = math.exp %769 : vector<8x128xf32>
    %cst_227 = arith.constant 1.000000e+00 : f32
    %771 = vector.broadcast %cst_227 : f32 to vector<8x128xf32>
    %772 = arith.addf %771, %770 : vector<8x128xf32>
    %773 = arith.divf %771, %772 : vector<8x128xf32>
    %774 = math.tanh %768 : vector<8x128xf32>
    %775 = vector.extract_strided_slice %773 {offsets = [0, 0], sizes = [8, 32], strides = [1, 1]} : vector<8x128xf32> to vector<8x32xf32>
    %776 = vector.extract_strided_slice %773 {offsets = [0, 32], sizes = [8, 32], strides = [1, 1]} : vector<8x128xf32> to vector<8x32xf32>
    %777 = vector.extract_strided_slice %774 {offsets = [0, 64], sizes = [8, 32], strides = [1, 1]} : vector<8x128xf32> to vector<8x32xf32>
    %778 = vector.extract_strided_slice %773 {offsets = [0, 96], sizes = [8, 32], strides = [1, 1]} : vector<8x128xf32> to vector<8x32xf32>
    %779 = arith.mulf %776, %755 : vector<8x32xf32>
    %780 = arith.mulf %775, %777 : vector<8x32xf32>
    %781 = arith.addf %779, %780 : vector<8x32xf32>
    %782 = math.tanh %781 : vector<8x32xf32>
    %783 = arith.mulf %778, %782 : vector<8x32xf32>
    %784 = arith.truncf %783 : vector<8x32xf32> to vector<8x32xbf16>
    %785 = arith.index_cast %c6_i32_223 : i32 to index
    %c0_228 = arith.constant 0 : index
    %c0_229 = arith.constant 0 : index
    %786 = vector.load %arg19[%785, %c0_228, %c0_229] : memref<8x8x32xbf16, #tpu.memory_space<vmem>>, vector<1x8x32xbf16>
    %787 = vector.shape_cast %786 : vector<1x8x32xbf16> to vector<8x32xbf16>
    %788 = vector.shape_cast %784 : vector<8x32xbf16> to vector<1x8x32xbf16>
    tpu.vector_store %arg19[%785, %c0_228, %c0_229], %788 {strides = array<i32>} : memref<8x8x32xbf16, #tpu.memory_space<vmem>>, vector<1x8x32xbf16>,
    %c7_i32_230 = arith.constant 7 : i32
    %789 = arith.truncf %783 : vector<8x32xf32> to vector<8x32xbf16>
    %cst_231 = arith.constant dense<0.000000e+00> : vector<8x128xf32>
    %790 = tpu.matmul %789, %606, %cst_231 {dimension_numbers = #tpu.dot_dimension_numbers<[1], [0], [0], [1], [0, 0, 1, 1], [], []>} : vector<8x32xbf16>, vector<32x128xbf16>, vector<8x128xf32> -> vector<8x128xf32>
    %791 = arith.index_cast %c7_i32_230 : i32 to index
    %c0_232 = arith.constant 0 : index
    %c0_233 = arith.constant 0 : index
    %792 = vector.load %arg20[%791, %c0_232, %c0_233] : memref<8x8x128xf32, #tpu.memory_space<vmem>>, vector<1x8x128xf32>
    %793 = vector.shape_cast %792 : vector<1x8x128xf32> to vector<8x128xf32>
    %794 = arith.addf %793, %790 : vector<8x128xf32>
    %795 = arith.negf %794 : vector<8x128xf32>
    %796 = math.exp %795 : vector<8x128xf32>
    %cst_234 = arith.constant 1.000000e+00 : f32
    %797 = vector.broadcast %cst_234 : f32 to vector<8x128xf32>
    %798 = arith.addf %797, %796 : vector<8x128xf32>
    %799 = arith.divf %797, %798 : vector<8x128xf32>
    %800 = math.tanh %794 : vector<8x128xf32>
    %801 = vector.extract_strided_slice %799 {offsets = [0, 0], sizes = [8, 32], strides = [1, 1]} : vector<8x128xf32> to vector<8x32xf32>
    %802 = vector.extract_strided_slice %799 {offsets = [0, 32], sizes = [8, 32], strides = [1, 1]} : vector<8x128xf32> to vector<8x32xf32>
    %803 = vector.extract_strided_slice %800 {offsets = [0, 64], sizes = [8, 32], strides = [1, 1]} : vector<8x128xf32> to vector<8x32xf32>
    %804 = vector.extract_strided_slice %799 {offsets = [0, 96], sizes = [8, 32], strides = [1, 1]} : vector<8x128xf32> to vector<8x32xf32>
    %805 = arith.mulf %802, %781 : vector<8x32xf32>
    %806 = arith.mulf %801, %803 : vector<8x32xf32>
    %807 = arith.addf %805, %806 : vector<8x32xf32>
    %808 = math.tanh %807 : vector<8x32xf32>
    %809 = arith.mulf %804, %808 : vector<8x32xf32>
    %810 = arith.truncf %809 : vector<8x32xf32> to vector<8x32xbf16>
    %811 = arith.index_cast %c7_i32_230 : i32 to index
    %c0_235 = arith.constant 0 : index
    %c0_236 = arith.constant 0 : index
    %812 = vector.load %arg19[%811, %c0_235, %c0_236] : memref<8x8x32xbf16, #tpu.memory_space<vmem>>, vector<1x8x32xbf16>
    %813 = vector.shape_cast %812 : vector<1x8x32xbf16> to vector<8x32xbf16>
    %814 = vector.shape_cast %810 : vector<8x32xbf16> to vector<1x8x32xbf16>
    tpu.vector_store %arg19[%811, %c0_235, %c0_236], %814 {strides = array<i32>} : memref<8x8x32xbf16, #tpu.memory_space<vmem>>, vector<1x8x32xbf16>,
    %c8_i32_237 = arith.constant 8 : i32
    %c0_238 = arith.constant 0 : index
    %c0_239 = arith.constant 0 : index
    %c0_240 = arith.constant 0 : index
    %815 = vector.load %arg19[%c0_238, %c0_239, %c0_240] : memref<8x8x32xbf16, #tpu.memory_space<vmem>>, vector<8x8x32xbf16>
    %816 = vector.shape_cast %815 : vector<8x8x32xbf16> to vector<64x32xbf16>
    %c0_241 = arith.constant 0 : index
    %c0_242 = arith.constant 0 : index
    %817 = vector.load %arg16[%c0_241, %c0_242] : memref<32x128xbf16, #tpu.memory_space<vmem>>, vector<32x128xbf16>
    %cst_243 = arith.constant dense<0.000000e+00> : vector<64x128xf32>
    %818 = tpu.matmul %816, %817, %cst_243 {dimension_numbers = #tpu.dot_dimension_numbers<[1], [0], [0], [1], [0, 0, 1, 1], [], []>} : vector<64x32xbf16>, vector<32x128xbf16>, vector<64x128xf32> -> vector<64x128xf32>
    %c0_244 = arith.constant 0 : index
    %c0_245 = arith.constant 0 : index
    %819 = vector.load %arg17[%c0_244, %c0_245] : memref<1x128xf32, #tpu.memory_space<vmem>>, vector<1x128xf32>
    %820 = vector.broadcast %819 : vector<1x128xf32> to vector<64x128xf32>
    %821 = arith.addf %818, %820 : vector<64x128xf32>
    %c0_246 = arith.constant 0 : index
    %c0_247 = arith.constant 0 : index
    %822 = vector.load %arg18[%c0_246, %c0_247] : memref<64x128xf32, #tpu.memory_space<vmem>>, vector<64x128xf32>
    tpu.vector_store %arg18[%c0_246, %c0_247], %821 {strides = array<i32>} : memref<64x128xf32, #tpu.memory_space<vmem>>, vector<64x128xf32>,
    return
  }
}

</mosaic_0001>

<llo_original>
// kernel: lstm_autoencoder_forward.1
$region0: #{lstm_autoencoder_forward.1}
  #allocation0 [shape = 'u32[]', space=smem, size = 0x4, offset = 0x4, fixed_abs, tag = 'smem constant byte address 0x4 - core index']
  #allocation1 [shape = 'u32[144,128]{1,0:T(1,128)}', space=vmem, size = 0x12000, scoped, tag = 'internal scratch']
  #allocation2 [shape = 'bf16[8,8,32]{2,1,0:T(8,128)(2,1)}', space=vmem, size = 0x4000, scoped, tag = 'scratch operand']
  #allocation3 [shape = 'f32[8,8,128]{2,1,0:T(8,128)}', space=vmem, size = 0x8000, scoped, tag = 'scratch operand']
  %s0 = inlined_call_operand.hbm [shape: f32[64,8], index: 0, kind: input, shape index: {}]
  %s1 = inlined_call_operand.hbm [shape: bf16[8,128], index: 1, kind: input, shape index: {}]
  %s2 = inlined_call_operand.hbm [shape: bf16[32,128], index: 2, kind: input, shape index: {}]
  %s3 = inlined_call_operand.hbm [shape: f32[1,128], index: 3, kind: input, shape index: {}]
  %s4 = inlined_call_operand.hbm [shape: bf16[32,128], index: 4, kind: input, shape index: {}]
  %s5 = inlined_call_operand.hbm [shape: bf16[32,128], index: 5, kind: input, shape index: {}]
  %s6 = inlined_call_operand.hbm [shape: f32[1,128], index: 6, kind: input, shape index: {}]
  %s7 = inlined_call_operand.hbm [shape: bf16[32,16], index: 7, kind: input, shape index: {}]
  %s8 = inlined_call_operand.hbm [shape: f32[1,16], index: 8, kind: input, shape index: {}]
  %s9 = inlined_call_operand.hbm [shape: bf16[16,32], index: 9, kind: input, shape index: {}]
  %s10 = inlined_call_operand.hbm [shape: f32[1,32], index: 10, kind: input, shape index: {}]
  %s11 = inlined_call_operand.hbm [shape: bf16[32,128], index: 11, kind: input, shape index: {}]
  %s12 = inlined_call_operand.hbm [shape: f32[1,128], index: 12, kind: input, shape index: {}]
  %s13 = inlined_call_operand.hbm [shape: bf16[32,128], index: 13, kind: input, shape index: {}]
  %s14 = inlined_call_operand.hbm [shape: bf16[32,128], index: 14, kind: input, shape index: {}]
  %s15 = inlined_call_operand.hbm [shape: f32[1,128], index: 15, kind: input, shape index: {}]
  %s16 = inlined_call_operand.hbm [shape: bf16[32,128], index: 16, kind: input, shape index: {}]
  %s17 = inlined_call_operand.hbm [shape: f32[1,128], index: 17, kind: input, shape index: {}]
  %s18 = inlined_call_operand.hbm [shape: f32[64,128], index: 18, kind: output, shape index: {}]
  %s19 = sld [smem:[#allocation0]]
  $region154: #{lstm_autoencoder_forward.1} parent=0
    _
  %s21 = ssub.s32 1, %s19
  %s22 = scalar_select 0, %s21, %s19
  $region1: #{lstm_autoencoder_forward.1} parent=0
    #allocation4 [shape = 'u8[32768]{0}', space=vmem, size = 0x8000, scoped, tag = 'input window, operand 0, single buffered']
    #allocation5 [shape = 's32[1]{0}', space=sflag, size = 0x4, scoped, tag = 'scoped memory for lstm_autoencoder_forward.1']
    #allocation6 [shape = 's32[1]{0}', space=sflag, size = 0x4, scoped, tag = 'scoped memory for lstm_autoencoder_forward.1']
    #allocation7 [shape = 'u8[2048]{0}', space=vmem, size = 0x800, scoped, tag = 'input window, operand 1, single buffered']
    #allocation8 [shape = 's32[1]{0}', space=sflag, size = 0x4, scoped, tag = 'scoped memory for lstm_autoencoder_forward.1']
    #allocation9 [shape = 'u8[8192]{0}', space=vmem, size = 0x2000, scoped, tag = 'input window, operand 2, single buffered']
    #allocation10 [shape = 'u8[512]{0}', space=vmem, size = 0x400, scoped, tag = 'input window, operand 3, single buffered']
    #allocation11 [shape = 's32[1]{0}', space=sflag, size = 0x4, scoped, tag = 'scoped memory for lstm_autoencoder_forward.1']
    #allocation12 [shape = 'u8[8192]{0}', space=vmem, size = 0x2000, scoped, tag = 'input window, operand 4, single buffered']
    #allocation13 [shape = 'u8[8192]{0}', space=vmem, size = 0x2000, scoped, tag = 'input window, operand 5, single buffered']
    #allocation14 [shape = 's32[1]{0}', space=sflag, size = 0x4, scoped, tag = 'scoped memory for lstm_autoencoder_forward.1']
    #allocation15 [shape = 'u8[512]{0}', space=vmem, size = 0x400, scoped, tag = 'input window, operand 6, single buffered']
    #allocation16 [shape = 'u8[8192]{0}', space=vmem, size = 0x2000, scoped, tag = 'input window, operand 7, single buffered']
    #allocation17 [shape = 's32[1]{0}', space=sflag, size = 0x4, scoped, tag = 'scoped memory for lstm_autoencoder_forward.1']
    #allocation18 [shape = 'u8[512]{0}', space=vmem, size = 0x400, scoped, tag = 'input window, operand 8, single buffered']
    #allocation19 [shape = 'u8[4096]{0}', space=vmem, size = 0x1000, scoped, tag = 'input window, operand 9, single buffered']
    #allocation20 [shape = 's32[1]{0}', space=sflag, size = 0x4, scoped, tag = 'scoped memory for lstm_autoencoder_forward.1']
    #allocation21 [shape = 'u8[512]{0}', space=vmem, size = 0x400, scoped, tag = 'input window, operand 10, single buffered']
    #allocation22 [shape = 'u8[8192]{0}', space=vmem, size = 0x2000, scoped, tag = 'input window, operand 11, single buffered']
    #allocation23 [shape = 's32[1]{0}', space=sflag, size = 0x4, scoped, tag = 'scoped memory for lstm_autoencoder_forward.1']
    #allocation24 [shape = 'u8[512]{0}', space=vmem, size = 0x400, scoped, tag = 'input window, operand 12, single buffered']
    #allocation25 [shape = 'u8[8192]{0}', space=vmem, size = 0x2000, scoped, tag = 'input window, operand 13, single buffered']
    #allocation26 [shape = 's32[1]{0}', space=sflag, size = 0x4, scoped, tag = 'scoped memory for lstm_autoencoder_forward.1']
    #allocation27 [shape = 'u8[8192]{0}', space=vmem, size = 0x2000, scoped, tag = 'input window, operand 14, single buffered']
    #allocation28 [shape = 'u8[512]{0}', space=vmem, size = 0x400, scoped, tag = 'input window, operand 15, single buffered']
    #allocation29 [shape = 's32[1]{0}', space=sflag, size = 0x4, scoped, tag = 'scoped memory for lstm_autoencoder_forward.1']
    #allocation30 [shape = 'u8[8192]{0}', space=vmem, size = 0x2000, scoped, tag = 'input window, operand 16, single buffered']
    #allocation31 [shape = 'u8[512]{0}', space=vmem, size = 0x400, scoped, tag = 'input window, operand 17, single buffered']
    #allocation32 [shape = 's32[1]{0}', space=sflag, size = 0x4, scoped, tag = 'scoped memory for lstm_autoencoder_forward.1']
    #allocation33 [shape = 'u8[32768]{0}', space=vmem, size = 0x8000, scoped, tag = 'output window, operand 0, single buffered']
    %23 = vsyncpa [#allocation5], 0
    %24 = vsyncpa [#allocation8], 0
    %25 = vsyncpa [#allocation11], 0
    %26 = vsyncpa [#allocation14], 0
    %27 = vsyncpa [#allocation17], 0
    %28 = vsyncpa [#allocation20], 0
    %29 = vsyncpa [#allocation23], 0
    %30 = vsyncpa [#allocation26], 0
    %31 = vsyncpa [#allocation29], 0
    %32 = vsyncpa [#allocation32], 0
    %33 = vsyncpa [#allocation6], 0
    // Predicated region
    $region2: #{lstm_autoencoder_forward.1} parent=1 // pred_check
      _
    $region3: #{lstm_autoencoder_forward.1} parent=1 // pred_check_branch
      %35 = sbr.rel (0) target = $region5
    $region4: #{lstm_autoencoder_forward.1} parent=1 // pred_region
      %s37 = ssub.s32 1024, 1024
      %38 = vsyncadd [#allocation5], %s37
      %s39 = sshll.u32 [#allocation4], 4
      %s40 = int_to_ptr.vmem [resolvable:$true] %s39
      %45 = dma.hbm_to_vmem [thread:$0]  %s0, 1024, %s40, [#allocation5], 128, 128, 8
    $region5: #{lstm_autoencoder_forward.1} parent=1 // pred_fallthru
      _
    // Predicated region
    $region6: #{lstm_autoencoder_forward.1} parent=1 // pred_check
      _
    $region7: #{lstm_autoencoder_forward.1} parent=1 // pred_check_branch
      %47 = sbr.rel (0) target = $region9
    $region8: #{lstm_autoencoder_forward.1} parent=1 // pred_region
      %s49 = ssub.s32 64, 64
      %50 = vsyncadd [#allocation8], %s49
      %s52 = sshll.u32 [#allocation7], 4
      %s53 = int_to_ptr.vmem [resolvable:$true] %s52
      %55 = dma.hbm_to_vmem [thread:$0]  %s1, 64, %s53, [#allocation8]
    $region9: #{lstm_autoencoder_forward.1} parent=1 // pred_fallthru
      _
    // Predicated region
    $region10: #{lstm_autoencoder_forward.1} parent=1 // pred_check
      _
    $region11: #{lstm_autoencoder_forward.1} parent=1 // pred_check_branch
      %57 = sbr.rel (0) target = $region13
    $region12: #{lstm_autoencoder_forward.1} parent=1 // pred_region
      %s59 = ssub.s32 256, 256
      %60 = vsyncadd [#allocation8], %s59
      %s61 = sshll.u32 [#allocation9], 4
      %s62 = int_to_ptr.vmem [resolvable:$true] %s61
      %67 = dma.hbm_to_vmem [thread:$0]  %s2, 256, %s62, [#allocation8], 64, 64, 4
    $region13: #{lstm_autoencoder_forward.1} parent=1 // pred_fallthru
      _
    // Predicated region
    $region14: #{lstm_autoencoder_forward.1} parent=1 // pred_check
      _
    $region15: #{lstm_autoencoder_forward.1} parent=1 // pred_check_branch
      %69 = sbr.rel (0) target = $region17
    $region16: #{lstm_autoencoder_forward.1} parent=1 // pred_region
      %s71 = ssub.s32 16, 16
      %72 = vsyncadd [#allocation11], %s71
      %s74 = sshll.u32 [#allocation10], 4
      %s75 = int_to_ptr.vmem [resolvable:$true] %s74
      %77 = dma.hbm_to_vmem [thread:$0]  %s3, 16, %s75, [#allocation11]
    $region17: #{lstm_autoencoder_forward.1} parent=1 // pred_fallthru
      _
    // Predicated region
    $region18: #{lstm_autoencoder_forward.1} parent=1 // pred_check
      _
    $region19: #{lstm_autoencoder_forward.1} parent=1 // pred_check_branch
      %79 = sbr.rel (0) target = $region21
    $region20: #{lstm_autoencoder_forward.1} parent=1 // pred_region
      %s81 = ssub.s32 256, 256
      %82 = vsyncadd [#allocation11], %s81
      %s83 = sshll.u32 [#allocation12], 4
      %s84 = int_to_ptr.vmem [resolvable:$true] %s83
      %89 = dma.hbm_to_vmem [thread:$0]  %s4, 256, %s84, [#allocation11], 64, 64, 4
    $region21: #{lstm_autoencoder_forward.1} parent=1 // pred_fallthru
      _
    // Predicated region
    $region22: #{lstm_autoencoder_forward.1} parent=1 // pred_check
      _
    $region23: #{lstm_autoencoder_forward.1} parent=1 // pred_check_branch
      %91 = sbr.rel (0) target = $region25
    $region24: #{lstm_autoencoder_forward.1} parent=1 // pred_region
      %s93 = ssub.s32 256, 256
      %94 = vsyncadd [#allocation14], %s93
      %s95 = sshll.u32 [#allocation13], 4
      %s96 = int_to_ptr.vmem [resolvable:$true] %s95
      %101 = dma.hbm_to_vmem [thread:$0]  %s5, 256, %s96, [#allocation14], 64, 64, 4
    $region25: #{lstm_autoencoder_forward.1} parent=1 // pred_fallthru
      _
    // Predicated region
    $region26: #{lstm_autoencoder_forward.1} parent=1 // pred_check
      _
    $region27: #{lstm_autoencoder_forward.1} parent=1 // pred_check_branch
      %103 = sbr.rel (0) target = $region29
    $region28: #{lstm_autoencoder_forward.1} parent=1 // pred_region
      %s105 = ssub.s32 16, 16
      %106 = vsyncadd [#allocation14], %s105
      %s108 = sshll.u32 [#allocation15], 4
      %s109 = int_to_ptr.vmem [resolvable:$true] %s108
      %111 = dma.hbm_to_vmem [thread:$0]  %s6, 16, %s109, [#allocation14]
    $region29: #{lstm_autoencoder_forward.1} parent=1 // pred_fallthru
      _
    // Predicated region
    $region30: #{lstm_autoencoder_forward.1} parent=1 // pred_check
      _
    $region31: #{lstm_autoencoder_forward.1} parent=1 // pred_check_branch
      %113 = sbr.rel (0) target = $region33
    $region32: #{lstm_autoencoder_forward.1} parent=1 // pred_region
      %s115 = ssub.s32 256, 256
      %116 = vsyncadd [#allocation17], %s115
      %s117 = sshll.u32 [#allocation16], 4
      %s118 = int_to_ptr.vmem [resolvable:$true] %s117
      %123 = dma.hbm_to_vmem [thread:$0]  %s7, 256, %s118, [#allocation17], 64, 64, 4
    $region33: #{lstm_autoencoder_forward.1} parent=1 // pred_fallthru
      _
    // Predicated region
    $region34: #{lstm_autoencoder_forward.1} parent=1 // pred_check
      _
    $region35: #{lstm_autoencoder_forward.1} parent=1 // pred_check_branch
      %125 = sbr.rel (0) target = $region37
    $region36: #{lstm_autoencoder_forward.1} parent=1 // pred_region
      %s127 = ssub.s32 16, 16
      %128 = vsyncadd [#allocation17], %s127
      %s130 = sshll.u32 [#allocation18], 4
      %s131 = int_to_ptr.vmem [resolvable:$true] %s130
      %133 = dma.hbm_to_vmem [thread:$0]  %s8, 16, %s131, [#allocation17]
    $region37: #{lstm_autoencoder_forward.1} parent=1 // pred_fallthru
      _
    // Predicated region
    $region38: #{lstm_autoencoder_forward.1} parent=1 // pred_check
      _
    $region39: #{lstm_autoencoder_forward.1} parent=1 // pred_check_branch
      %135 = sbr.rel (0) target = $region41
    $region40: #{lstm_autoencoder_forward.1} parent=1 // pred_region
      %s137 = ssub.s32 128, 128
      %138 = vsyncadd [#allocation20], %s137
      %s139 = sshll.u32 [#allocation19], 4
      %s140 = int_to_ptr.vmem [resolvable:$true] %s139
      %145 = dma.hbm_to_vmem [thread:$0]  %s9, 128, %s140, [#allocation20], 64, 64, 4
    $region41: #{lstm_autoencoder_forward.1} parent=1 // pred_fallthru
      _
    // Predicated region
    $region42: #{lstm_autoencoder_forward.1} parent=1 // pred_check
      _
    $region43: #{lstm_autoencoder_forward.1} parent=1 // pred_check_branch
      %147 = sbr.rel (0) target = $region45
    $region44: #{lstm_autoencoder_forward.1} parent=1 // pred_region
      %s149 = ssub.s32 16, 16
      %150 = vsyncadd [#allocation20], %s149
      %s152 = sshll.u32 [#allocation21], 4
      %s153 = int_to_ptr.vmem [resolvable:$true] %s152
      %155 = dma.hbm_to_vmem [thread:$0]  %s10, 16, %s153, [#allocation20]
    $region45: #{lstm_autoencoder_forward.1} parent=1 // pred_fallthru
      _
    // Predicated region
    $region46: #{lstm_autoencoder_forward.1} parent=1 // pred_check
      _
    $region47: #{lstm_autoencoder_forward.1} parent=1 // pred_check_branch
      %157 = sbr.rel (0) target = $region49
    $region48: #{lstm_autoencoder_forward.1} parent=1 // pred_region
      %s159 = ssub.s32 256, 256
      %160 = vsyncadd [#allocation23], %s159
      %s161 = sshll.u32 [#allocation22], 4
      %s162 = int_to_ptr.vmem [resolvable:$true] %s161
      %167 = dma.hbm_to_vmem [thread:$0]  %s11, 256, %s162, [#allocation23], 64, 64, 4
    $region49: #{lstm_autoencoder_forward.1} parent=1 // pred_fallthru
      _
    // Predicated region
    $region50: #{lstm_autoencoder_forward.1} parent=1 // pred_check
      _
    $region51: #{lstm_autoencoder_forward.1} parent=1 // pred_check_branch
      %169 = sbr.rel (0) target = $region53
    $region52: #{lstm_autoencoder_forward.1} parent=1 // pred_region
      %s171 = ssub.s32 16, 16
      %172 = vsyncadd [#allocation23], %s171
      %s174 = sshll.u32 [#allocation24], 4
      %s175 = int_to_ptr.vmem [resolvable:$true] %s174
      %177 = dma.hbm_to_vmem [thread:$0]  %s12, 16, %s175, [#allocation23]
    $region53: #{lstm_autoencoder_forward.1} parent=1 // pred_fallthru
      _
    // Predicated region
    $region54: #{lstm_autoencoder_forward.1} parent=1 // pred_check
      _
    $region55: #{lstm_autoencoder_forward.1} parent=1 // pred_check_branch
      %179 = sbr.rel (0) target = $region57
    $region56: #{lstm_autoencoder_forward.1} parent=1 // pred_region
      %s181 = ssub.s32 256, 256
      %182 = vsyncadd [#allocation26], %s181
      %s183 = sshll.u32 [#allocation25], 4
      %s184 = int_to_ptr.vmem [resolvable:$true] %s183
      %189 = dma.hbm_to_vmem [thread:$0]  %s13, 256, %s184, [#allocation26], 64, 64, 4
    $region57: #{lstm_autoencoder_forward.1} parent=1 // pred_fallthru
      _
    // Predicated region
    $region58: #{lstm_autoencoder_forward.1} parent=1 // pred_check
      _
    $region59: #{lstm_autoencoder_forward.1} parent=1 // pred_check_branch
      %191 = sbr.rel (0) target = $region61
    $region60: #{lstm_autoencoder_forward.1} parent=1 // pred_region
      %s193 = ssub.s32 256, 256
      %194 = vsyncadd [#allocation26], %s193
      %s195 = sshll.u32 [#allocation27], 4
      %s196 = int_to_ptr.vmem [resolvable:$true] %s195
      %201 = dma.hbm_to_vmem [thread:$0]  %s14, 256, %s196, [#allocation26], 64, 64, 4
    $region61: #{lstm_autoencoder_forward.1} parent=1 // pred_fallthru
      _
    // Predicated region
    $region62: #{lstm_autoencoder_forward.1} parent=1 // pred_check
      _
    $region63: #{lstm_autoencoder_forward.1} parent=1 // pred_check_branch
      %203 = sbr.rel (0) target = $region65
    $region64: #{lstm_autoencoder_forward.1} parent=1 // pred_region
      %s205 = ssub.s32 16, 16
      %206 = vsyncadd [#allocation29], %s205
      %s208 = sshll.u32 [#allocation28], 4
      %s209 = int_to_ptr.vmem [resolvable:$true] %s208
      %211 = dma.hbm_to_vmem [thread:$0]  %s15, 16, %s209, [#allocation29]
    $region65: #{lstm_autoencoder_forward.1} parent=1 // pred_fallthru
      _
    // Predicated region
    $region66: #{lstm_autoencoder_forward.1} parent=1 // pred_check
      _
    $region67: #{lstm_autoencoder_forward.1} parent=1 // pred_check_branch
      %213 = sbr.rel (0) target = $region69
    $region68: #{lstm_autoencoder_forward.1} parent=1 // pred_region
      %s215 = ssub.s32 256, 256
      %216 = vsyncadd [#allocation29], %s215
      %s217 = sshll.u32 [#allocation30], 4
      %s218 = int_to_ptr.vmem [resolvable:$true] %s217
      %223 = dma.hbm_to_vmem [thread:$0]  %s16, 256, %s218, [#allocation29], 64, 64, 4
    $region69: #{lstm_autoencoder_forward.1} parent=1 // pred_fallthru
      _
    // Predicated region
    $region70: #{lstm_autoencoder_forward.1} parent=1 // pred_check
      _
    $region71: #{lstm_autoencoder_forward.1} parent=1 // pred_check_branch
      %225 = sbr.rel (0) target = $region73
    $region72: #{lstm_autoencoder_forward.1} parent=1 // pred_region
      %s227 = ssub.s32 16, 16
      %228 = vsyncadd [#allocation32], %s227
      %s230 = sshll.u32 [#allocation31], 4
      %s231 = int_to_ptr.vmem [resolvable:$true] %s230
      %233 = dma.hbm_to_vmem [thread:$0]  %s17, 16, %s231, [#allocation32]
    $region73: #{lstm_autoencoder_forward.1} parent=1 // pred_fallthru
      _
    // Predicated region
    $region74: #{lstm_autoencoder_forward.1} parent=1 // pred_check
      _
    $region75: #{lstm_autoencoder_forward.1} parent=1 // pred_check_branch
      %235 = sbr.rel (0) target = $region77
    $region76: #{lstm_autoencoder_forward.1} parent=1 // pred_region
      %236 = dma.done [#allocation5], 1024
    $region77: #{lstm_autoencoder_forward.1} parent=1 // pred_fallthru
      _
    // Predicated region
    $region78: #{lstm_autoencoder_forward.1} parent=1 // pred_check
      _
    $region79: #{lstm_autoencoder_forward.1} parent=1 // pred_check_branch
      %238 = sbr.rel (0) target = $region81
    $region80: #{lstm_autoencoder_forward.1} parent=1 // pred_region
      %239 = dma.done [#allocation8], 64
    $region81: #{lstm_autoencoder_forward.1} parent=1 // pred_fallthru
      _
    // Predicated region
    $region82: #{lstm_autoencoder_forward.1} parent=1 // pred_check
      _
    $region83: #{lstm_autoencoder_forward.1} parent=1 // pred_check_branch
      %241 = sbr.rel (0) target = $region85
    $region84: #{lstm_autoencoder_forward.1} parent=1 // pred_region
      %242 = dma.done [#allocation8], 256
    $region85: #{lstm_autoencoder_forward.1} parent=1 // pred_fallthru
      _
    // Predicated region
    $region86: #{lstm_autoencoder_forward.1} parent=1 // pred_check
      _
    $region87: #{lstm_autoencoder_forward.1} parent=1 // pred_check_branch
      %244 = sbr.rel (0) target = $region89
    $region88: #{lstm_autoencoder_forward.1} parent=1 // pred_region
      %245 = dma.done [#allocation11], 16
    $region89: #{lstm_autoencoder_forward.1} parent=1 // pred_fallthru
      _
    // Predicated region
    $region90: #{lstm_autoencoder_forward.1} parent=1 // pred_check
      _
    $region91: #{lstm_autoencoder_forward.1} parent=1 // pred_check_branch
      %247 = sbr.rel (0) target = $region93
    $region92: #{lstm_autoencoder_forward.1} parent=1 // pred_region
      %248 = dma.done [#allocation11], 256
    $region93: #{lstm_autoencoder_forward.1} parent=1 // pred_fallthru
      _
    // Predicated region
    $region94: #{lstm_autoencoder_forward.1} parent=1 // pred_check
      _
    $region95: #{lstm_autoencoder_forward.1} parent=1 // pred_check_branch
      %250 = sbr.rel (0) target = $region97
    $region96: #{lstm_autoencoder_forward.1} parent=1 // pred_region
      %251 = dma.done [#allocation14], 256
    $region97: #{lstm_autoencoder_forward.1} parent=1 // pred_fallthru
      _
    // Predicated region
    $region98: #{lstm_autoencoder_forward.1} parent=1 // pred_check
      _
    $region99: #{lstm_autoencoder_forward.1} parent=1 // pred_check_branch
      %253 = sbr.rel (0) target = $region101
    $region100: #{lstm_autoencoder_forward.1} parent=1 // pred_region
      %254 = dma.done [#allocation14], 16
    $region101: #{lstm_autoencoder_forward.1} parent=1 // pred_fallthru
      _
    // Predicated region
    $region102: #{lstm_autoencoder_forward.1} parent=1 // pred_check
      _
    $region103: #{lstm_autoencoder_forward.1} parent=1 // pred_check_branch
      %256 = sbr.rel (0) target = $region105
    $region104: #{lstm_autoencoder_forward.1} parent=1 // pred_region
      %257 = dma.done [#allocation17], 256
    $region105: #{lstm_autoencoder_forward.1} parent=1 // pred_fallthru
      _
    // Predicated region
    $region106: #{lstm_autoencoder_forward.1} parent=1 // pred_check
      _
    $region107: #{lstm_autoencoder_forward.1} parent=1 // pred_check_branch
      %259 = sbr.rel (0) target = $region109
    $region108: #{lstm_autoencoder_forward.1} parent=1 // pred_region
      %260 = dma.done [#allocation17], 16
    $region109: #{lstm_autoencoder_forward.1} parent=1 // pred_fallthru
      _
    // Predicated region
    $region110: #{lstm_autoencoder_forward.1} parent=1 // pred_check
      _
    $region111: #{lstm_autoencoder_forward.1} parent=1 // pred_check_branch
      %262 = sbr.rel (0) target = $region113
    $region112: #{lstm_autoencoder_forward.1} parent=1 // pred_region
      %263 = dma.done [#allocation20], 128
    $region113: #{lstm_autoencoder_forward.1} parent=1 // pred_fallthru
      _
    // Predicated region
    $region114: #{lstm_autoencoder_forward.1} parent=1 // pred_check
      _
    $region115: #{lstm_autoencoder_forward.1} parent=1 // pred_check_branch
      %265 = sbr.rel (0) target = $region117
    $region116: #{lstm_autoencoder_forward.1} parent=1 // pred_region
      %266 = dma.done [#allocation20], 16
    $region117: #{lstm_autoencoder_forward.1} parent=1 // pred_fallthru
      _
    // Predicated region
    $region118: #{lstm_autoencoder_forward.1} parent=1 // pred_check
      _
    $region119: #{lstm_autoencoder_forward.1} parent=1 // pred_check_branch
      %268 = sbr.rel (0) target = $region121
    $region120: #{lstm_autoencoder_forward.1} parent=1 // pred_region
      %269 = dma.done [#allocation23], 256
    $region121: #{lstm_autoencoder_forward.1} parent=1 // pred_fallthru
      _
    // Predicated region
    $region122: #{lstm_autoencoder_forward.1} parent=1 // pred_check
      _
    $region123: #{lstm_autoencoder_forward.1} parent=1 // pred_check_branch
      %271 = sbr.rel (0) target = $region125
    $region124: #{lstm_autoencoder_forward.1} parent=1 // pred_region
      %272 = dma.done [#allocation23], 16
    $region125: #{lstm_autoencoder_forward.1} parent=1 // pred_fallthru
      _
    // Predicated region
    $region126: #{lstm_autoencoder_forward.1} parent=1 // pred_check
      _
    $region127: #{lstm_autoencoder_forward.1} parent=1 // pred_check_branch
      %274 = sbr.rel (0) target = $region129
    $region128: #{lstm_autoencoder_forward.1} parent=1 // pred_region
      %275 = dma.done [#allocation26], 256
    $region129: #{lstm_autoencoder_forward.1} parent=1 // pred_fallthru
      _
    // Predicated region
    $region130: #{lstm_autoencoder_forward.1} parent=1 // pred_check
      _
    $region131: #{lstm_autoencoder_forward.1} parent=1 // pred_check_branch
      %277 = sbr.rel (0) target = $region133
    $region132: #{lstm_autoencoder_forward.1} parent=1 // pred_region
      %278 = dma.done [#allocation26], 256
    $region133: #{lstm_autoencoder_forward.1} parent=1 // pred_fallthru
      _
    // Predicated region
    $region134: #{lstm_autoencoder_forward.1} parent=1 // pred_check
      _
    $region135: #{lstm_autoencoder_forward.1} parent=1 // pred_check_branch
      %280 = sbr.rel (0) target = $region137
    $region136: #{lstm_autoencoder_forward.1} parent=1 // pred_region
      %281 = dma.done [#allocation29], 16
    $region137: #{lstm_autoencoder_forward.1} parent=1 // pred_fallthru
      _
    // Predicated region
    $region138: #{lstm_autoencoder_forward.1} parent=1 // pred_check
      _
    $region139: #{lstm_autoencoder_forward.1} parent=1 // pred_check_branch
      %283 = sbr.rel (0) target = $region141
    $region140: #{lstm_autoencoder_forward.1} parent=1 // pred_region
      %284 = dma.done [#allocation29], 256
    $region141: #{lstm_autoencoder_forward.1} parent=1 // pred_fallthru
      _
    // Predicated region
    $region142: #{lstm_autoencoder_forward.1} parent=1 // pred_check
      _
    $region143: #{lstm_autoencoder_forward.1} parent=1 // pred_check_branch
      %286 = sbr.rel (0) target = $region145
    $region144: #{lstm_autoencoder_forward.1} parent=1 // pred_region
      %287 = dma.done [#allocation32], 16
    $region145: #{lstm_autoencoder_forward.1} parent=1 // pred_fallthru
      _
    %v289 = vld [vmem:[#allocation4] sm:$0xff]
    %v290 = vld [vmem:[#allocation4 + $0x8] sm:$0xff]
    %v291 = vld [vmem:[#allocation4 + $0x10] sm:$0xff]
    %v292 = vld [vmem:[#allocation4 + $0x18] sm:$0xff]
    %v293 = vld [vmem:[#allocation4 + $0x20] sm:$0xff]
    %v294 = vld [vmem:[#allocation4 + $0x28] sm:$0xff]
    %v295 = vld [vmem:[#allocation4 + $0x30] sm:$0xff]
    %v296 = vld [vmem:[#allocation4 + $0x38] sm:$0xff]
    %v297 = vpack.c.bf16 %v290, %v289
    %v298 = vpack.c.bf16 %v292, %v291
    %v299 = vpack.c.bf16 %v294, %v293
    %v300 = vpack.c.bf16 %v296, %v295
    %v301 = vld [vmem:[#allocation7] sm:$0xf]
    %v302 = vld [vmem:[#allocation10] sm:$0x1]
    %v304 = vlaneseq
    %v305 = vshrl.u32 %v304, 7
    %v306 = vsub.s32 0, %v305
    %v307 = vrot.slane %v302, %v306
    %vm309 = vcmask 64512
    %v311 = vsel %vm309, %v297, 0
    %v314 = vsel %vm309, %v298, 0
    %v317 = vsel %vm309, %v299, 0
    %v320 = vsel %vm309, %v300, 0
    %vm322 = vcmask 1043456
    %v324 = vsel %vm322, %v301, 0
    %326 = vmatprep.subr.bf16.mxu0 0
    %327 = vmatpush1.bf16.msra.mxu0 %v324
    %328 = vmatprep.subr.bf16.mxu0 0
    %329 = vmatpush1.bf16.msra.mxu0 0
    %330 = vmatprep.subr.bf16.mxu0 0
    %331 = vmatpush1.bf16.msra.mxu0 0
    %332 = vmatprep.subr.bf16.mxu0 0
    %333 = vmatpush1.bf16.msra.mxu0 0
    %334 = vmatprep.subr.bf16.mxu0 0
    %335 = vmatpush1.bf16.msra.mxu0 0
    %336 = vmatprep.subr.bf16.mxu0 0
    %337 = vmatpush1.bf16.msra.mxu0 0
    %338 = vmatprep.subr.bf16.mxu0 0
    %339 = vmatpush1.bf16.msra.mxu0 0
    %340 = vmatprep.subr.bf16.mxu0 0
    %341 = vmatpush1.bf16.msra.mxu0 0
    %342 = vmatprep.subr.bf16.mxu0 0
    %343 = vmatpush1.bf16.msra.mxu0 0
    %344 = vmatprep.subr.bf16.mxu0 0
    %345 = vmatpush1.bf16.msra.mxu0 0
    %346 = vmatprep.subr.bf16.mxu0 0
    %347 = vmatpush1.bf16.msra.mxu0 0
    %348 = vmatprep.subr.bf16.mxu0 0
    %349 = vmatpush1.bf16.msra.mxu0 0
    %350 = vmatprep.subr.bf16.mxu0 0
    %351 = vmatpush1.bf16.msra.mxu0 0
    %352 = vmatprep.subr.bf16.mxu0 0
    %353 = vmatpush1.bf16.msra.mxu0 0
    %354 = vmatprep.subr.bf16.mxu0 0
    %355 = vmatpush1.bf16.msra.mxu0 0
    %356 = vmatprep.subr.bf16.mxu0 0
    %357 = vmatpush1.bf16.msra.mxu0 0
    %358 = vmatprep.mubr.bf16.mxu0 0
    %359 = vmatmul.mubr.bf16.gmra.mrb[0].mxu0 %v311
    %v360 = vpop.f32.mrb[0].mxu0
    %v361 = vadd.f32 %v307, %v360
    %v362 = vpop.f32.mrb[0].mxu0
    %v363 = vpop.f32.mrb[0].mxu0
    %v364 = vadd.f32 %v307, %v363
    %v365 = vpop.f32.mrb[0].mxu0
    %366 = vmatprep.mubr.bf16.mxu0 0
    %367 = vmatmul.mubr.bf16.gmra.mrb[0].mxu0 %v314
    %v368 = vpop.f32.mrb[0].mxu0
    %v369 = vadd.f32 %v307, %v368
    %v370 = vpop.f32.mrb[0].mxu0
    %v371 = vpop.f32.mrb[0].mxu0
    %v372 = vadd.f32 %v307, %v371
    %v373 = vpop.f32.mrb[0].mxu0
    %374 = vmatprep.mubr.bf16.mxu0 0
    %375 = vmatmul.mubr.bf16.gmra.mrb[0].mxu0 %v317
    %v376 = vpop.f32.mrb[0].mxu0
    %v377 = vadd.f32 %v307, %v376
    %v378 = vpop.f32.mrb[0].mxu0
    %v379 = vpop.f32.mrb[0].mxu0
    %v380 = vadd.f32 %v307, %v379
    %v381 = vpop.f32.mrb[0].mxu0
    %382 = vmatprep.mubr.bf16.mxu0 0
    %383 = vmatmul.mubr.bf16.gmra.mrb[0].mxu0 %v320
    %v384 = vpop.f32.mrb[0].mxu0
    %v385 = vadd.f32 %v307, %v384
    %v386 = vpop.f32.mrb[0].mxu0
    %v387 = vpop.f32.mrb[0].mxu0
    %v388 = vadd.f32 %v307, %v387
    %v389 = vpop.f32.mrb[0].mxu0
    %390 = vdwg.mxu0
    %391 = vst [vmem:[#allocation3] sm:$0xff] %v361
    %392 = vst [vmem:[#allocation3 + $0x8] sm:$0xff] %v364
    %393 = vst [vmem:[#allocation3 + $0x10] sm:$0xff] %v369
    %394 = vst [vmem:[#allocation3 + $0x18] sm:$0xff] %v372
    %395 = vst [vmem:[#allocation3 + $0x20] sm:$0xff] %v377
    %396 = vst [vmem:[#allocation3 + $0x28] sm:$0xff] %v380
    %397 = vst [vmem:[#allocation3 + $0x30] sm:$0xff] %v385
    %398 = vst [vmem:[#allocation3 + $0x38] sm:$0xff] %v388
    %v399 = vld [vmem:[#allocation9] sm:$0xf]
    %v400 = vld [vmem:[#allocation9 + $0x4] sm:$0xf]
    %v401 = vld [vmem:[#allocation9 + $0x8] sm:$0xf]
    %v402 = vld [vmem:[#allocation9 + $0xc] sm:$0xf]
    %v407 = vunpack.c.l.b16 %v399
    %v408 = vunpack.c.l.b16 %v400
    %v409 = vunpack.c.l.b16 %v401
    %v410 = vunpack.c.l.b16 %v402
    %v411 = vpack.c.b16 %v408, %v407
    %v412 = vpack.c.b16 %v410, %v409
    %vm415 = vcmask 261120
    %v417 = vsel %vm415, 0, 0
    %419 = vmatprep.subr.bf16.mxu0 0
    %420 = vmatpush1.bf16.msra.mxu0 %v411
    %421 = vmatprep.subr.bf16.mxu0 0
    %422 = vmatpush1.bf16.msra.mxu0 %v412
    %423 = vmatprep.subr.bf16.mxu0 0
    %424 = vmatpush1.bf16.msra.mxu0 0
    %425 = vmatprep.subr.bf16.mxu0 0
    %426 = vmatpush1.bf16.msra.mxu0 0
    %427 = vmatprep.subr.bf16.mxu0 0
    %428 = vmatpush1.bf16.msra.mxu0 0
    %429 = vmatprep.subr.bf16.mxu0 0
    %430 = vmatpush1.bf16.msra.mxu0 0
    %431 = vmatprep.subr.bf16.mxu0 0
    %432 = vmatpush1.bf16.msra.mxu0 0
    %433 = vmatprep.subr.bf16.mxu0 0
    %434 = vmatpush1.bf16.msra.mxu0 0
    %435 = vmatprep.subr.bf16.mxu0 0
    %436 = vmatpush1.bf16.msra.mxu0 0
    %437 = vmatprep.subr.bf16.mxu0 0
    %438 = vmatpush1.bf16.msra.mxu0 0
    %439 = vmatprep.subr.bf16.mxu0 0
    %440 = vmatpush1.bf16.msra.mxu0 0
    %441 = vmatprep.subr.bf16.mxu0 0
    %442 = vmatpush1.bf16.msra.mxu0 0
    %443 = vmatprep.subr.bf16.mxu0 0
    %444 = vmatpush1.bf16.msra.mxu0 0
    %445 = vmatprep.subr.bf16.mxu0 0
    %446 = vmatpush1.bf16.msra.mxu0 0
    %447 = vmatprep.subr.bf16.mxu0 0
    %448 = vmatpush1.bf16.msra.mxu0 0
    %449 = vmatprep.subr.bf16.mxu0 0
    %450 = vmatpush1.bf16.msra.mxu0 0
    %451 = vmatprep.mubr.bf16.mxu0 0
    %452 = vmatmul.mubr.bf16.gmra.mrb[0].mxu0 %v417
    %v453 = vpop.f32.mrb[0].mxu0
    %v454 = vadd.f32 0.0, %v453
    %v455 = vpop.f32.mrb[0].mxu0
    %v456 = vpop.f32.mrb[0].mxu0
    %v457 = vpop.f32.mrb[0].mxu0
    %458 = vdwg.mxu0
    %v459 = vld [vmem:[#allocation3] sm:$0xff]
    %v460 = vadd.f32 %v459, %v454
    %v461 = vxor.u32 %v460, 2147483648
    %v462 = vmul.f32 %v461, 1.442695
    %v463 = vpow.pop %v462
    %v464 = vadd.f32 %v463, 1.0
    %v465 = vrcp.pop %v464
    %v466 = vmul.f32 1.0, %v465
    %v467 = vtanh.pop %v460
    %v468 = vmul.f32 %v466, 0.0
    %470 = vrot.lane.b32.xlu0 %v467, 64
    %v471 = vpop.permute.xlu0 %470
    %v473 = vmul.f32 %v466, %v471
    %475 = vrot.lane.b32.xlu0 %v473, 32
    %v476 = vpop.permute.xlu0 %475
    %v478 = vadd.f32 %v468, %v476
    %v479 = vtanh.pop %v478
    %481 = vrot.lane.b32.xlu0 %v479, 64
    %v482 = vpop.permute.xlu0 %481
    %v484 = vmul.f32 %v466, %v482
    %v485 = vpack.c.bf16 %v484, %v484
    %v487 = vunpack.c.l.b16 %v485
    %v488 = vpack.c.b16 %v487, %v487
    %489 = vrot.lane.b32.xlu0 %v488, 32
    %v490 = vpop.permute.xlu0 %489
    %vm492 = vcmask 257024
    %493 = vst.msk [vmem:[#allocation2] sm:$0xf] %vm492, %v490
    %494 = vrot.lane.b32.xlu0 %v485, 32
    %v495 = vpop.permute.xlu0 %494
    %v497 = vsel %vm415, %v495, 0
    %499 = vmatprep.subr.bf16.mxu0 0
    %500 = vmatpush1.bf16.msra.mxu0 %v411
    %501 = vmatprep.subr.bf16.mxu0 0
    %502 = vmatpush1.bf16.msra.mxu0 %v412
    %503 = vmatprep.subr.bf16.mxu0 0
    %504 = vmatpush1.bf16.msra.mxu0 0
    %505 = vmatprep.subr.bf16.mxu0 0
    %506 = vmatpush1.bf16.msra.mxu0 0
    %507 = vmatprep.subr.bf16.mxu0 0
    %508 = vmatpush1.bf16.msra.mxu0 0
    %509 = vmatprep.subr.bf16.mxu0 0
    %510 = vmatpush1.bf16.msra.mxu0 0
    %511 = vmatprep.subr.bf16.mxu0 0
    %512 = vmatpush1.bf16.msra.mxu0 0
    %513 = vmatprep.subr.bf16.mxu0 0
    %514 = vmatpush1.bf16.msra.mxu0 0
    %515 = vmatprep.subr.bf16.mxu0 0
    %516 = vmatpush1.bf16.msra.mxu0 0
    %517 = vmatprep.subr.bf16.mxu0 0
    %518 = vmatpush1.bf16.msra.mxu0 0
    %519 = vmatprep.subr.bf16.mxu0 0
    %520 = vmatpush1.bf16.msra.mxu0 0
    %521 = vmatprep.subr.bf16.mxu0 0
    %522 = vmatpush1.bf16.msra.mxu0 0
    %523 = vmatprep.subr.bf16.mxu0 0
    %524 = vmatpush1.bf16.msra.mxu0 0
    %525 = vmatprep.subr.bf16.mxu0 0
    %526 = vmatpush1.bf16.msra.mxu0 0
    %527 = vmatprep.subr.bf16.mxu0 0
    %528 = vmatpush1.bf16.msra.mxu0 0
    %529 = vmatprep.subr.bf16.mxu0 0
    %530 = vmatpush1.bf16.msra.mxu0 0
    %531 = vmatprep.mubr.bf16.mxu0 0
    %532 = vmatmul.mubr.bf16.gmra.mrb[0].mxu0 %v497
    %v533 = vpop.f32.mrb[0].mxu0
    %v534 = vadd.f32 0.0, %v533
    %v535 = vpop.f32.mrb[0].mxu0
    %v536 = vpop.f32.mrb[0].mxu0
    %v537 = vpop.f32.mrb[0].mxu0
    %538 = vdwg.mxu0
    %s539 = scalar_lea.vmem [#allocation3], 8
    %v540 = vld [vmem:[%s539] sm:$0xff]
    %v541 = vadd.f32 %v540, %v534
    %v542 = vxor.u32 %v541, 2147483648
    %v543 = vmul.f32 %v542, 1.442695
    %v544 = vpow.pop %v543
    %v545 = vadd.f32 %v544, 1.0
    %v546 = vrcp.pop %v545
    %v547 = vmul.f32 1.0, %v546
    %v548 = vtanh.pop %v541
    %v549 = vmul.f32 %v547, %v478
    %551 = vrot.lane.b32.xlu0 %v548, 64
    %v552 = vpop.permute.xlu0 %551
    %v554 = vmul.f32 %v547, %v552
    %556 = vrot.lane.b32.xlu0 %v554, 32
    %v557 = vpop.permute.xlu0 %556
    %v559 = vadd.f32 %v549, %v557
    %v560 = vtanh.pop %v559
    %562 = vrot.lane.b32.xlu0 %v560, 64
    %v563 = vpop.permute.xlu0 %562
    %v565 = vmul.f32 %v547, %v563
    %v566 = vpack.c.bf16 %v565, %v565
    %v568 = vunpack.c.l.b16 %v566
    %v569 = vpack.c.b16 %v568, %v568
    %570 = vrot.lane.b32.xlu0 %v569, 32
    %v571 = vpop.permute.xlu0 %570
    %s573 = scalar_lea.vmem [#allocation2], 4
    %574 = vst.msk [vmem:[%s573] sm:$0xf] %vm492, %v571
    %575 = vrot.lane.b32.xlu0 %v566, 32
    %v576 = vpop.permute.xlu0 %575
    %v578 = vsel %vm415, %v576, 0
    %580 = vmatprep.subr.bf16.mxu0 0
    %581 = vmatpush1.bf16.msra.mxu0 %v411
    %582 = vmatprep.subr.bf16.mxu0 0
    %583 = vmatpush1.bf16.msra.mxu0 %v412
    %584 = vmatprep.subr.bf16.mxu0 0
    %585 = vmatpush1.bf16.msra.mxu0 0
    %586 = vmatprep.subr.bf16.mxu0 0
    %587 = vmatpush1.bf16.msra.mxu0 0
    %588 = vmatprep.subr.bf16.mxu0 0
    %589 = vmatpush1.bf16.msra.mxu0 0
    %590 = vmatprep.subr.bf16.mxu0 0
    %591 = vmatpush1.bf16.msra.mxu0 0
    %592 = vmatprep.subr.bf16.mxu0 0
    %593 = vmatpush1.bf16.msra.mxu0 0
    %594 = vmatprep.subr.bf16.mxu0 0
    %595 = vmatpush1.bf16.msra.mxu0 0
    %596 = vmatprep.subr.bf16.mxu0 0
    %597 = vmatpush1.bf16.msra.mxu0 0
    %598 = vmatprep.subr.bf16.mxu0 0
    %599 = vmatpush1.bf16.msra.mxu0 0
    %600 = vmatprep.subr.bf16.mxu0 0
    %601 = vmatpush1.bf16.msra.mxu0 0
    %602 = vmatprep.subr.bf16.mxu0 0
    %603 = vmatpush1.bf16.msra.mxu0 0
    %604 = vmatprep.subr.bf16.mxu0 0
    %605 = vmatpush1.bf16.msra.mxu0 0
    %606 = vmatprep.subr.bf16.mxu0 0
    %607 = vmatpush1.bf16.msra.mxu0 0
    %608 = vmatprep.subr.bf16.mxu0 0
    %609 = vmatpush1.bf16.msra.mxu0 0
    %610 = vmatprep.subr.bf16.mxu0 0
    %611 = vmatpush1.bf16.msra.mxu0 0
    %612 = vmatprep.mubr.bf16.mxu0 0
    %613 = vmatmul.mubr.bf16.gmra.mrb[0].mxu0 %v578
    %v614 = vpop.f32.mrb[0].mxu0
    %v615 = vadd.f32 0.0, %v614
    %v616 = vpop.f32.mrb[0].mxu0
    %v617 = vpop.f32.mrb[0].mxu0
    %v618 = vpop.f32.mrb[0].mxu0
    %619 = vdwg.mxu0
    %s620 = scalar_lea.vmem [#allocation3], 16
    %v621 = vld [vmem:[%s620] sm:$0xff]
    %v622 = vadd.f32 %v621, %v615
    %v623 = vxor.u32 %v622, 2147483648
    %v624 = vmul.f32 %v623, 1.442695
    %v625 = vpow.pop %v624
    %v626 = vadd.f32 %v625, 1.0
    %v627 = vrcp.pop %v626
    %v628 = vmul.f32 1.0, %v627
    %v629 = vtanh.pop %v622
    %v630 = vmul.f32 %v628, %v559
    %632 = vrot.lane.b32.xlu0 %v629, 64
    %v633 = vpop.permute.xlu0 %632
    %v635 = vmul.f32 %v628, %v633
    %637 = vrot.lane.b32.xlu0 %v635, 32
    %v638 = vpop.permute.xlu0 %637
    %v640 = vadd.f32 %v630, %v638
    %v641 = vtanh.pop %v640
    %643 = vrot.lane.b32.xlu0 %v641, 64
    %v644 = vpop.permute.xlu0 %643
    %v646 = vmul.f32 %v628, %v644
    %v647 = vpack.c.bf16 %v646, %v646
    %v649 = vunpack.c.l.b16 %v647
    %v650 = vpack.c.b16 %v649, %v649
    %651 = vrot.lane.b32.xlu0 %v650, 32
    %v652 = vpop.permute.xlu0 %651
    %s654 = scalar_lea.vmem [#allocation2], 8
    %655 = vst.msk [vmem:[%s654] sm:$0xf] %vm492, %v652
    %656 = vrot.lane.b32.xlu0 %v647, 32
    %v657 = vpop.permute.xlu0 %656
    %v659 = vsel %vm415, %v657, 0
    %661 = vmatprep.subr.bf16.mxu0 0
    %662 = vmatpush1.bf16.msra.mxu0 %v411
    %663 = vmatprep.subr.bf16.mxu0 0
    %664 = vmatpush1.bf16.msra.mxu0 %v412
    %665 = vmatprep.subr.bf16.mxu0 0
    %666 = vmatpush1.bf16.msra.mxu0 0
    %667 = vmatprep.subr.bf16.mxu0 0
    %668 = vmatpush1.bf16.msra.mxu0 0
    %669 = vmatprep.subr.bf16.mxu0 0
    %670 = vmatpush1.bf16.msra.mxu0 0
    %671 = vmatprep.subr.bf16.mxu0 0
    %672 = vmatpush1.bf16.msra.mxu0 0
    %673 = vmatprep.subr.bf16.mxu0 0
    %674 = vmatpush1.bf16.msra.mxu0 0
    %675 = vmatprep.subr.bf16.mxu0 0
    %676 = vmatpush1.bf16.msra.mxu0 0
    %677 = vmatprep.subr.bf16.mxu0 0
    %678 = vmatpush1.bf16.msra.mxu0 0
    %679 = vmatprep.subr.bf16.mxu0 0
    %680 = vmatpush1.bf16.msra.mxu0 0
    %681 = vmatprep.subr.bf16.mxu0 0
    %682 = vmatpush1.bf16.msra.mxu0 0
    %683 = vmatprep.subr.bf16.mxu0 0
    %684 = vmatpush1.bf16.msra.mxu0 0
    %685 = vmatprep.subr.bf16.mxu0 0
    %686 = vmatpush1.bf16.msra.mxu0 0
    %687 = vmatprep.subr.bf16.mxu0 0
    %688 = vmatpush1.bf16.msra.mxu0 0
    %689 = vmatprep.subr.bf16.mxu0 0
    %690 = vmatpush1.bf16.msra.mxu0 0
    %691 = vmatprep.subr.bf16.mxu0 0
    %692 = vmatpush1.bf16.msra.mxu0 0
    %693 = vmatprep.mubr.bf16.mxu0 0
    %694 = vmatmul.mubr.bf16.gmra.mrb[0].mxu0 %v659
    %v695 = vpop.f32.mrb[0].mxu0
    %v696 = vadd.f32 0.0, %v695
    %v697 = vpop.f32.mrb[0].mxu0
    %v698 = vpop.f32.mrb[0].mxu0
    %v699 = vpop.f32.mrb[0].mxu0
    %700 = vdwg.mxu0
    %s701 = scalar_lea.vmem [#allocation3], 24
    %v702 = vld [vmem:[%s701] sm:$0xff]
    %v703 = vadd.f32 %v702, %v696
    %v704 = vxor.u32 %v703, 2147483648
    %v705 = vmul.f32 %v704, 1.442695
    %v706 = vpow.pop %v705
    %v707 = vadd.f32 %v706, 1.0
    %v708 = vrcp.pop %v707
    %v709 = vmul.f32 1.0, %v708
    %v710 = vtanh.pop %v703
    %v711 = vmul.f32 %v709, %v640
    %713 = vrot.lane.b32.xlu0 %v710, 64
    %v714 = vpop.permute.xlu0 %713
    %v716 = vmul.f32 %v709, %v714
    %718 = vrot.lane.b32.xlu0 %v716, 32
    %v719 = vpop.permute.xlu0 %718
    %v721 = vadd.f32 %v711, %v719
    %v722 = vtanh.pop %v721
    %724 = vrot.lane.b32.xlu0 %v722, 64
    %v725 = vpop.permute.xlu0 %724
    %v727 = vmul.f32 %v709, %v725
    %v728 = vpack.c.bf16 %v727, %v727
    %v730 = vunpack.c.l.b16 %v728
    %v731 = vpack.c.b16 %v730, %v730
    %732 = vrot.lane.b32.xlu0 %v731, 32
    %v733 = vpop.permute.xlu0 %732
    %s735 = scalar_lea.vmem [#allocation2], 12
    %736 = vst.msk [vmem:[%s735] sm:$0xf] %vm492, %v733
    %737 = vrot.lane.b32.xlu0 %v728, 32
    %v738 = vpop.permute.xlu0 %737
    %v740 = vsel %vm415, %v738, 0
    %742 = vmatprep.subr.bf16.mxu0 0
    %743 = vmatpush1.bf16.msra.mxu0 %v411
    %744 = vmatprep.subr.bf16.mxu0 0
    %745 = vmatpush1.bf16.msra.mxu0 %v412
    %746 = vmatprep.subr.bf16.mxu0 0
    %747 = vmatpush1.bf16.msra.mxu0 0
    %748 = vmatprep.subr.bf16.mxu0 0
    %749 = vmatpush1.bf16.msra.mxu0 0
    %750 = vmatprep.subr.bf16.mxu0 0
    %751 = vmatpush1.bf16.msra.mxu0 0
    %752 = vmatprep.subr.bf16.mxu0 0
    %753 = vmatpush1.bf16.msra.mxu0 0
    %754 = vmatprep.subr.bf16.mxu0 0
    %755 = vmatpush1.bf16.msra.mxu0 0
    %756 = vmatprep.subr.bf16.mxu0 0
    %757 = vmatpush1.bf16.msra.mxu0 0
    %758 = vmatprep.subr.bf16.mxu0 0
    %759 = vmatpush1.bf16.msra.mxu0 0
    %760 = vmatprep.subr.bf16.mxu0 0
    %761 = vmatpush1.bf16.msra.mxu0 0
    %762 = vmatprep.subr.bf16.mxu0 0
    %763 = vmatpush1.bf16.msra.mxu0 0
    %764 = vmatprep.subr.bf16.mxu0 0
    %765 = vmatpush1.bf16.msra.mxu0 0
    %766 = vmatprep.subr.bf16.mxu0 0
    %767 = vmatpush1.bf16.msra.mxu0 0
    %768 = vmatprep.subr.bf16.mxu0 0
    %769 = vmatpush1.bf16.msra.mxu0 0
    %770 = vmatprep.subr.bf16.mxu0 0
    %771 = vmatpush1.bf16.msra.mxu0 0
    %772 = vmatprep.subr.bf16.mxu0 0
    %773 = vmatpush1.bf16.msra.mxu0 0
    %774 = vmatprep.mubr.bf16.mxu0 0
    %775 = vmatmul.mubr.bf16.gmra.mrb[0].mxu0 %v740
    %v776 = vpop.f32.mrb[0].mxu0
    %v777 = vadd.f32 0.0, %v776
    %v778 = vpop.f32.mrb[0].mxu0
    %v779 = vpop.f32.mrb[0].mxu0
    %v780 = vpop.f32.mrb[0].mxu0
    %781 = vdwg.mxu0
    %s782 = scalar_lea.vmem [#allocation3], 32
    %v783 = vld [vmem:[%s782] sm:$0xff]
    %v784 = vadd.f32 %v783, %v777
    %v785 = vxor.u32 %v784, 2147483648
    %v786 = vmul.f32 %v785, 1.442695
    %v787 = vpow.pop %v786
    %v788 = vadd.f32 %v787, 1.0
    %v789 = vrcp.pop %v788
    %v790 = vmul.f32 1.0, %v789
    %v791 = vtanh.pop %v784
    %v792 = vmul.f32 %v790, %v721
    %794 = vrot.lane.b32.xlu0 %v791, 64
    %v795 = vpop.permute.xlu0 %794
    %v797 = vmul.f32 %v790, %v795
    %799 = vrot.lane.b32.xlu0 %v797, 32
    %v800 = vpop.permute.xlu0 %799
    %v802 = vadd.f32 %v792, %v800
    %v803 = vtanh.pop %v802
    %805 = vrot.lane.b32.xlu0 %v803, 64
    %v806 = vpop.permute.xlu0 %805
    %v808 = vmul.f32 %v790, %v806
    %v809 = vpack.c.bf16 %v808, %v808
    %v811 = vunpack.c.l.b16 %v809
    %v812 = vpack.c.b16 %v811, %v811
    %813 = vrot.lane.b32.xlu0 %v812, 32
    %v814 = vpop.permute.xlu0 %813
    %s816 = scalar_lea.vmem [#allocation2], 16
    %817 = vst.msk [vmem:[%s816] sm:$0xf] %vm492, %v814
    %818 = vrot.lane.b32.xlu0 %v809, 32
    %v819 = vpop.permute.xlu0 %818
    %v821 = vsel %vm415, %v819, 0
    %823 = vmatprep.subr.bf16.mxu0 0
    %824 = vmatpush1.bf16.msra.mxu0 %v411
    %825 = vmatprep.subr.bf16.mxu0 0
    %826 = vmatpush1.bf16.msra.mxu0 %v412
    %827 = vmatprep.subr.bf16.mxu0 0
    %828 = vmatpush1.bf16.msra.mxu0 0
    %829 = vmatprep.subr.bf16.mxu0 0
    %830 = vmatpush1.bf16.msra.mxu0 0
    %831 = vmatprep.subr.bf16.mxu0 0
    %832 = vmatpush1.bf16.msra.mxu0 0
    %833 = vmatprep.subr.bf16.mxu0 0
    %834 = vmatpush1.bf16.msra.mxu0 0
    %835 = vmatprep.subr.bf16.mxu0 0
    %836 = vmatpush1.bf16.msra.mxu0 0
    %837 = vmatprep.subr.bf16.mxu0 0
    %838 = vmatpush1.bf16.msra.mxu0 0
    %839 = vmatprep.subr.bf16.mxu0 0
    %840 = vmatpush1.bf16.msra.mxu0 0
    %841 = vmatprep.subr.bf16.mxu0 0
    %842 = vmatpush1.bf16.msra.mxu0 0
    %843 = vmatprep.subr.bf16.mxu0 0
    %844 = vmatpush1.bf16.msra.mxu0 0
    %845 = vmatprep.subr.bf16.mxu0 0
    %846 = vmatpush1.bf16.msra.mxu0 0
    %847 = vmatprep.subr.bf16.mxu0 0
    %848 = vmatpush1.bf16.msra.mxu0 0
    %849 = vmatprep.subr.bf16.mxu0 0
    %850 = vmatpush1.bf16.msra.mxu0 0
    %851 = vmatprep.subr.bf16.mxu0 0
    %852 = vmatpush1.bf16.msra.mxu0 0
    %853 = vmatprep.subr.bf16.mxu0 0
    %854 = vmatpush1.bf16.msra.mxu0 0
    %855 = vmatprep.mubr.bf16.mxu0 0
    %856 = vmatmul.mubr.bf16.gmra.mrb[0].mxu0 %v821
    %v857 = vpop.f32.mrb[0].mxu0
    %v858 = vadd.f32 0.0, %v857
    %v859 = vpop.f32.mrb[0].mxu0
    %v860 = vpop.f32.mrb[0].mxu0
    %v861 = vpop.f32.mrb[0].mxu0
    %862 = vdwg.mxu0
    %s863 = scalar_lea.vmem [#allocation3], 40
    %v864 = vld [vmem:[%s863] sm:$0xff]
    %v865 = vadd.f32 %v864, %v858
    %v866 = vxor.u32 %v865, 2147483648
    %v867 = vmul.f32 %v866, 1.442695
    %v868 = vpow.pop %v867
    %v869 = vadd.f32 %v868, 1.0
    %v870 = vrcp.pop %v869
    %v871 = vmul.f32 1.0, %v870
    %v872 = vtanh.pop %v865
    %v873 = vmul.f32 %v871, %v802
    %875 = vrot.lane.b32.xlu0 %v872, 64
    %v876 = vpop.permute.xlu0 %875
    %v878 = vmul.f32 %v871, %v876
    %880 = vrot.lane.b32.xlu0 %v878, 32
    %v881 = vpop.permute.xlu0 %880
    %v883 = vadd.f32 %v873, %v881
    %v884 = vtanh.pop %v883
    %886 = vrot.lane.b32.xlu0 %v884, 64
    %v887 = vpop.permute.xlu0 %886
    %v889 = vmul.f32 %v871, %v887
    %v890 = vpack.c.bf16 %v889, %v889
    %v892 = vunpack.c.l.b16 %v890
    %v893 = vpack.c.b16 %v892, %v892
    %894 = vrot.lane.b32.xlu0 %v893, 32
    %v895 = vpop.permute.xlu0 %894
    %s897 = scalar_lea.vmem [#allocation2], 20
    %898 = vst.msk [vmem:[%s897] sm:$0xf] %vm492, %v895
    %899 = vrot.lane.b32.xlu0 %v890, 32
    %v900 = vpop.permute.xlu0 %899
    %v902 = vsel %vm415, %v900, 0
    %904 = vmatprep.subr.bf16.mxu0 0
    %905 = vmatpush1.bf16.msra.mxu0 %v411
    %906 = vmatprep.subr.bf16.mxu0 0
    %907 = vmatpush1.bf16.msra.mxu0 %v412
    %908 = vmatprep.subr.bf16.mxu0 0
    %909 = vmatpush1.bf16.msra.mxu0 0
    %910 = vmatprep.subr.bf16.mxu0 0
    %911 = vmatpush1.bf16.msra.mxu0 0
    %912 = vmatprep.subr.bf16.mxu0 0
    %913 = vmatpush1.bf16.msra.mxu0 0
    %914 = vmatprep.subr.bf16.mxu0 0
    %915 = vmatpush1.bf16.msra.mxu0 0
    %916 = vmatprep.subr.bf16.mxu0 0
    %917 = vmatpush1.bf16.msra.mxu0 0
    %918 = vmatprep.subr.bf16.mxu0 0
    %919 = vmatpush1.bf16.msra.mxu0 0
    %920 = vmatprep.subr.bf16.mxu0 0
    %921 = vmatpush1.bf16.msra.mxu0 0
    %922 = vmatprep.subr.bf16.mxu0 0
    %923 = vmatpush1.bf16.msra.mxu0 0
    %924 = vmatprep.subr.bf16.mxu0 0
    %925 = vmatpush1.bf16.msra.mxu0 0
    %926 = vmatprep.subr.bf16.mxu0 0
    %927 = vmatpush1.bf16.msra.mxu0 0
    %928 = vmatprep.subr.bf16.mxu0 0
    %929 = vmatpush1.bf16.msra.mxu0 0
    %930 = vmatprep.subr.bf16.mxu0 0
    %931 = vmatpush1.bf16.msra.mxu0 0
    %932 = vmatprep.subr.bf16.mxu0 0
    %933 = vmatpush1.bf16.msra.mxu0 0
    %934 = vmatprep.subr.bf16.mxu0 0
    %935 = vmatpush1.bf16.msra.mxu0 0
    %936 = vmatprep.mubr.bf16.mxu0 0
    %937 = vmatmul.mubr.bf16.gmra.mrb[0].mxu0 %v902
    %v938 = vpop.f32.mrb[0].mxu0
    %v939 = vadd.f32 0.0, %v938
    %v940 = vpop.f32.mrb[0].mxu0
    %v941 = vpop.f32.mrb[0].mxu0
    %v942 = vpop.f32.mrb[0].mxu0
    %943 = vdwg.mxu0
    %s944 = scalar_lea.vmem [#allocation3], 48
    %v945 = vld [vmem:[%s944] sm:$0xff]
    %v946 = vadd.f32 %v945, %v939
    %v947 = vxor.u32 %v946, 2147483648
    %v948 = vmul.f32 %v947, 1.442695
    %v949 = vpow.pop %v948
    %v950 = vadd.f32 %v949, 1.0
    %v951 = vrcp.pop %v950
    %v952 = vmul.f32 1.0, %v951
    %v953 = vtanh.pop %v946
    %v954 = vmul.f32 %v952, %v883
    %956 = vrot.lane.b32.xlu0 %v953, 64
    %v957 = vpop.permute.xlu0 %956
    %v959 = vmul.f32 %v952, %v957
    %961 = vrot.lane.b32.xlu0 %v959, 32
    %v962 = vpop.permute.xlu0 %961
    %v964 = vadd.f32 %v954, %v962
    %v965 = vtanh.pop %v964
    %967 = vrot.lane.b32.xlu0 %v965, 64
    %v968 = vpop.permute.xlu0 %967
    %v970 = vmul.f32 %v952, %v968
    %v971 = vpack.c.bf16 %v970, %v970
    %v973 = vunpack.c.l.b16 %v971
    %v974 = vpack.c.b16 %v973, %v973
    %975 = vrot.lane.b32.xlu0 %v974, 32
    %v976 = vpop.permute.xlu0 %975
    %s978 = scalar_lea.vmem [#allocation2], 24
    %979 = vst.msk [vmem:[%s978] sm:$0xf] %vm492, %v976
    %980 = vrot.lane.b32.xlu0 %v971, 32
    %v981 = vpop.permute.xlu0 %980
    %v983 = vsel %vm415, %v981, 0
    %985 = vmatprep.subr.bf16.mxu0 0
    %986 = vmatpush1.bf16.msra.mxu0 %v411
    %987 = vmatprep.subr.bf16.mxu0 0
    %988 = vmatpush1.bf16.msra.mxu0 %v412
    %989 = vmatprep.subr.bf16.mxu0 0
    %990 = vmatpush1.bf16.msra.mxu0 0
    %991 = vmatprep.subr.bf16.mxu0 0
    %992 = vmatpush1.bf16.msra.mxu0 0
    %993 = vmatprep.subr.bf16.mxu0 0
    %994 = vmatpush1.bf16.msra.mxu0 0
    %995 = vmatprep.subr.bf16.mxu0 0
    %996 = vmatpush1.bf16.msra.mxu0 0
    %997 = vmatprep.subr.bf16.mxu0 0
    %998 = vmatpush1.bf16.msra.mxu0 0
    %999 = vmatprep.subr.bf16.mxu0 0
    %1000 = vmatpush1.bf16.msra.mxu0 0
    %1001 = vmatprep.subr.bf16.mxu0 0
    %1002 = vmatpush1.bf16.msra.mxu0 0
    %1003 = vmatprep.subr.bf16.mxu0 0
    %1004 = vmatpush1.bf16.msra.mxu0 0
    %1005 = vmatprep.subr.bf16.mxu0 0
    %1006 = vmatpush1.bf16.msra.mxu0 0
    %1007 = vmatprep.subr.bf16.mxu0 0
    %1008 = vmatpush1.bf16.msra.mxu0 0
    %1009 = vmatprep.subr.bf16.mxu0 0
    %1010 = vmatpush1.bf16.msra.mxu0 0
    %1011 = vmatprep.subr.bf16.mxu0 0
    %1012 = vmatpush1.bf16.msra.mxu0 0
    %1013 = vmatprep.subr.bf16.mxu0 0
    %1014 = vmatpush1.bf16.msra.mxu0 0
    %1015 = vmatprep.subr.bf16.mxu0 0
    %1016 = vmatpush1.bf16.msra.mxu0 0
    %1017 = vmatprep.mubr.bf16.mxu0 0
    %1018 = vmatmul.mubr.bf16.gmra.mrb[0].mxu0 %v983
    %v1019 = vpop.f32.mrb[0].mxu0
    %v1020 = vadd.f32 0.0, %v1019
    %v1021 = vpop.f32.mrb[0].mxu0
    %v1022 = vpop.f32.mrb[0].mxu0
    %v1023 = vpop.f32.mrb[0].mxu0
    %1024 = vdwg.mxu0
    %s1025 = scalar_lea.vmem [#allocation3], 56
    %v1026 = vld [vmem:[%s1025] sm:$0xff]
    %v1027 = vadd.f32 %v1026, %v1020
    %v1028 = vxor.u32 %v1027, 2147483648
    %v1029 = vmul.f32 %v1028, 1.442695
    %v1030 = vpow.pop %v1029
    %v1031 = vadd.f32 %v1030, 1.0
    %v1032 = vrcp.pop %v1031
    %v1033 = vmul.f32 1.0, %v1032
    %v1034 = vtanh.pop %v1027
    %v1035 = vmul.f32 %v1033, %v964
    %1037 = vrot.lane.b32.xlu0 %v1034, 64
    %v1038 = vpop.permute.xlu0 %1037
    %v1040 = vmul.f32 %v1033, %v1038
    %1042 = vrot.lane.b32.xlu0 %v1040, 32
    %v1043 = vpop.permute.xlu0 %1042
    %v1045 = vadd.f32 %v1035, %v1043
    %v1046 = vtanh.pop %v1045
    %1048 = vrot.lane.b32.xlu0 %v1046, 64
    %v1049 = vpop.permute.xlu0 %1048
    %v1051 = vmul.f32 %v1033, %v1049
    %v1052 = vpack.c.bf16 %v1051, %v1051
    %v1054 = vunpack.c.l.b16 %v1052
    %v1055 = vpack.c.b16 %v1054, %v1054
    %1056 = vrot.lane.b32.xlu0 %v1055, 32
    %v1057 = vpop.permute.xlu0 %1056
    %s1059 = scalar_lea.vmem [#allocation2], 28
    %1060 = vst.msk [vmem:[%s1059] sm:$0xf] %vm492, %v1057
    %v1061 = vld [vmem:[#allocation2] sm:$0xf]
    %v1062 = vld [vmem:[#allocation2 + $0x4] sm:$0xf]
    %v1063 = vld [vmem:[#allocation2 + $0x8] sm:$0xf]
    %v1064 = vld [vmem:[#allocation2 + $0xc] sm:$0xf]
    %v1065 = vld [vmem:[#allocation2 + $0x10] sm:$0xf]
    %v1066 = vld [vmem:[#allocation2 + $0x14] sm:$0xf]
    %v1067 = vld [vmem:[#allocation2 + $0x18] sm:$0xf]
    %v1068 = vld [vmem:[#allocation2 + $0x1c] sm:$0xf]
    %v1069 = vld [vmem:[#allocation12] sm:$0xf]
    %v1070 = vld [vmem:[#allocation12 + $0x4] sm:$0xf]
    %v1071 = vld [vmem:[#allocation12 + $0x8] sm:$0xf]
    %v1072 = vld [vmem:[#allocation12 + $0xc] sm:$0xf]
    %v1073 = vld [vmem:[#allocation15] sm:$0x1]
    %v1075 = vlaneseq
    %v1076 = vshrl.u32 %v1075, 7
    %v1077 = vsub.s32 0, %v1076
    %v1078 = vrot.slane %v1073, %v1077
    %v1088 = vunpack.c.l.b16 %v1061
    %v1089 = vunpack.c.l.b16 %v1062
    %v1090 = vunpack.c.l.b16 %v1063
    %v1091 = vunpack.c.l.b16 %v1064
    %v1092 = vunpack.c.l.b16 %v1065
    %v1093 = vunpack.c.l.b16 %v1066
    %v1094 = vunpack.c.l.b16 %v1067
    %v1095 = vunpack.c.l.b16 %v1068
    %v1096 = vpack.c.b16 %v1089, %v1088
    %v1097 = vpack.c.b16 %v1091, %v1090
    %v1098 = vpack.c.b16 %v1093, %v1092
    %v1099 = vpack.c.b16 %v1095, %v1094
    %v1104 = vunpack.c.l.b16 %v1069
    %v1105 = vunpack.c.l.b16 %v1070
    %v1106 = vunpack.c.l.b16 %v1071
    %v1107 = vunpack.c.l.b16 %v1072
    %v1108 = vpack.c.b16 %v1105, %v1104
    %v1109 = vpack.c.b16 %v1107, %v1106
    %v1113 = vsel %vm415, %v1096, 0
    %v1116 = vsel %vm415, %v1097, 0
    %v1119 = vsel %vm415, %v1098, 0
    %v1122 = vsel %vm415, %v1099, 0
    %1124 = vmatprep.subr.bf16.mxu0 0
    %1125 = vmatpush1.bf16.msra.mxu0 %v1108
    %1126 = vmatprep.subr.bf16.mxu0 0
    %1127 = vmatpush1.bf16.msra.mxu0 %v1109
    %1128 = vmatprep.subr.bf16.mxu0 0
    %1129 = vmatpush1.bf16.msra.mxu0 0
    %1130 = vmatprep.subr.bf16.mxu0 0
    %1131 = vmatpush1.bf16.msra.mxu0 0
    %1132 = vmatprep.subr.bf16.mxu0 0
    %1133 = vmatpush1.bf16.msra.mxu0 0
    %1134 = vmatprep.subr.bf16.mxu0 0
    %1135 = vmatpush1.bf16.msra.mxu0 0
    %1136 = vmatprep.subr.bf16.mxu0 0
    %1137 = vmatpush1.bf16.msra.mxu0 0
    %1138 = vmatprep.subr.bf16.mxu0 0
    %1139 = vmatpush1.bf16.msra.mxu0 0
    %1140 = vmatprep.subr.bf16.mxu0 0
    %1141 = vmatpush1.bf16.msra.mxu0 0
    %1142 = vmatprep.subr.bf16.mxu0 0
    %1143 = vmatpush1.bf16.msra.mxu0 0
    %1144 = vmatprep.subr.bf16.mxu0 0
    %1145 = vmatpush1.bf16.msra.mxu0 0
    %1146 = vmatprep.subr.bf16.mxu0 0
    %1147 = vmatpush1.bf16.msra.mxu0 0
    %1148 = vmatprep.subr.bf16.mxu0 0
    %1149 = vmatpush1.bf16.msra.mxu0 0
    %1150 = vmatprep.subr.bf16.mxu0 0
    %1151 = vmatpush1.bf16.msra.mxu0 0
    %1152 = vmatprep.subr.bf16.mxu0 0
    %1153 = vmatpush1.bf16.msra.mxu0 0
    %1154 = vmatprep.subr.bf16.mxu0 0
    %1155 = vmatpush1.bf16.msra.mxu0 0
    %1156 = vmatprep.mubr.bf16.mxu0 0
    %1157 = vmatmul.mubr.bf16.gmra.mrb[0].mxu0 %v1113
    %v1158 = vpop.f32.mrb[0].mxu0
    %v1159 = vadd.f32 %v1078, %v1158
    %v1160 = vpop.f32.mrb[0].mxu0
    %v1161 = vpop.f32.mrb[0].mxu0
    %v1162 = vadd.f32 %v1078, %v1161
    %v1163 = vpop.f32.mrb[0].mxu0
    %1164 = vmatprep.mubr.bf16.mxu0 0
    %1165 = vmatmul.mubr.bf16.gmra.mrb[0].mxu0 %v1116
    %v1166 = vpop.f32.mrb[0].mxu0
    %v1167 = vadd.f32 %v1078, %v1166
    %v1168 = vpop.f32.mrb[0].mxu0
    %v1169 = vpop.f32.mrb[0].mxu0
    %v1170 = vadd.f32 %v1078, %v1169
    %v1171 = vpop.f32.mrb[0].mxu0
    %1172 = vmatprep.mubr.bf16.mxu0 0
    %1173 = vmatmul.mubr.bf16.gmra.mrb[0].mxu0 %v1119
    %v1174 = vpop.f32.mrb[0].mxu0
    %v1175 = vadd.f32 %v1078, %v1174
    %v1176 = vpop.f32.mrb[0].mxu0
    %v1177 = vpop.f32.mrb[0].mxu0
    %v1178 = vadd.f32 %v1078, %v1177
    %v1179 = vpop.f32.mrb[0].mxu0
    %1180 = vmatprep.mubr.bf16.mxu0 0
    %1181 = vmatmul.mubr.bf16.gmra.mrb[0].mxu0 %v1122
    %v1182 = vpop.f32.mrb[0].mxu0
    %v1183 = vadd.f32 %v1078, %v1182
    %v1184 = vpop.f32.mrb[0].mxu0
    %v1185 = vpop.f32.mrb[0].mxu0
    %v1186 = vadd.f32 %v1078, %v1185
    %v1187 = vpop.f32.mrb[0].mxu0
    %1188 = vdwg.mxu0
    %1189 = vst [vmem:[#allocation3] sm:$0xff] %v1159
    %1190 = vst [vmem:[#allocation3 + $0x8] sm:$0xff] %v1162
    %1191 = vst [vmem:[#allocation3 + $0x10] sm:$0xff] %v1167
    %1192 = vst [vmem:[#allocation3 + $0x18] sm:$0xff] %v1170
    %1193 = vst [vmem:[#allocation3 + $0x20] sm:$0xff] %v1175
    %1194 = vst [vmem:[#allocation3 + $0x28] sm:$0xff] %v1178
    %1195 = vst [vmem:[#allocation3 + $0x30] sm:$0xff] %v1183
    %1196 = vst [vmem:[#allocation3 + $0x38] sm:$0xff] %v1186
    %v1197 = vld [vmem:[#allocation13] sm:$0xf]
    %v1198 = vld [vmem:[#allocation13 + $0x4] sm:$0xf]
    %v1199 = vld [vmem:[#allocation13 + $0x8] sm:$0xf]
    %v1200 = vld [vmem:[#allocation13 + $0xc] sm:$0xf]
    %v1205 = vunpack.c.l.b16 %v1197
    %v1206 = vunpack.c.l.b16 %v1198
    %v1207 = vunpack.c.l.b16 %v1199
    %v1208 = vunpack.c.l.b16 %v1200
    %v1209 = vpack.c.b16 %v1206, %v1205
    %v1210 = vpack.c.b16 %v1208, %v1207
    %1213 = vmatprep.subr.bf16.mxu0 0
    %1214 = vmatpush1.bf16.msra.mxu0 %v1209
    %1215 = vmatprep.subr.bf16.mxu0 0
    %1216 = vmatpush1.bf16.msra.mxu0 %v1210
    %1217 = vmatprep.subr.bf16.mxu0 0
    %1218 = vmatpush1.bf16.msra.mxu0 0
    %1219 = vmatprep.subr.bf16.mxu0 0
    %1220 = vmatpush1.bf16.msra.mxu0 0
    %1221 = vmatprep.subr.bf16.mxu0 0
    %1222 = vmatpush1.bf16.msra.mxu0 0
    %1223 = vmatprep.subr.bf16.mxu0 0
    %1224 = vmatpush1.bf16.msra.mxu0 0
    %1225 = vmatprep.subr.bf16.mxu0 0
    %1226 = vmatpush1.bf16.msra.mxu0 0
    %1227 = vmatprep.subr.bf16.mxu0 0
    %1228 = vmatpush1.bf16.msra.mxu0 0
    %1229 = vmatprep.subr.bf16.mxu0 0
    %1230 = vmatpush1.bf16.msra.mxu0 0
    %1231 = vmatprep.subr.bf16.mxu0 0
    %1232 = vmatpush1.bf16.msra.mxu0 0
    %1233 = vmatprep.subr.bf16.mxu0 0
    %1234 = vmatpush1.bf16.msra.mxu0 0
    %1235 = vmatprep.subr.bf16.mxu0 0
    %1236 = vmatpush1.bf16.msra.mxu0 0
    %1237 = vmatprep.subr.bf16.mxu0 0
    %1238 = vmatpush1.bf16.msra.mxu0 0
    %1239 = vmatprep.subr.bf16.mxu0 0
    %1240 = vmatpush1.bf16.msra.mxu0 0
    %1241 = vmatprep.subr.bf16.mxu0 0
    %1242 = vmatpush1.bf16.msra.mxu0 0
    %1243 = vmatprep.subr.bf16.mxu0 0
    %1244 = vmatpush1.bf16.msra.mxu0 0
    %1245 = vmatprep.mubr.bf16.mxu0 0
    %1246 = vmatmul.mubr.bf16.gmra.mrb[0].mxu0 %v417
    %v1247 = vpop.f32.mrb[0].mxu0
    %v1248 = vadd.f32 0.0, %v1247
    %v1249 = vpop.f32.mrb[0].mxu0
    %v1250 = vpop.f32.mrb[0].mxu0
    %v1251 = vpop.f32.mrb[0].mxu0
    %1252 = vdwg.mxu0
    %v1253 = vld [vmem:[#allocation3] sm:$0xff]
    %v1254 = vadd.f32 %v1253, %v1248
    %v1255 = vxor.u32 %v1254, 2147483648
    %v1256 = vmul.f32 %v1255, 1.442695
    %v1257 = vpow.pop %v1256
    %v1258 = vadd.f32 %v1257, 1.0
    %v1259 = vrcp.pop %v1258
    %v1260 = vmul.f32 1.0, %v1259
    %v1261 = vtanh.pop %v1254
    %v1262 = vmul.f32 %v1260, 0.0
    %1264 = vrot.lane.b32.xlu0 %v1261, 64
    %v1265 = vpop.permute.xlu0 %1264
    %v1267 = vmul.f32 %v1260, %v1265
    %1269 = vrot.lane.b32.xlu0 %v1267, 32
    %v1270 = vpop.permute.xlu0 %1269
    %v1272 = vadd.f32 %v1262, %v1270
    %v1273 = vtanh.pop %v1272
    %1275 = vrot.lane.b32.xlu0 %v1273, 64
    %v1276 = vpop.permute.xlu0 %1275
    %v1278 = vmul.f32 %v1260, %v1276
    %v1279 = vpack.c.bf16 %v1278, %v1278
    %1281 = vrot.lane.b32.xlu0 %v1279, 32
    %v1282 = vpop.permute.xlu0 %1281
    %v1284 = vsel %vm415, %v1282, 0
    %1286 = vmatprep.subr.bf16.mxu0 0
    %1287 = vmatpush1.bf16.msra.mxu0 %v1209
    %1288 = vmatprep.subr.bf16.mxu0 0
    %1289 = vmatpush1.bf16.msra.mxu0 %v1210
    %1290 = vmatprep.subr.bf16.mxu0 0
    %1291 = vmatpush1.bf16.msra.mxu0 0
    %1292 = vmatprep.subr.bf16.mxu0 0
    %1293 = vmatpush1.bf16.msra.mxu0 0
    %1294 = vmatprep.subr.bf16.mxu0 0
    %1295 = vmatpush1.bf16.msra.mxu0 0
    %1296 = vmatprep.subr.bf16.mxu0 0
    %1297 = vmatpush1.bf16.msra.mxu0 0
    %1298 = vmatprep.subr.bf16.mxu0 0
    %1299 = vmatpush1.bf16.msra.mxu0 0
    %1300 = vmatprep.subr.bf16.mxu0 0
    %1301 = vmatpush1.bf16.msra.mxu0 0
    %1302 = vmatprep.subr.bf16.mxu0 0
    %1303 = vmatpush1.bf16.msra.mxu0 0
    %1304 = vmatprep.subr.bf16.mxu0 0
    %1305 = vmatpush1.bf16.msra.mxu0 0
    %1306 = vmatprep.subr.bf16.mxu0 0
    %1307 = vmatpush1.bf16.msra.mxu0 0
    %1308 = vmatprep.subr.bf16.mxu0 0
    %1309 = vmatpush1.bf16.msra.mxu0 0
    %1310 = vmatprep.subr.bf16.mxu0 0
    %1311 = vmatpush1.bf16.msra.mxu0 0
    %1312 = vmatprep.subr.bf16.mxu0 0
    %1313 = vmatpush1.bf16.msra.mxu0 0
    %1314 = vmatprep.subr.bf16.mxu0 0
    %1315 = vmatpush1.bf16.msra.mxu0 0
    %1316 = vmatprep.subr.bf16.mxu0 0
    %1317 = vmatpush1.bf16.msra.mxu0 0
    %1318 = vmatprep.mubr.bf16.mxu0 0
    %1319 = vmatmul.mubr.bf16.gmra.mrb[0].mxu0 %v1284
    %v1320 = vpop.f32.mrb[0].mxu0
    %v1321 = vadd.f32 0.0, %v1320
    %v1322 = vpop.f32.mrb[0].mxu0
    %v1323 = vpop.f32.mrb[0].mxu0
    %v1324 = vpop.f32.mrb[0].mxu0
    %1325 = vdwg.mxu0
    %v1326 = vld [vmem:[%s539] sm:$0xff]
    %v1327 = vadd.f32 %v1326, %v1321
    %v1328 = vxor.u32 %v1327, 2147483648
    %v1329 = vmul.f32 %v1328, 1.442695
    %v1330 = vpow.pop %v1329
    %v1331 = vadd.f32 %v1330, 1.0
    %v1332 = vrcp.pop %v1331
    %v1333 = vmul.f32 1.0, %v1332
    %v1334 = vtanh.pop %v1327
    %v1335 = vmul.f32 %v1333, %v1272
    %1337 = vrot.lane.b32.xlu0 %v1334, 64
    %v1338 = vpop.permute.xlu0 %1337
    %v1340 = vmul.f32 %v1333, %v1338
    %1342 = vrot.lane.b32.xlu0 %v1340, 32
    %v1343 = vpop.permute.xlu0 %1342
    %v1345 = vadd.f32 %v1335, %v1343
    %v1346 = vtanh.pop %v1345
    %1348 = vrot.lane.b32.xlu0 %v1346, 64
    %v1349 = vpop.permute.xlu0 %1348
    %v1351 = vmul.f32 %v1333, %v1349
    %v1352 = vpack.c.bf16 %v1351, %v1351
    %1354 = vrot.lane.b32.xlu0 %v1352, 32
    %v1355 = vpop.permute.xlu0 %1354
    %v1357 = vsel %vm415, %v1355, 0
    %1359 = vmatprep.subr.bf16.mxu0 0
    %1360 = vmatpush1.bf16.msra.mxu0 %v1209
    %1361 = vmatprep.subr.bf16.mxu0 0
    %1362 = vmatpush1.bf16.msra.mxu0 %v1210
    %1363 = vmatprep.subr.bf16.mxu0 0
    %1364 = vmatpush1.bf16.msra.mxu0 0
    %1365 = vmatprep.subr.bf16.mxu0 0
    %1366 = vmatpush1.bf16.msra.mxu0 0
    %1367 = vmatprep.subr.bf16.mxu0 0
    %1368 = vmatpush1.bf16.msra.mxu0 0
    %1369 = vmatprep.subr.bf16.mxu0 0
    %1370 = vmatpush1.bf16.msra.mxu0 0
    %1371 = vmatprep.subr.bf16.mxu0 0
    %1372 = vmatpush1.bf16.msra.mxu0 0
    %1373 = vmatprep.subr.bf16.mxu0 0
    %1374 = vmatpush1.bf16.msra.mxu0 0
    %1375 = vmatprep.subr.bf16.mxu0 0
    %1376 = vmatpush1.bf16.msra.mxu0 0
    %1377 = vmatprep.subr.bf16.mxu0 0
    %1378 = vmatpush1.bf16.msra.mxu0 0
    %1379 = vmatprep.subr.bf16.mxu0 0
    %1380 = vmatpush1.bf16.msra.mxu0 0
    %1381 = vmatprep.subr.bf16.mxu0 0
    %1382 = vmatpush1.bf16.msra.mxu0 0
    %1383 = vmatprep.subr.bf16.mxu0 0
    %1384 = vmatpush1.bf16.msra.mxu0 0
    %1385 = vmatprep.subr.bf16.mxu0 0
    %1386 = vmatpush1.bf16.msra.mxu0 0
    %1387 = vmatprep.subr.bf16.mxu0 0
    %1388 = vmatpush1.bf16.msra.mxu0 0
    %1389 = vmatprep.subr.bf16.mxu0 0
    %1390 = vmatpush1.bf16.msra.mxu0 0
    %1391 = vmatprep.mubr.bf16.mxu0 0
    %1392 = vmatmul.mubr.bf16.gmra.mrb[0].mxu0 %v1357
    %v1393 = vpop.f32.mrb[0].mxu0
    %v1394 = vadd.f32 0.0, %v1393
    %v1395 = vpop.f32.mrb[0].mxu0
    %v1396 = vpop.f32.mrb[0].mxu0
    %v1397 = vpop.f32.mrb[0].mxu0
    %1398 = vdwg.mxu0
    %v1399 = vld [vmem:[%s620] sm:$0xff]
    %v1400 = vadd.f32 %v1399, %v1394
    %v1401 = vxor.u32 %v1400, 2147483648
    %v1402 = vmul.f32 %v1401, 1.442695
    %v1403 = vpow.pop %v1402
    %v1404 = vadd.f32 %v1403, 1.0
    %v1405 = vrcp.pop %v1404
    %v1406 = vmul.f32 1.0, %v1405
    %v1407 = vtanh.pop %v1400
    %v1408 = vmul.f32 %v1406, %v1345
    %1410 = vrot.lane.b32.xlu0 %v1407, 64
    %v1411 = vpop.permute.xlu0 %1410
    %v1413 = vmul.f32 %v1406, %v1411
    %1415 = vrot.lane.b32.xlu0 %v1413, 32
    %v1416 = vpop.permute.xlu0 %1415
    %v1418 = vadd.f32 %v1408, %v1416
    %v1419 = vtanh.pop %v1418
    %1421 = vrot.lane.b32.xlu0 %v1419, 64
    %v1422 = vpop.permute.xlu0 %1421
    %v1424 = vmul.f32 %v1406, %v1422
    %v1425 = vpack.c.bf16 %v1424, %v1424
    %1427 = vrot.lane.b32.xlu0 %v1425, 32
    %v1428 = vpop.permute.xlu0 %1427
    %v1430 = vsel %vm415, %v1428, 0
    %1432 = vmatprep.subr.bf16.mxu0 0
    %1433 = vmatpush1.bf16.msra.mxu0 %v1209
    %1434 = vmatprep.subr.bf16.mxu0 0
    %1435 = vmatpush1.bf16.msra.mxu0 %v1210
    %1436 = vmatprep.subr.bf16.mxu0 0
    %1437 = vmatpush1.bf16.msra.mxu0 0
    %1438 = vmatprep.subr.bf16.mxu0 0
    %1439 = vmatpush1.bf16.msra.mxu0 0
    %1440 = vmatprep.subr.bf16.mxu0 0
    %1441 = vmatpush1.bf16.msra.mxu0 0
    %1442 = vmatprep.subr.bf16.mxu0 0
    %1443 = vmatpush1.bf16.msra.mxu0 0
    %1444 = vmatprep.subr.bf16.mxu0 0
    %1445 = vmatpush1.bf16.msra.mxu0 0
    %1446 = vmatprep.subr.bf16.mxu0 0
    %1447 = vmatpush1.bf16.msra.mxu0 0
    %1448 = vmatprep.subr.bf16.mxu0 0
    %1449 = vmatpush1.bf16.msra.mxu0 0
    %1450 = vmatprep.subr.bf16.mxu0 0
    %1451 = vmatpush1.bf16.msra.mxu0 0
    %1452 = vmatprep.subr.bf16.mxu0 0
    %1453 = vmatpush1.bf16.msra.mxu0 0
    %1454 = vmatprep.subr.bf16.mxu0 0
    %1455 = vmatpush1.bf16.msra.mxu0 0
    %1456 = vmatprep.subr.bf16.mxu0 0
    %1457 = vmatpush1.bf16.msra.mxu0 0
    %1458 = vmatprep.subr.bf16.mxu0 0
    %1459 = vmatpush1.bf16.msra.mxu0 0
    %1460 = vmatprep.subr.bf16.mxu0 0
    %1461 = vmatpush1.bf16.msra.mxu0 0
    %1462 = vmatprep.subr.bf16.mxu0 0
    %1463 = vmatpush1.bf16.msra.mxu0 0
    %1464 = vmatprep.mubr.bf16.mxu0 0
    %1465 = vmatmul.mubr.bf16.gmra.mrb[0].mxu0 %v1430
    %v1466 = vpop.f32.mrb[0].mxu0
    %v1467 = vadd.f32 0.0, %v1466
    %v1468 = vpop.f32.mrb[0].mxu0
    %v1469 = vpop.f32.mrb[0].mxu0
    %v1470 = vpop.f32.mrb[0].mxu0
    %1471 = vdwg.mxu0
    %v1472 = vld [vmem:[%s701] sm:$0xff]
    %v1473 = vadd.f32 %v1472, %v1467
    %v1474 = vxor.u32 %v1473, 2147483648
    %v1475 = vmul.f32 %v1474, 1.442695
    %v1476 = vpow.pop %v1475
    %v1477 = vadd.f32 %v1476, 1.0
    %v1478 = vrcp.pop %v1477
    %v1479 = vmul.f32 1.0, %v1478
    %v1480 = vtanh.pop %v1473
    %v1481 = vmul.f32 %v1479, %v1418
    %1483 = vrot.lane.b32.xlu0 %v1480, 64
    %v1484 = vpop.permute.xlu0 %1483
    %v1486 = vmul.f32 %v1479, %v1484
    %1488 = vrot.lane.b32.xlu0 %v1486, 32
    %v1489 = vpop.permute.xlu0 %1488
    %v1491 = vadd.f32 %v1481, %v1489
    %v1492 = vtanh.pop %v1491
    %1494 = vrot.lane.b32.xlu0 %v1492, 64
    %v1495 = vpop.permute.xlu0 %1494
    %v1497 = vmul.f32 %v1479, %v1495
    %v1498 = vpack.c.bf16 %v1497, %v1497
    %1500 = vrot.lane.b32.xlu0 %v1498, 32
    %v1501 = vpop.permute.xlu0 %1500
    %v1503 = vsel %vm415, %v1501, 0
    %1505 = vmatprep.subr.bf16.mxu0 0
    %1506 = vmatpush1.bf16.msra.mxu0 %v1209
    %1507 = vmatprep.subr.bf16.mxu0 0
    %1508 = vmatpush1.bf16.msra.mxu0 %v1210
    %1509 = vmatprep.subr.bf16.mxu0 0
    %1510 = vmatpush1.bf16.msra.mxu0 0
    %1511 = vmatprep.subr.bf16.mxu0 0
    %1512 = vmatpush1.bf16.msra.mxu0 0
    %1513 = vmatprep.subr.bf16.mxu0 0
    %1514 = vmatpush1.bf16.msra.mxu0 0
    %1515 = vmatprep.subr.bf16.mxu0 0
    %1516 = vmatpush1.bf16.msra.mxu0 0
    %1517 = vmatprep.subr.bf16.mxu0 0
    %1518 = vmatpush1.bf16.msra.mxu0 0
    %1519 = vmatprep.subr.bf16.mxu0 0
    %1520 = vmatpush1.bf16.msra.mxu0 0
    %1521 = vmatprep.subr.bf16.mxu0 0
    %1522 = vmatpush1.bf16.msra.mxu0 0
    %1523 = vmatprep.subr.bf16.mxu0 0
    %1524 = vmatpush1.bf16.msra.mxu0 0
    %1525 = vmatprep.subr.bf16.mxu0 0
    %1526 = vmatpush1.bf16.msra.mxu0 0
    %1527 = vmatprep.subr.bf16.mxu0 0
    %1528 = vmatpush1.bf16.msra.mxu0 0
    %1529 = vmatprep.subr.bf16.mxu0 0
    %1530 = vmatpush1.bf16.msra.mxu0 0
    %1531 = vmatprep.subr.bf16.mxu0 0
    %1532 = vmatpush1.bf16.msra.mxu0 0
    %1533 = vmatprep.subr.bf16.mxu0 0
    %1534 = vmatpush1.bf16.msra.mxu0 0
    %1535 = vmatprep.subr.bf16.mxu0 0
    %1536 = vmatpush1.bf16.msra.mxu0 0
    %1537 = vmatprep.mubr.bf16.mxu0 0
    %1538 = vmatmul.mubr.bf16.gmra.mrb[0].mxu0 %v1503
    %v1539 = vpop.f32.mrb[0].mxu0
    %v1540 = vadd.f32 0.0, %v1539
    %v1541 = vpop.f32.mrb[0].mxu0
    %v1542 = vpop.f32.mrb[0].mxu0
    %v1543 = vpop.f32.mrb[0].mxu0
    %1544 = vdwg.mxu0
    %v1545 = vld [vmem:[%s782] sm:$0xff]
    %v1546 = vadd.f32 %v1545, %v1540
    %v1547 = vxor.u32 %v1546, 2147483648
    %v1548 = vmul.f32 %v1547, 1.442695
    %v1549 = vpow.pop %v1548
    %v1550 = vadd.f32 %v1549, 1.0
    %v1551 = vrcp.pop %v1550
    %v1552 = vmul.f32 1.0, %v1551
    %v1553 = vtanh.pop %v1546
    %v1554 = vmul.f32 %v1552, %v1491
    %1556 = vrot.lane.b32.xlu0 %v1553, 64
    %v1557 = vpop.permute.xlu0 %1556
    %v1559 = vmul.f32 %v1552, %v1557
    %1561 = vrot.lane.b32.xlu0 %v1559, 32
    %v1562 = vpop.permute.xlu0 %1561
    %v1564 = vadd.f32 %v1554, %v1562
    %v1565 = vtanh.pop %v1564
    %1567 = vrot.lane.b32.xlu0 %v1565, 64
    %v1568 = vpop.permute.xlu0 %1567
    %v1570 = vmul.f32 %v1552, %v1568
    %v1571 = vpack.c.bf16 %v1570, %v1570
    %1573 = vrot.lane.b32.xlu0 %v1571, 32
    %v1574 = vpop.permute.xlu0 %1573
    %v1576 = vsel %vm415, %v1574, 0
    %1578 = vmatprep.subr.bf16.mxu0 0
    %1579 = vmatpush1.bf16.msra.mxu0 %v1209
    %1580 = vmatprep.subr.bf16.mxu0 0
    %1581 = vmatpush1.bf16.msra.mxu0 %v1210
    %1582 = vmatprep.subr.bf16.mxu0 0
    %1583 = vmatpush1.bf16.msra.mxu0 0
    %1584 = vmatprep.subr.bf16.mxu0 0
    %1585 = vmatpush1.bf16.msra.mxu0 0
    %1586 = vmatprep.subr.bf16.mxu0 0
    %1587 = vmatpush1.bf16.msra.mxu0 0
    %1588 = vmatprep.subr.bf16.mxu0 0
    %1589 = vmatpush1.bf16.msra.mxu0 0
    %1590 = vmatprep.subr.bf16.mxu0 0
    %1591 = vmatpush1.bf16.msra.mxu0 0
    %1592 = vmatprep.subr.bf16.mxu0 0
    %1593 = vmatpush1.bf16.msra.mxu0 0
    %1594 = vmatprep.subr.bf16.mxu0 0
    %1595 = vmatpush1.bf16.msra.mxu0 0
    %1596 = vmatprep.subr.bf16.mxu0 0
    %1597 = vmatpush1.bf16.msra.mxu0 0
    %1598 = vmatprep.subr.bf16.mxu0 0
    %1599 = vmatpush1.bf16.msra.mxu0 0
    %1600 = vmatprep.subr.bf16.mxu0 0
    %1601 = vmatpush1.bf16.msra.mxu0 0
    %1602 = vmatprep.subr.bf16.mxu0 0
    %1603 = vmatpush1.bf16.msra.mxu0 0
    %1604 = vmatprep.subr.bf16.mxu0 0
    %1605 = vmatpush1.bf16.msra.mxu0 0
    %1606 = vmatprep.subr.bf16.mxu0 0
    %1607 = vmatpush1.bf16.msra.mxu0 0
    %1608 = vmatprep.subr.bf16.mxu0 0
    %1609 = vmatpush1.bf16.msra.mxu0 0
    %1610 = vmatprep.mubr.bf16.mxu0 0
    %1611 = vmatmul.mubr.bf16.gmra.mrb[0].mxu0 %v1576
    %v1612 = vpop.f32.mrb[0].mxu0
    %v1613 = vadd.f32 0.0, %v1612
    %v1614 = vpop.f32.mrb[0].mxu0
    %v1615 = vpop.f32.mrb[0].mxu0
    %v1616 = vpop.f32.mrb[0].mxu0
    %1617 = vdwg.mxu0
    %v1618 = vld [vmem:[%s863] sm:$0xff]
    %v1619 = vadd.f32 %v1618, %v1613
    %v1620 = vxor.u32 %v1619, 2147483648
    %v1621 = vmul.f32 %v1620, 1.442695
    %v1622 = vpow.pop %v1621
    %v1623 = vadd.f32 %v1622, 1.0
    %v1624 = vrcp.pop %v1623
    %v1625 = vmul.f32 1.0, %v1624
    %v1626 = vtanh.pop %v1619
    %v1627 = vmul.f32 %v1625, %v1564
    %1629 = vrot.lane.b32.xlu0 %v1626, 64
    %v1630 = vpop.permute.xlu0 %1629
    %v1632 = vmul.f32 %v1625, %v1630
    %1634 = vrot.lane.b32.xlu0 %v1632, 32
    %v1635 = vpop.permute.xlu0 %1634
    %v1637 = vadd.f32 %v1627, %v1635
    %v1638 = vtanh.pop %v1637
    %1640 = vrot.lane.b32.xlu0 %v1638, 64
    %v1641 = vpop.permute.xlu0 %1640
    %v1643 = vmul.f32 %v1625, %v1641
    %v1644 = vpack.c.bf16 %v1643, %v1643
    %1646 = vrot.lane.b32.xlu0 %v1644, 32
    %v1647 = vpop.permute.xlu0 %1646
    %v1649 = vsel %vm415, %v1647, 0
    %1651 = vmatprep.subr.bf16.mxu0 0
    %1652 = vmatpush1.bf16.msra.mxu0 %v1209
    %1653 = vmatprep.subr.bf16.mxu0 0
    %1654 = vmatpush1.bf16.msra.mxu0 %v1210
    %1655 = vmatprep.subr.bf16.mxu0 0
    %1656 = vmatpush1.bf16.msra.mxu0 0
    %1657 = vmatprep.subr.bf16.mxu0 0
    %1658 = vmatpush1.bf16.msra.mxu0 0
    %1659 = vmatprep.subr.bf16.mxu0 0
    %1660 = vmatpush1.bf16.msra.mxu0 0
    %1661 = vmatprep.subr.bf16.mxu0 0
    %1662 = vmatpush1.bf16.msra.mxu0 0
    %1663 = vmatprep.subr.bf16.mxu0 0
    %1664 = vmatpush1.bf16.msra.mxu0 0
    %1665 = vmatprep.subr.bf16.mxu0 0
    %1666 = vmatpush1.bf16.msra.mxu0 0
    %1667 = vmatprep.subr.bf16.mxu0 0
    %1668 = vmatpush1.bf16.msra.mxu0 0
    %1669 = vmatprep.subr.bf16.mxu0 0
    %1670 = vmatpush1.bf16.msra.mxu0 0
    %1671 = vmatprep.subr.bf16.mxu0 0
    %1672 = vmatpush1.bf16.msra.mxu0 0
    %1673 = vmatprep.subr.bf16.mxu0 0
    %1674 = vmatpush1.bf16.msra.mxu0 0
    %1675 = vmatprep.subr.bf16.mxu0 0
    %1676 = vmatpush1.bf16.msra.mxu0 0
    %1677 = vmatprep.subr.bf16.mxu0 0
    %1678 = vmatpush1.bf16.msra.mxu0 0
    %1679 = vmatprep.subr.bf16.mxu0 0
    %1680 = vmatpush1.bf16.msra.mxu0 0
    %1681 = vmatprep.subr.bf16.mxu0 0
    %1682 = vmatpush1.bf16.msra.mxu0 0
    %1683 = vmatprep.mubr.bf16.mxu0 0
    %1684 = vmatmul.mubr.bf16.gmra.mrb[0].mxu0 %v1649
    %v1685 = vpop.f32.mrb[0].mxu0
    %v1686 = vadd.f32 0.0, %v1685
    %v1687 = vpop.f32.mrb[0].mxu0
    %v1688 = vpop.f32.mrb[0].mxu0
    %v1689 = vpop.f32.mrb[0].mxu0
    %1690 = vdwg.mxu0
    %v1691 = vld [vmem:[%s944] sm:$0xff]
    %v1692 = vadd.f32 %v1691, %v1686
    %v1693 = vxor.u32 %v1692, 2147483648
    %v1694 = vmul.f32 %v1693, 1.442695
    %v1695 = vpow.pop %v1694
    %v1696 = vadd.f32 %v1695, 1.0
    %v1697 = vrcp.pop %v1696
    %v1698 = vmul.f32 1.0, %v1697
    %v1699 = vtanh.pop %v1692
    %v1700 = vmul.f32 %v1698, %v1637
    %1702 = vrot.lane.b32.xlu0 %v1699, 64
    %v1703 = vpop.permute.xlu0 %1702
    %v1705 = vmul.f32 %v1698, %v1703
    %1707 = vrot.lane.b32.xlu0 %v1705, 32
    %v1708 = vpop.permute.xlu0 %1707
    %v1710 = vadd.f32 %v1700, %v1708
    %v1711 = vtanh.pop %v1710
    %1713 = vrot.lane.b32.xlu0 %v1711, 64
    %v1714 = vpop.permute.xlu0 %1713
    %v1716 = vmul.f32 %v1698, %v1714
    %v1717 = vpack.c.bf16 %v1716, %v1716
    %1719 = vrot.lane.b32.xlu0 %v1717, 32
    %v1720 = vpop.permute.xlu0 %1719
    %v1722 = vsel %vm415, %v1720, 0
    %1724 = vmatprep.subr.bf16.mxu0 0
    %1725 = vmatpush1.bf16.msra.mxu0 %v1209
    %1726 = vmatprep.subr.bf16.mxu0 0
    %1727 = vmatpush1.bf16.msra.mxu0 %v1210
    %1728 = vmatprep.subr.bf16.mxu0 0
    %1729 = vmatpush1.bf16.msra.mxu0 0
    %1730 = vmatprep.subr.bf16.mxu0 0
    %1731 = vmatpush1.bf16.msra.mxu0 0
    %1732 = vmatprep.subr.bf16.mxu0 0
    %1733 = vmatpush1.bf16.msra.mxu0 0
    %1734 = vmatprep.subr.bf16.mxu0 0
    %1735 = vmatpush1.bf16.msra.mxu0 0
    %1736 = vmatprep.subr.bf16.mxu0 0
    %1737 = vmatpush1.bf16.msra.mxu0 0
    %1738 = vmatprep.subr.bf16.mxu0 0
    %1739 = vmatpush1.bf16.msra.mxu0 0
    %1740 = vmatprep.subr.bf16.mxu0 0
    %1741 = vmatpush1.bf16.msra.mxu0 0
    %1742 = vmatprep.subr.bf16.mxu0 0
    %1743 = vmatpush1.bf16.msra.mxu0 0
    %1744 = vmatprep.subr.bf16.mxu0 0
    %1745 = vmatpush1.bf16.msra.mxu0 0
    %1746 = vmatprep.subr.bf16.mxu0 0
    %1747 = vmatpush1.bf16.msra.mxu0 0
    %1748 = vmatprep.subr.bf16.mxu0 0
    %1749 = vmatpush1.bf16.msra.mxu0 0
    %1750 = vmatprep.subr.bf16.mxu0 0
    %1751 = vmatpush1.bf16.msra.mxu0 0
    %1752 = vmatprep.subr.bf16.mxu0 0
    %1753 = vmatpush1.bf16.msra.mxu0 0
    %1754 = vmatprep.subr.bf16.mxu0 0
    %1755 = vmatpush1.bf16.msra.mxu0 0
    %1756 = vmatprep.mubr.bf16.mxu0 0
    %1757 = vmatmul.mubr.bf16.gmra.mrb[0].mxu0 %v1722
    %v1758 = vpop.f32.mrb[0].mxu0
    %v1759 = vadd.f32 0.0, %v1758
    %v1760 = vpop.f32.mrb[0].mxu0
    %v1761 = vpop.f32.mrb[0].mxu0
    %v1762 = vpop.f32.mrb[0].mxu0
    %1763 = vdwg.mxu0
    %v1764 = vld [vmem:[%s1025] sm:$0xff]
    %v1765 = vadd.f32 %v1764, %v1759
    %v1766 = vxor.u32 %v1765, 2147483648
    %v1767 = vmul.f32 %v1766, 1.442695
    %v1768 = vpow.pop %v1767
    %v1769 = vadd.f32 %v1768, 1.0
    %v1770 = vrcp.pop %v1769
    %v1771 = vmul.f32 1.0, %v1770
    %v1772 = vtanh.pop %v1765
    %v1773 = vmul.f32 %v1771, %v1710
    %1775 = vrot.lane.b32.xlu0 %v1772, 64
    %v1776 = vpop.permute.xlu0 %1775
    %v1778 = vmul.f32 %v1771, %v1776
    %1780 = vrot.lane.b32.xlu0 %v1778, 32
    %v1781 = vpop.permute.xlu0 %1780
    %v1783 = vadd.f32 %v1773, %v1781
    %v1784 = vtanh.pop %v1783
    %1786 = vrot.lane.b32.xlu0 %v1784, 64
    %v1787 = vpop.permute.xlu0 %1786
    %v1789 = vmul.f32 %v1771, %v1787
    %v1790 = vpack.c.bf16 %v1789, %v1789
    %v1791 = vld [vmem:[#allocation16] sm:$0xf]
    %v1792 = vld [vmem:[#allocation16 + $0x4] sm:$0xf]
    %v1793 = vld [vmem:[#allocation16 + $0x8] sm:$0xf]
    %v1794 = vld [vmem:[#allocation16 + $0xc] sm:$0xf]
    %v1795 = vld [vmem:[#allocation18] sm:$0x1]
    %v1797 = vlaneseq
    %v1798 = vshrl.u32 %v1797, 7
    %v1799 = vsub.s32 0, %v1798
    %v1800 = vrot.slane %v1795, %v1799
    %1803 = vrot.lane.b32.xlu0 %v1790, 32
    %v1804 = vpop.permute.xlu0 %1803
    %v1809 = vunpack.c.l.b16 %v1791
    %v1810 = vunpack.c.l.b16 %v1792
    %v1811 = vunpack.c.l.b16 %v1793
    %v1812 = vunpack.c.l.b16 %v1794
    %v1813 = vpack.c.b16 %v1810, %v1809
    %v1814 = vpack.c.b16 %v1812, %v1811
    %v1818 = vsel %vm415, %v1804, 0
    %1820 = vmatprep.subr.bf16.mxu0 0
    %1821 = vmatpush1.bf16.msra.mxu0 %v1813
    %1822 = vmatprep.subr.bf16.mxu0 0
    %1823 = vmatpush1.bf16.msra.mxu0 %v1814
    %1824 = vmatprep.subr.bf16.mxu0 0
    %1825 = vmatpush1.bf16.msra.mxu0 0
    %1826 = vmatprep.subr.bf16.mxu0 0
    %1827 = vmatpush1.bf16.msra.mxu0 0
    %1828 = vmatprep.subr.bf16.mxu0 0
    %1829 = vmatpush1.bf16.msra.mxu0 0
    %1830 = vmatprep.subr.bf16.mxu0 0
    %1831 = vmatpush1.bf16.msra.mxu0 0
    %1832 = vmatprep.subr.bf16.mxu0 0
    %1833 = vmatpush1.bf16.msra.mxu0 0
    %1834 = vmatprep.subr.bf16.mxu0 0
    %1835 = vmatpush1.bf16.msra.mxu0 0
    %1836 = vmatprep.subr.bf16.mxu0 0
    %1837 = vmatpush1.bf16.msra.mxu0 0
    %1838 = vmatprep.subr.bf16.mxu0 0
    %1839 = vmatpush1.bf16.msra.mxu0 0
    %1840 = vmatprep.subr.bf16.mxu0 0
    %1841 = vmatpush1.bf16.msra.mxu0 0
    %1842 = vmatprep.subr.bf16.mxu0 0
    %1843 = vmatpush1.bf16.msra.mxu0 0
    %1844 = vmatprep.subr.bf16.mxu0 0
    %1845 = vmatpush1.bf16.msra.mxu0 0
    %1846 = vmatprep.subr.bf16.mxu0 0
    %1847 = vmatpush1.bf16.msra.mxu0 0
    %1848 = vmatprep.subr.bf16.mxu0 0
    %1849 = vmatpush1.bf16.msra.mxu0 0
    %1850 = vmatprep.subr.bf16.mxu0 0
    %1851 = vmatpush1.bf16.msra.mxu0 0
    %1852 = vmatprep.mubr.bf16.mxu0 0
    %1853 = vmatmul.mubr.bf16.gmra.mrb[0].mxu0 %v1818
    %v1854 = vpop.f32.mrb[0].mxu0
    %v1855 = vadd.f32 %v1800, %v1854
    %v1856 = vpop.f32.mrb[0].mxu0
    %v1857 = vpop.f32.mrb[0].mxu0
    %v1858 = vpop.f32.mrb[0].mxu0
    %1859 = vdwg.mxu0
    %v1860 = vpack.c.bf16 %v1855, %v1855
    %v1861 = vld [vmem:[#allocation19] sm:$0xf]
    %v1862 = vld [vmem:[#allocation19 + $0x4] sm:$0xf]
    %v1863 = vld [vmem:[#allocation21] sm:$0x1]
    %v1865 = vlaneseq
    %v1866 = vshrl.u32 %v1865, 7
    %v1867 = vsub.s32 0, %v1866
    %v1868 = vrot.slane %v1863, %v1867
    %v1872 = vunpack.c.l.b16 %v1861
    %v1873 = vunpack.c.l.b16 %v1862
    %v1874 = vpack.c.b16 %v1873, %v1872
    %vm1876 = vcmask 130048
    %v1878 = vsel %vm1876, %v1860, 0
    %1880 = vmatprep.subr.bf16.mxu0 0
    %1881 = vmatpush1.bf16.msra.mxu0 %v1874
    %1882 = vmatprep.subr.bf16.mxu0 0
    %1883 = vmatpush1.bf16.msra.mxu0 0
    %1884 = vmatprep.subr.bf16.mxu0 0
    %1885 = vmatpush1.bf16.msra.mxu0 0
    %1886 = vmatprep.subr.bf16.mxu0 0
    %1887 = vmatpush1.bf16.msra.mxu0 0
    %1888 = vmatprep.subr.bf16.mxu0 0
    %1889 = vmatpush1.bf16.msra.mxu0 0
    %1890 = vmatprep.subr.bf16.mxu0 0
    %1891 = vmatpush1.bf16.msra.mxu0 0
    %1892 = vmatprep.subr.bf16.mxu0 0
    %1893 = vmatpush1.bf16.msra.mxu0 0
    %1894 = vmatprep.subr.bf16.mxu0 0
    %1895 = vmatpush1.bf16.msra.mxu0 0
    %1896 = vmatprep.subr.bf16.mxu0 0
    %1897 = vmatpush1.bf16.msra.mxu0 0
    %1898 = vmatprep.subr.bf16.mxu0 0
    %1899 = vmatpush1.bf16.msra.mxu0 0
    %1900 = vmatprep.subr.bf16.mxu0 0
    %1901 = vmatpush1.bf16.msra.mxu0 0
    %1902 = vmatprep.subr.bf16.mxu0 0
    %1903 = vmatpush1.bf16.msra.mxu0 0
    %1904 = vmatprep.subr.bf16.mxu0 0
    %1905 = vmatpush1.bf16.msra.mxu0 0
    %1906 = vmatprep.subr.bf16.mxu0 0
    %1907 = vmatpush1.bf16.msra.mxu0 0
    %1908 = vmatprep.subr.bf16.mxu0 0
    %1909 = vmatpush1.bf16.msra.mxu0 0
    %1910 = vmatprep.subr.bf16.mxu0 0
    %1911 = vmatpush1.bf16.msra.mxu0 0
    %1912 = vmatprep.mubr.bf16.mxu0 0
    %1913 = vmatmul.mubr.bf16.gmra.mrb[0].mxu0 %v1878
    %v1914 = vpop.f32.mrb[0].mxu0
    %v1915 = vadd.f32 %v1868, %v1914
    %v1916 = vpop.f32.mrb[0].mxu0
    %v1917 = vpop.f32.mrb[0].mxu0
    %v1918 = vpop.f32.mrb[0].mxu0
    %1919 = vdwg.mxu0
    %v1920 = vld [vmem:[#allocation22] sm:$0xf]
    %v1921 = vld [vmem:[#allocation22 + $0x4] sm:$0xf]
    %v1922 = vld [vmem:[#allocation22 + $0x8] sm:$0xf]
    %v1923 = vld [vmem:[#allocation22 + $0xc] sm:$0xf]
    %v1924 = vld [vmem:[#allocation24] sm:$0x1]
    %v1926 = vlaneseq
    %v1927 = vshrl.u32 %v1926, 7
    %v1928 = vsub.s32 0, %v1927
    %v1929 = vrot.slane %v1924, %v1928
    %v1931 = vpack.c.bf16 %v1915, %v1915
    %v1936 = vunpack.c.l.b16 %v1920
    %v1937 = vunpack.c.l.b16 %v1921
    %v1938 = vunpack.c.l.b16 %v1922
    %v1939 = vunpack.c.l.b16 %v1923
    %v1940 = vpack.c.b16 %v1937, %v1936
    %v1941 = vpack.c.b16 %v1939, %v1938
    %v1945 = vsel %vm415, %v1931, 0
    %1947 = vmatprep.subr.bf16.mxu0 0
    %1948 = vmatpush1.bf16.msra.mxu0 %v1940
    %1949 = vmatprep.subr.bf16.mxu0 0
    %1950 = vmatpush1.bf16.msra.mxu0 %v1941
    %1951 = vmatprep.subr.bf16.mxu0 0
    %1952 = vmatpush1.bf16.msra.mxu0 0
    %1953 = vmatprep.subr.bf16.mxu0 0
    %1954 = vmatpush1.bf16.msra.mxu0 0
    %1955 = vmatprep.subr.bf16.mxu0 0
    %1956 = vmatpush1.bf16.msra.mxu0 0
    %1957 = vmatprep.subr.bf16.mxu0 0
    %1958 = vmatpush1.bf16.msra.mxu0 0
    %1959 = vmatprep.subr.bf16.mxu0 0
    %1960 = vmatpush1.bf16.msra.mxu0 0
    %1961 = vmatprep.subr.bf16.mxu0 0
    %1962 = vmatpush1.bf16.msra.mxu0 0
    %1963 = vmatprep.subr.bf16.mxu0 0
    %1964 = vmatpush1.bf16.msra.mxu0 0
    %1965 = vmatprep.subr.bf16.mxu0 0
    %1966 = vmatpush1.bf16.msra.mxu0 0
    %1967 = vmatprep.subr.bf16.mxu0 0
    %1968 = vmatpush1.bf16.msra.mxu0 0
    %1969 = vmatprep.subr.bf16.mxu0 0
    %1970 = vmatpush1.bf16.msra.mxu0 0
    %1971 = vmatprep.subr.bf16.mxu0 0
    %1972 = vmatpush1.bf16.msra.mxu0 0
    %1973 = vmatprep.subr.bf16.mxu0 0
    %1974 = vmatpush1.bf16.msra.mxu0 0
    %1975 = vmatprep.subr.bf16.mxu0 0
    %1976 = vmatpush1.bf16.msra.mxu0 0
    %1977 = vmatprep.subr.bf16.mxu0 0
    %1978 = vmatpush1.bf16.msra.mxu0 0
    %1979 = vmatprep.mubr.bf16.mxu0 0
    %1980 = vmatmul.mubr.bf16.gmra.mrb[0].mxu0 %v1945
    %v1981 = vpop.f32.mrb[0].mxu0
    %v1982 = vadd.f32 0.0, %v1981
    %v1983 = vpop.f32.mrb[0].mxu0
    %v1984 = vpop.f32.mrb[0].mxu0
    %v1985 = vpop.f32.mrb[0].mxu0
    %1986 = vdwg.mxu0
    %v1987 = vadd.f32 %v1929, %v1982
    %v1988 = vxor.u32 %v1987, 2147483648
    %v1989 = vmul.f32 %v1988, 1.442695
    %v1990 = vpow.pop %v1989
    %v1991 = vadd.f32 %v1990, 1.0
    %v1992 = vrcp.pop %v1991
    %v1993 = vmul.f32 1.0, %v1992
    %v1994 = vtanh.pop %v1987
    %v1995 = vmul.f32 %v1993, 0.0
    %1997 = vrot.lane.b32.xlu0 %v1994, 64
    %v1998 = vpop.permute.xlu0 %1997
    %v2000 = vmul.f32 %v1993, %v1998
    %2002 = vrot.lane.b32.xlu0 %v2000, 32
    %v2003 = vpop.permute.xlu0 %2002
    %v2005 = vadd.f32 %v1995, %v2003
    %v2006 = vtanh.pop %v2005
    %2008 = vrot.lane.b32.xlu0 %v2006, 64
    %v2009 = vpop.permute.xlu0 %2008
    %v2011 = vmul.f32 %v1993, %v2009
    %v2012 = vpack.c.bf16 %v2011, %v2011
    %v2014 = vunpack.c.l.b16 %v2012
    %v2015 = vpack.c.b16 %v2014, %v2014
    %2016 = vrot.lane.b32.xlu0 %v2015, 32
    %v2017 = vpop.permute.xlu0 %2016
    %2019 = vst.msk [vmem:[#allocation2] sm:$0xf] %vm492, %v2017
    %2020 = vrot.lane.b32.xlu0 %v2012, 32
    %v2021 = vpop.permute.xlu0 %2020
    %v2023 = vsel %vm415, %v2021, 0
    %2025 = vmatprep.subr.bf16.mxu0 0
    %2026 = vmatpush1.bf16.msra.mxu0 %v1940
    %2027 = vmatprep.subr.bf16.mxu0 0
    %2028 = vmatpush1.bf16.msra.mxu0 %v1941
    %2029 = vmatprep.subr.bf16.mxu0 0
    %2030 = vmatpush1.bf16.msra.mxu0 0
    %2031 = vmatprep.subr.bf16.mxu0 0
    %2032 = vmatpush1.bf16.msra.mxu0 0
    %2033 = vmatprep.subr.bf16.mxu0 0
    %2034 = vmatpush1.bf16.msra.mxu0 0
    %2035 = vmatprep.subr.bf16.mxu0 0
    %2036 = vmatpush1.bf16.msra.mxu0 0
    %2037 = vmatprep.subr.bf16.mxu0 0
    %2038 = vmatpush1.bf16.msra.mxu0 0
    %2039 = vmatprep.subr.bf16.mxu0 0
    %2040 = vmatpush1.bf16.msra.mxu0 0
    %2041 = vmatprep.subr.bf16.mxu0 0
    %2042 = vmatpush1.bf16.msra.mxu0 0
    %2043 = vmatprep.subr.bf16.mxu0 0
    %2044 = vmatpush1.bf16.msra.mxu0 0
    %2045 = vmatprep.subr.bf16.mxu0 0
    %2046 = vmatpush1.bf16.msra.mxu0 0
    %2047 = vmatprep.subr.bf16.mxu0 0
    %2048 = vmatpush1.bf16.msra.mxu0 0
    %2049 = vmatprep.subr.bf16.mxu0 0
    %2050 = vmatpush1.bf16.msra.mxu0 0
    %2051 = vmatprep.subr.bf16.mxu0 0
    %2052 = vmatpush1.bf16.msra.mxu0 0
    %2053 = vmatprep.subr.bf16.mxu0 0
    %2054 = vmatpush1.bf16.msra.mxu0 0
    %2055 = vmatprep.subr.bf16.mxu0 0
    %2056 = vmatpush1.bf16.msra.mxu0 0
    %2057 = vmatprep.mubr.bf16.mxu0 0
    %2058 = vmatmul.mubr.bf16.gmra.mrb[0].mxu0 %v2023
    %v2059 = vpop.f32.mrb[0].mxu0
    %v2060 = vadd.f32 0.0, %v2059
    %v2061 = vpop.f32.mrb[0].mxu0
    %v2062 = vpop.f32.mrb[0].mxu0
    %v2063 = vpop.f32.mrb[0].mxu0
    %2064 = vdwg.mxu0
    %v2065 = vadd.f32 %v1929, %v2060
    %v2066 = vxor.u32 %v2065, 2147483648
    %v2067 = vmul.f32 %v2066, 1.442695
    %v2068 = vpow.pop %v2067
    %v2069 = vadd.f32 %v2068, 1.0
    %v2070 = vrcp.pop %v2069
    %v2071 = vmul.f32 1.0, %v2070
    %v2072 = vtanh.pop %v2065
    %v2073 = vmul.f32 %v2071, %v2005
    %2075 = vrot.lane.b32.xlu0 %v2072, 64
    %v2076 = vpop.permute.xlu0 %2075
    %v2078 = vmul.f32 %v2071, %v2076
    %2080 = vrot.lane.b32.xlu0 %v2078, 32
    %v2081 = vpop.permute.xlu0 %2080
    %v2083 = vadd.f32 %v2073, %v2081
    %v2084 = vtanh.pop %v2083
    %2086 = vrot.lane.b32.xlu0 %v2084, 64
    %v2087 = vpop.permute.xlu0 %2086
    %v2089 = vmul.f32 %v2071, %v2087
    %v2090 = vpack.c.bf16 %v2089, %v2089
    %v2092 = vunpack.c.l.b16 %v2090
    %v2093 = vpack.c.b16 %v2092, %v2092
    %2094 = vrot.lane.b32.xlu0 %v2093, 32
    %v2095 = vpop.permute.xlu0 %2094
    %2097 = vst.msk [vmem:[%s573] sm:$0xf] %vm492, %v2095
    %2098 = vrot.lane.b32.xlu0 %v2090, 32
    %v2099 = vpop.permute.xlu0 %2098
    %v2101 = vsel %vm415, %v2099, 0
    %2103 = vmatprep.subr.bf16.mxu0 0
    %2104 = vmatpush1.bf16.msra.mxu0 %v1940
    %2105 = vmatprep.subr.bf16.mxu0 0
    %2106 = vmatpush1.bf16.msra.mxu0 %v1941
    %2107 = vmatprep.subr.bf16.mxu0 0
    %2108 = vmatpush1.bf16.msra.mxu0 0
    %2109 = vmatprep.subr.bf16.mxu0 0
    %2110 = vmatpush1.bf16.msra.mxu0 0
    %2111 = vmatprep.subr.bf16.mxu0 0
    %2112 = vmatpush1.bf16.msra.mxu0 0
    %2113 = vmatprep.subr.bf16.mxu0 0
    %2114 = vmatpush1.bf16.msra.mxu0 0
    %2115 = vmatprep.subr.bf16.mxu0 0
    %2116 = vmatpush1.bf16.msra.mxu0 0
    %2117 = vmatprep.subr.bf16.mxu0 0
    %2118 = vmatpush1.bf16.msra.mxu0 0
    %2119 = vmatprep.subr.bf16.mxu0 0
    %2120 = vmatpush1.bf16.msra.mxu0 0
    %2121 = vmatprep.subr.bf16.mxu0 0
    %2122 = vmatpush1.bf16.msra.mxu0 0
    %2123 = vmatprep.subr.bf16.mxu0 0
    %2124 = vmatpush1.bf16.msra.mxu0 0
    %2125 = vmatprep.subr.bf16.mxu0 0
    %2126 = vmatpush1.bf16.msra.mxu0 0
    %2127 = vmatprep.subr.bf16.mxu0 0
    %2128 = vmatpush1.bf16.msra.mxu0 0
    %2129 = vmatprep.subr.bf16.mxu0 0
    %2130 = vmatpush1.bf16.msra.mxu0 0
    %2131 = vmatprep.subr.bf16.mxu0 0
    %2132 = vmatpush1.bf16.msra.mxu0 0
    %2133 = vmatprep.subr.bf16.mxu0 0
    %2134 = vmatpush1.bf16.msra.mxu0 0
    %2135 = vmatprep.mubr.bf16.mxu0 0
    %2136 = vmatmul.mubr.bf16.gmra.mrb[0].mxu0 %v2101
    %v2137 = vpop.f32.mrb[0].mxu0
    %v2138 = vadd.f32 0.0, %v2137
    %v2139 = vpop.f32.mrb[0].mxu0
    %v2140 = vpop.f32.mrb[0].mxu0
    %v2141 = vpop.f32.mrb[0].mxu0
    %2142 = vdwg.mxu0
    %v2143 = vadd.f32 %v1929, %v2138
    %v2144 = vxor.u32 %v2143, 2147483648
    %v2145 = vmul.f32 %v2144, 1.442695
    %v2146 = vpow.pop %v2145
    %v2147 = vadd.f32 %v2146, 1.0
    %v2148 = vrcp.pop %v2147
    %v2149 = vmul.f32 1.0, %v2148
    %v2150 = vtanh.pop %v2143
    %v2151 = vmul.f32 %v2149, %v2083
    %2153 = vrot.lane.b32.xlu0 %v2150, 64
    %v2154 = vpop.permute.xlu0 %2153
    %v2156 = vmul.f32 %v2149, %v2154
    %2158 = vrot.lane.b32.xlu0 %v2156, 32
    %v2159 = vpop.permute.xlu0 %2158
    %v2161 = vadd.f32 %v2151, %v2159
    %v2162 = vtanh.pop %v2161
    %2164 = vrot.lane.b32.xlu0 %v2162, 64
    %v2165 = vpop.permute.xlu0 %2164
    %v2167 = vmul.f32 %v2149, %v2165
    %v2168 = vpack.c.bf16 %v2167, %v2167
    %v2170 = vunpack.c.l.b16 %v2168
    %v2171 = vpack.c.b16 %v2170, %v2170
    %2172 = vrot.lane.b32.xlu0 %v2171, 32
    %v2173 = vpop.permute.xlu0 %2172
    %2175 = vst.msk [vmem:[%s654] sm:$0xf] %vm492, %v2173
    %2176 = vrot.lane.b32.xlu0 %v2168, 32
    %v2177 = vpop.permute.xlu0 %2176
    %v2179 = vsel %vm415, %v2177, 0
    %2181 = vmatprep.subr.bf16.mxu0 0
    %2182 = vmatpush1.bf16.msra.mxu0 %v1940
    %2183 = vmatprep.subr.bf16.mxu0 0
    %2184 = vmatpush1.bf16.msra.mxu0 %v1941
    %2185 = vmatprep.subr.bf16.mxu0 0
    %2186 = vmatpush1.bf16.msra.mxu0 0
    %2187 = vmatprep.subr.bf16.mxu0 0
    %2188 = vmatpush1.bf16.msra.mxu0 0
    %2189 = vmatprep.subr.bf16.mxu0 0
    %2190 = vmatpush1.bf16.msra.mxu0 0
    %2191 = vmatprep.subr.bf16.mxu0 0
    %2192 = vmatpush1.bf16.msra.mxu0 0
    %2193 = vmatprep.subr.bf16.mxu0 0
    %2194 = vmatpush1.bf16.msra.mxu0 0
    %2195 = vmatprep.subr.bf16.mxu0 0
    %2196 = vmatpush1.bf16.msra.mxu0 0
    %2197 = vmatprep.subr.bf16.mxu0 0
    %2198 = vmatpush1.bf16.msra.mxu0 0
    %2199 = vmatprep.subr.bf16.mxu0 0
    %2200 = vmatpush1.bf16.msra.mxu0 0
    %2201 = vmatprep.subr.bf16.mxu0 0
    %2202 = vmatpush1.bf16.msra.mxu0 0
    %2203 = vmatprep.subr.bf16.mxu0 0
    %2204 = vmatpush1.bf16.msra.mxu0 0
    %2205 = vmatprep.subr.bf16.mxu0 0
    %2206 = vmatpush1.bf16.msra.mxu0 0
    %2207 = vmatprep.subr.bf16.mxu0 0
    %2208 = vmatpush1.bf16.msra.mxu0 0
    %2209 = vmatprep.subr.bf16.mxu0 0
    %2210 = vmatpush1.bf16.msra.mxu0 0
    %2211 = vmatprep.subr.bf16.mxu0 0
    %2212 = vmatpush1.bf16.msra.mxu0 0
    %2213 = vmatprep.mubr.bf16.mxu0 0
    %2214 = vmatmul.mubr.bf16.gmra.mrb[0].mxu0 %v2179
    %v2215 = vpop.f32.mrb[0].mxu0
    %v2216 = vadd.f32 0.0, %v2215
    %v2217 = vpop.f32.mrb[0].mxu0
    %v2218 = vpop.f32.mrb[0].mxu0
    %v2219 = vpop.f32.mrb[0].mxu0
    %2220 = vdwg.mxu0
    %v2221 = vadd.f32 %v1929, %v2216
    %v2222 = vxor.u32 %v2221, 2147483648
    %v2223 = vmul.f32 %v2222, 1.442695
    %v2224 = vpow.pop %v2223
    %v2225 = vadd.f32 %v2224, 1.0
    %v2226 = vrcp.pop %v2225
    %v2227 = vmul.f32 1.0, %v2226
    %v2228 = vtanh.pop %v2221
    %v2229 = vmul.f32 %v2227, %v2161
    %2231 = vrot.lane.b32.xlu0 %v2228, 64
    %v2232 = vpop.permute.xlu0 %2231
    %v2234 = vmul.f32 %v2227, %v2232
    %2236 = vrot.lane.b32.xlu0 %v2234, 32
    %v2237 = vpop.permute.xlu0 %2236
    %v2239 = vadd.f32 %v2229, %v2237
    %v2240 = vtanh.pop %v2239
    %2242 = vrot.lane.b32.xlu0 %v2240, 64
    %v2243 = vpop.permute.xlu0 %2242
    %v2245 = vmul.f32 %v2227, %v2243
    %v2246 = vpack.c.bf16 %v2245, %v2245
    %v2248 = vunpack.c.l.b16 %v2246
    %v2249 = vpack.c.b16 %v2248, %v2248
    %2250 = vrot.lane.b32.xlu0 %v2249, 32
    %v2251 = vpop.permute.xlu0 %2250
    %2253 = vst.msk [vmem:[%s735] sm:$0xf] %vm492, %v2251
    %2254 = vrot.lane.b32.xlu0 %v2246, 32
    %v2255 = vpop.permute.xlu0 %2254
    %v2257 = vsel %vm415, %v2255, 0
    %2259 = vmatprep.subr.bf16.mxu0 0
    %2260 = vmatpush1.bf16.msra.mxu0 %v1940
    %2261 = vmatprep.subr.bf16.mxu0 0
    %2262 = vmatpush1.bf16.msra.mxu0 %v1941
    %2263 = vmatprep.subr.bf16.mxu0 0
    %2264 = vmatpush1.bf16.msra.mxu0 0
    %2265 = vmatprep.subr.bf16.mxu0 0
    %2266 = vmatpush1.bf16.msra.mxu0 0
    %2267 = vmatprep.subr.bf16.mxu0 0
    %2268 = vmatpush1.bf16.msra.mxu0 0
    %2269 = vmatprep.subr.bf16.mxu0 0
    %2270 = vmatpush1.bf16.msra.mxu0 0
    %2271 = vmatprep.subr.bf16.mxu0 0
    %2272 = vmatpush1.bf16.msra.mxu0 0
    %2273 = vmatprep.subr.bf16.mxu0 0
    %2274 = vmatpush1.bf16.msra.mxu0 0
    %2275 = vmatprep.subr.bf16.mxu0 0
    %2276 = vmatpush1.bf16.msra.mxu0 0
    %2277 = vmatprep.subr.bf16.mxu0 0
    %2278 = vmatpush1.bf16.msra.mxu0 0
    %2279 = vmatprep.subr.bf16.mxu0 0
    %2280 = vmatpush1.bf16.msra.mxu0 0
    %2281 = vmatprep.subr.bf16.mxu0 0
    %2282 = vmatpush1.bf16.msra.mxu0 0
    %2283 = vmatprep.subr.bf16.mxu0 0
    %2284 = vmatpush1.bf16.msra.mxu0 0
    %2285 = vmatprep.subr.bf16.mxu0 0
    %2286 = vmatpush1.bf16.msra.mxu0 0
    %2287 = vmatprep.subr.bf16.mxu0 0
    %2288 = vmatpush1.bf16.msra.mxu0 0
    %2289 = vmatprep.subr.bf16.mxu0 0
    %2290 = vmatpush1.bf16.msra.mxu0 0
    %2291 = vmatprep.mubr.bf16.mxu0 0
    %2292 = vmatmul.mubr.bf16.gmra.mrb[0].mxu0 %v2257
    %v2293 = vpop.f32.mrb[0].mxu0
    %v2294 = vadd.f32 0.0, %v2293
    %v2295 = vpop.f32.mrb[0].mxu0
    %v2296 = vpop.f32.mrb[0].mxu0
    %v2297 = vpop.f32.mrb[0].mxu0
    %2298 = vdwg.mxu0
    %v2299 = vadd.f32 %v1929, %v2294
    %v2300 = vxor.u32 %v2299, 2147483648
    %v2301 = vmul.f32 %v2300, 1.442695
    %v2302 = vpow.pop %v2301
    %v2303 = vadd.f32 %v2302, 1.0
    %v2304 = vrcp.pop %v2303
    %v2305 = vmul.f32 1.0, %v2304
    %v2306 = vtanh.pop %v2299
    %v2307 = vmul.f32 %v2305, %v2239
    %2309 = vrot.lane.b32.xlu0 %v2306, 64
    %v2310 = vpop.permute.xlu0 %2309
    %v2312 = vmul.f32 %v2305, %v2310
    %2314 = vrot.lane.b32.xlu0 %v2312, 32
    %v2315 = vpop.permute.xlu0 %2314
    %v2317 = vadd.f32 %v2307, %v2315
    %v2318 = vtanh.pop %v2317
    %2320 = vrot.lane.b32.xlu0 %v2318, 64
    %v2321 = vpop.permute.xlu0 %2320
    %v2323 = vmul.f32 %v2305, %v2321
    %v2324 = vpack.c.bf16 %v2323, %v2323
    %v2326 = vunpack.c.l.b16 %v2324
    %v2327 = vpack.c.b16 %v2326, %v2326
    %2328 = vrot.lane.b32.xlu0 %v2327, 32
    %v2329 = vpop.permute.xlu0 %2328
    %2331 = vst.msk [vmem:[%s816] sm:$0xf] %vm492, %v2329
    %2332 = vrot.lane.b32.xlu0 %v2324, 32
    %v2333 = vpop.permute.xlu0 %2332
    %v2335 = vsel %vm415, %v2333, 0
    %2337 = vmatprep.subr.bf16.mxu0 0
    %2338 = vmatpush1.bf16.msra.mxu0 %v1940
    %2339 = vmatprep.subr.bf16.mxu0 0
    %2340 = vmatpush1.bf16.msra.mxu0 %v1941
    %2341 = vmatprep.subr.bf16.mxu0 0
    %2342 = vmatpush1.bf16.msra.mxu0 0
    %2343 = vmatprep.subr.bf16.mxu0 0
    %2344 = vmatpush1.bf16.msra.mxu0 0
    %2345 = vmatprep.subr.bf16.mxu0 0
    %2346 = vmatpush1.bf16.msra.mxu0 0
    %2347 = vmatprep.subr.bf16.mxu0 0
    %2348 = vmatpush1.bf16.msra.mxu0 0
    %2349 = vmatprep.subr.bf16.mxu0 0
    %2350 = vmatpush1.bf16.msra.mxu0 0
    %2351 = vmatprep.subr.bf16.mxu0 0
    %2352 = vmatpush1.bf16.msra.mxu0 0
    %2353 = vmatprep.subr.bf16.mxu0 0
    %2354 = vmatpush1.bf16.msra.mxu0 0
    %2355 = vmatprep.subr.bf16.mxu0 0
    %2356 = vmatpush1.bf16.msra.mxu0 0
    %2357 = vmatprep.subr.bf16.mxu0 0
    %2358 = vmatpush1.bf16.msra.mxu0 0
    %2359 = vmatprep.subr.bf16.mxu0 0
    %2360 = vmatpush1.bf16.msra.mxu0 0
    %2361 = vmatprep.subr.bf16.mxu0 0
    %2362 = vmatpush1.bf16.msra.mxu0 0
    %2363 = vmatprep.subr.bf16.mxu0 0
    %2364 = vmatpush1.bf16.msra.mxu0 0
    %2365 = vmatprep.subr.bf16.mxu0 0
    %2366 = vmatpush1.bf16.msra.mxu0 0
    %2367 = vmatprep.subr.bf16.mxu0 0
    %2368 = vmatpush1.bf16.msra.mxu0 0
    %2369 = vmatprep.mubr.bf16.mxu0 0
    %2370 = vmatmul.mubr.bf16.gmra.mrb[0].mxu0 %v2335
    %v2371 = vpop.f32.mrb[0].mxu0
    %v2372 = vadd.f32 0.0, %v2371
    %v2373 = vpop.f32.mrb[0].mxu0
    %v2374 = vpop.f32.mrb[0].mxu0
    %v2375 = vpop.f32.mrb[0].mxu0
    %2376 = vdwg.mxu0
    %v2377 = vadd.f32 %v1929, %v2372
    %v2378 = vxor.u32 %v2377, 2147483648
    %v2379 = vmul.f32 %v2378, 1.442695
    %v2380 = vpow.pop %v2379
    %v2381 = vadd.f32 %v2380, 1.0
    %v2382 = vrcp.pop %v2381
    %v2383 = vmul.f32 1.0, %v2382
    %v2384 = vtanh.pop %v2377
    %v2385 = vmul.f32 %v2383, %v2317
    %2387 = vrot.lane.b32.xlu0 %v2384, 64
    %v2388 = vpop.permute.xlu0 %2387
    %v2390 = vmul.f32 %v2383, %v2388
    %2392 = vrot.lane.b32.xlu0 %v2390, 32
    %v2393 = vpop.permute.xlu0 %2392
    %v2395 = vadd.f32 %v2385, %v2393
    %v2396 = vtanh.pop %v2395
    %2398 = vrot.lane.b32.xlu0 %v2396, 64
    %v2399 = vpop.permute.xlu0 %2398
    %v2401 = vmul.f32 %v2383, %v2399
    %v2402 = vpack.c.bf16 %v2401, %v2401
    %v2404 = vunpack.c.l.b16 %v2402
    %v2405 = vpack.c.b16 %v2404, %v2404
    %2406 = vrot.lane.b32.xlu0 %v2405, 32
    %v2407 = vpop.permute.xlu0 %2406
    %2409 = vst.msk [vmem:[%s897] sm:$0xf] %vm492, %v2407
    %2410 = vrot.lane.b32.xlu0 %v2402, 32
    %v2411 = vpop.permute.xlu0 %2410
    %v2413 = vsel %vm415, %v2411, 0
    %2415 = vmatprep.subr.bf16.mxu0 0
    %2416 = vmatpush1.bf16.msra.mxu0 %v1940
    %2417 = vmatprep.subr.bf16.mxu0 0
    %2418 = vmatpush1.bf16.msra.mxu0 %v1941
    %2419 = vmatprep.subr.bf16.mxu0 0
    %2420 = vmatpush1.bf16.msra.mxu0 0
    %2421 = vmatprep.subr.bf16.mxu0 0
    %2422 = vmatpush1.bf16.msra.mxu0 0
    %2423 = vmatprep.subr.bf16.mxu0 0
    %2424 = vmatpush1.bf16.msra.mxu0 0
    %2425 = vmatprep.subr.bf16.mxu0 0
    %2426 = vmatpush1.bf16.msra.mxu0 0
    %2427 = vmatprep.subr.bf16.mxu0 0
    %2428 = vmatpush1.bf16.msra.mxu0 0
    %2429 = vmatprep.subr.bf16.mxu0 0
    %2430 = vmatpush1.bf16.msra.mxu0 0
    %2431 = vmatprep.subr.bf16.mxu0 0
    %2432 = vmatpush1.bf16.msra.mxu0 0
    %2433 = vmatprep.subr.bf16.mxu0 0
    %2434 = vmatpush1.bf16.msra.mxu0 0
    %2435 = vmatprep.subr.bf16.mxu0 0
    %2436 = vmatpush1.bf16.msra.mxu0 0
    %2437 = vmatprep.subr.bf16.mxu0 0
    %2438 = vmatpush1.bf16.msra.mxu0 0
    %2439 = vmatprep.subr.bf16.mxu0 0
    %2440 = vmatpush1.bf16.msra.mxu0 0
    %2441 = vmatprep.subr.bf16.mxu0 0
    %2442 = vmatpush1.bf16.msra.mxu0 0
    %2443 = vmatprep.subr.bf16.mxu0 0
    %2444 = vmatpush1.bf16.msra.mxu0 0
    %2445 = vmatprep.subr.bf16.mxu0 0
    %2446 = vmatpush1.bf16.msra.mxu0 0
    %2447 = vmatprep.mubr.bf16.mxu0 0
    %2448 = vmatmul.mubr.bf16.gmra.mrb[0].mxu0 %v2413
    %v2449 = vpop.f32.mrb[0].mxu0
    %v2450 = vadd.f32 0.0, %v2449
    %v2451 = vpop.f32.mrb[0].mxu0
    %v2452 = vpop.f32.mrb[0].mxu0
    %v2453 = vpop.f32.mrb[0].mxu0
    %2454 = vdwg.mxu0
    %v2455 = vadd.f32 %v1929, %v2450
    %v2456 = vxor.u32 %v2455, 2147483648
    %v2457 = vmul.f32 %v2456, 1.442695
    %v2458 = vpow.pop %v2457
    %v2459 = vadd.f32 %v2458, 1.0
    %v2460 = vrcp.pop %v2459
    %v2461 = vmul.f32 1.0, %v2460
    %v2462 = vtanh.pop %v2455
    %v2463 = vmul.f32 %v2461, %v2395
    %2465 = vrot.lane.b32.xlu0 %v2462, 64
    %v2466 = vpop.permute.xlu0 %2465
    %v2468 = vmul.f32 %v2461, %v2466
    %2470 = vrot.lane.b32.xlu0 %v2468, 32
    %v2471 = vpop.permute.xlu0 %2470
    %v2473 = vadd.f32 %v2463, %v2471
    %v2474 = vtanh.pop %v2473
    %2476 = vrot.lane.b32.xlu0 %v2474, 64
    %v2477 = vpop.permute.xlu0 %2476
    %v2479 = vmul.f32 %v2461, %v2477
    %v2480 = vpack.c.bf16 %v2479, %v2479
    %v2482 = vunpack.c.l.b16 %v2480
    %v2483 = vpack.c.b16 %v2482, %v2482
    %2484 = vrot.lane.b32.xlu0 %v2483, 32
    %v2485 = vpop.permute.xlu0 %2484
    %2487 = vst.msk [vmem:[%s978] sm:$0xf] %vm492, %v2485
    %2488 = vrot.lane.b32.xlu0 %v2480, 32
    %v2489 = vpop.permute.xlu0 %2488
    %v2491 = vsel %vm415, %v2489, 0
    %2493 = vmatprep.subr.bf16.mxu0 0
    %2494 = vmatpush1.bf16.msra.mxu0 %v1940
    %2495 = vmatprep.subr.bf16.mxu0 0
    %2496 = vmatpush1.bf16.msra.mxu0 %v1941
    %2497 = vmatprep.subr.bf16.mxu0 0
    %2498 = vmatpush1.bf16.msra.mxu0 0
    %2499 = vmatprep.subr.bf16.mxu0 0
    %2500 = vmatpush1.bf16.msra.mxu0 0
    %2501 = vmatprep.subr.bf16.mxu0 0
    %2502 = vmatpush1.bf16.msra.mxu0 0
    %2503 = vmatprep.subr.bf16.mxu0 0
    %2504 = vmatpush1.bf16.msra.mxu0 0
    %2505 = vmatprep.subr.bf16.mxu0 0
    %2506 = vmatpush1.bf16.msra.mxu0 0
    %2507 = vmatprep.subr.bf16.mxu0 0
    %2508 = vmatpush1.bf16.msra.mxu0 0
    %2509 = vmatprep.subr.bf16.mxu0 0
    %2510 = vmatpush1.bf16.msra.mxu0 0
    %2511 = vmatprep.subr.bf16.mxu0 0
    %2512 = vmatpush1.bf16.msra.mxu0 0
    %2513 = vmatprep.subr.bf16.mxu0 0
    %2514 = vmatpush1.bf16.msra.mxu0 0
    %2515 = vmatprep.subr.bf16.mxu0 0
    %2516 = vmatpush1.bf16.msra.mxu0 0
    %2517 = vmatprep.subr.bf16.mxu0 0
    %2518 = vmatpush1.bf16.msra.mxu0 0
    %2519 = vmatprep.subr.bf16.mxu0 0
    %2520 = vmatpush1.bf16.msra.mxu0 0
    %2521 = vmatprep.subr.bf16.mxu0 0
    %2522 = vmatpush1.bf16.msra.mxu0 0
    %2523 = vmatprep.subr.bf16.mxu0 0
    %2524 = vmatpush1.bf16.msra.mxu0 0
    %2525 = vmatprep.mubr.bf16.mxu0 0
    %2526 = vmatmul.mubr.bf16.gmra.mrb[0].mxu0 %v2491
    %v2527 = vpop.f32.mrb[0].mxu0
    %v2528 = vadd.f32 0.0, %v2527
    %v2529 = vpop.f32.mrb[0].mxu0
    %v2530 = vpop.f32.mrb[0].mxu0
    %v2531 = vpop.f32.mrb[0].mxu0
    %2532 = vdwg.mxu0
    %v2533 = vadd.f32 %v1929, %v2528
    %v2534 = vxor.u32 %v2533, 2147483648
    %v2535 = vmul.f32 %v2534, 1.442695
    %v2536 = vpow.pop %v2535
    %v2537 = vadd.f32 %v2536, 1.0
    %v2538 = vrcp.pop %v2537
    %v2539 = vmul.f32 1.0, %v2538
    %v2540 = vtanh.pop %v2533
    %v2541 = vmul.f32 %v2539, %v2473
    %2543 = vrot.lane.b32.xlu0 %v2540, 64
    %v2544 = vpop.permute.xlu0 %2543
    %v2546 = vmul.f32 %v2539, %v2544
    %2548 = vrot.lane.b32.xlu0 %v2546, 32
    %v2549 = vpop.permute.xlu0 %2548
    %v2551 = vadd.f32 %v2541, %v2549
    %v2552 = vtanh.pop %v2551
    %2554 = vrot.lane.b32.xlu0 %v2552, 64
    %v2555 = vpop.permute.xlu0 %2554
    %v2557 = vmul.f32 %v2539, %v2555
    %v2558 = vpack.c.bf16 %v2557, %v2557
    %v2560 = vunpack.c.l.b16 %v2558
    %v2561 = vpack.c.b16 %v2560, %v2560
    %2562 = vrot.lane.b32.xlu0 %v2561, 32
    %v2563 = vpop.permute.xlu0 %2562
    %2565 = vst.msk [vmem:[%s1059] sm:$0xf] %vm492, %v2563
    %v2566 = vld [vmem:[#allocation2] sm:$0xf]
    %v2567 = vld [vmem:[#allocation2 + $0x4] sm:$0xf]
    %v2568 = vld [vmem:[#allocation2 + $0x8] sm:$0xf]
    %v2569 = vld [vmem:[#allocation2 + $0xc] sm:$0xf]
    %v2570 = vld [vmem:[#allocation2 + $0x10] sm:$0xf]
    %v2571 = vld [vmem:[#allocation2 + $0x14] sm:$0xf]
    %v2572 = vld [vmem:[#allocation2 + $0x18] sm:$0xf]
    %v2573 = vld [vmem:[#allocation2 + $0x1c] sm:$0xf]
    %v2574 = vld [vmem:[#allocation25] sm:$0xf]
    %v2575 = vld [vmem:[#allocation25 + $0x4] sm:$0xf]
    %v2576 = vld [vmem:[#allocation25 + $0x8] sm:$0xf]
    %v2577 = vld [vmem:[#allocation25 + $0xc] sm:$0xf]
    %v2578 = vld [vmem:[#allocation28] sm:$0x1]
    %v2580 = vlaneseq
    %v2581 = vshrl.u32 %v2580, 7
    %v2582 = vsub.s32 0, %v2581
    %v2583 = vrot.slane %v2578, %v2582
    %v2593 = vunpack.c.l.b16 %v2566
    %v2594 = vunpack.c.l.b16 %v2567
    %v2595 = vunpack.c.l.b16 %v2568
    %v2596 = vunpack.c.l.b16 %v2569
    %v2597 = vunpack.c.l.b16 %v2570
    %v2598 = vunpack.c.l.b16 %v2571
    %v2599 = vunpack.c.l.b16 %v2572
    %v2600 = vunpack.c.l.b16 %v2573
    %v2601 = vpack.c.b16 %v2594, %v2593
    %v2602 = vpack.c.b16 %v2596, %v2595
    %v2603 = vpack.c.b16 %v2598, %v2597
    %v2604 = vpack.c.b16 %v2600, %v2599
    %v2609 = vunpack.c.l.b16 %v2574
    %v2610 = vunpack.c.l.b16 %v2575
    %v2611 = vunpack.c.l.b16 %v2576
    %v2612 = vunpack.c.l.b16 %v2577
    %v2613 = vpack.c.b16 %v2610, %v2609
    %v2614 = vpack.c.b16 %v2612, %v2611
    %v2618 = vsel %vm415, %v2601, 0
    %v2621 = vsel %vm415, %v2602, 0
    %v2624 = vsel %vm415, %v2603, 0
    %v2627 = vsel %vm415, %v2604, 0
    %2629 = vmatprep.subr.bf16.mxu0 0
    %2630 = vmatpush1.bf16.msra.mxu0 %v2613
    %2631 = vmatprep.subr.bf16.mxu0 0
    %2632 = vmatpush1.bf16.msra.mxu0 %v2614
    %2633 = vmatprep.subr.bf16.mxu0 0
    %2634 = vmatpush1.bf16.msra.mxu0 0
    %2635 = vmatprep.subr.bf16.mxu0 0
    %2636 = vmatpush1.bf16.msra.mxu0 0
    %2637 = vmatprep.subr.bf16.mxu0 0
    %2638 = vmatpush1.bf16.msra.mxu0 0
    %2639 = vmatprep.subr.bf16.mxu0 0
    %2640 = vmatpush1.bf16.msra.mxu0 0
    %2641 = vmatprep.subr.bf16.mxu0 0
    %2642 = vmatpush1.bf16.msra.mxu0 0
    %2643 = vmatprep.subr.bf16.mxu0 0
    %2644 = vmatpush1.bf16.msra.mxu0 0
    %2645 = vmatprep.subr.bf16.mxu0 0
    %2646 = vmatpush1.bf16.msra.mxu0 0
    %2647 = vmatprep.subr.bf16.mxu0 0
    %2648 = vmatpush1.bf16.msra.mxu0 0
    %2649 = vmatprep.subr.bf16.mxu0 0
    %2650 = vmatpush1.bf16.msra.mxu0 0
    %2651 = vmatprep.subr.bf16.mxu0 0
    %2652 = vmatpush1.bf16.msra.mxu0 0
    %2653 = vmatprep.subr.bf16.mxu0 0
    %2654 = vmatpush1.bf16.msra.mxu0 0
    %2655 = vmatprep.subr.bf16.mxu0 0
    %2656 = vmatpush1.bf16.msra.mxu0 0
    %2657 = vmatprep.subr.bf16.mxu0 0
    %2658 = vmatpush1.bf16.msra.mxu0 0
    %2659 = vmatprep.subr.bf16.mxu0 0
    %2660 = vmatpush1.bf16.msra.mxu0 0
    %2661 = vmatprep.mubr.bf16.mxu0 0
    %2662 = vmatmul.mubr.bf16.gmra.mrb[0].mxu0 %v2618
    %v2663 = vpop.f32.mrb[0].mxu0
    %v2664 = vadd.f32 %v2583, %v2663
    %v2665 = vpop.f32.mrb[0].mxu0
    %v2666 = vpop.f32.mrb[0].mxu0
    %v2667 = vadd.f32 %v2583, %v2666
    %v2668 = vpop.f32.mrb[0].mxu0
    %2669 = vmatprep.mubr.bf16.mxu0 0
    %2670 = vmatmul.mubr.bf16.gmra.mrb[0].mxu0 %v2621
    %v2671 = vpop.f32.mrb[0].mxu0
    %v2672 = vadd.f32 %v2583, %v2671
    %v2673 = vpop.f32.mrb[0].mxu0
    %v2674 = vpop.f32.mrb[0].mxu0
    %v2675 = vadd.f32 %v2583, %v2674
    %v2676 = vpop.f32.mrb[0].mxu0
    %2677 = vmatprep.mubr.bf16.mxu0 0
    %2678 = vmatmul.mubr.bf16.gmra.mrb[0].mxu0 %v2624
    %v2679 = vpop.f32.mrb[0].mxu0
    %v2680 = vadd.f32 %v2583, %v2679
    %v2681 = vpop.f32.mrb[0].mxu0
    %v2682 = vpop.f32.mrb[0].mxu0
    %v2683 = vadd.f32 %v2583, %v2682
    %v2684 = vpop.f32.mrb[0].mxu0
    %2685 = vmatprep.mubr.bf16.mxu0 0
    %2686 = vmatmul.mubr.bf16.gmra.mrb[0].mxu0 %v2627
    %v2687 = vpop.f32.mrb[0].mxu0
    %v2688 = vadd.f32 %v2583, %v2687
    %v2689 = vpop.f32.mrb[0].mxu0
    %v2690 = vpop.f32.mrb[0].mxu0
    %v2691 = vadd.f32 %v2583, %v2690
    %v2692 = vpop.f32.mrb[0].mxu0
    %2693 = vdwg.mxu0
    %2694 = vst [vmem:[#allocation3] sm:$0xff] %v2664
    %2695 = vst [vmem:[#allocation3 + $0x8] sm:$0xff] %v2667
    %2696 = vst [vmem:[#allocation3 + $0x10] sm:$0xff] %v2672
    %2697 = vst [vmem:[#allocation3 + $0x18] sm:$0xff] %v2675
    %2698 = vst [vmem:[#allocation3 + $0x20] sm:$0xff] %v2680
    %2699 = vst [vmem:[#allocation3 + $0x28] sm:$0xff] %v2683
    %2700 = vst [vmem:[#allocation3 + $0x30] sm:$0xff] %v2688
    %2701 = vst [vmem:[#allocation3 + $0x38] sm:$0xff] %v2691
    %v2702 = vld [vmem:[#allocation27] sm:$0xf]
    %v2703 = vld [vmem:[#allocation27 + $0x4] sm:$0xf]
    %v2704 = vld [vmem:[#allocation27 + $0x8] sm:$0xf]
    %v2705 = vld [vmem:[#allocation27 + $0xc] sm:$0xf]
    %v2710 = vunpack.c.l.b16 %v2702
    %v2711 = vunpack.c.l.b16 %v2703
    %v2712 = vunpack.c.l.b16 %v2704
    %v2713 = vunpack.c.l.b16 %v2705
    %v2714 = vpack.c.b16 %v2711, %v2710
    %v2715 = vpack.c.b16 %v2713, %v2712
    %2718 = vmatprep.subr.bf16.mxu0 0
    %2719 = vmatpush1.bf16.msra.mxu0 %v2714
    %2720 = vmatprep.subr.bf16.mxu0 0
    %2721 = vmatpush1.bf16.msra.mxu0 %v2715
    %2722 = vmatprep.subr.bf16.mxu0 0
    %2723 = vmatpush1.bf16.msra.mxu0 0
    %2724 = vmatprep.subr.bf16.mxu0 0
    %2725 = vmatpush1.bf16.msra.mxu0 0
    %2726 = vmatprep.subr.bf16.mxu0 0
    %2727 = vmatpush1.bf16.msra.mxu0 0
    %2728 = vmatprep.subr.bf16.mxu0 0
    %2729 = vmatpush1.bf16.msra.mxu0 0
    %2730 = vmatprep.subr.bf16.mxu0 0
    %2731 = vmatpush1.bf16.msra.mxu0 0
    %2732 = vmatprep.subr.bf16.mxu0 0
    %2733 = vmatpush1.bf16.msra.mxu0 0
    %2734 = vmatprep.subr.bf16.mxu0 0
    %2735 = vmatpush1.bf16.msra.mxu0 0
    %2736 = vmatprep.subr.bf16.mxu0 0
    %2737 = vmatpush1.bf16.msra.mxu0 0
    %2738 = vmatprep.subr.bf16.mxu0 0
    %2739 = vmatpush1.bf16.msra.mxu0 0
    %2740 = vmatprep.subr.bf16.mxu0 0
    %2741 = vmatpush1.bf16.msra.mxu0 0
    %2742 = vmatprep.subr.bf16.mxu0 0
    %2743 = vmatpush1.bf16.msra.mxu0 0
    %2744 = vmatprep.subr.bf16.mxu0 0
    %2745 = vmatpush1.bf16.msra.mxu0 0
    %2746 = vmatprep.subr.bf16.mxu0 0
    %2747 = vmatpush1.bf16.msra.mxu0 0
    %2748 = vmatprep.subr.bf16.mxu0 0
    %2749 = vmatpush1.bf16.msra.mxu0 0
    %2750 = vmatprep.mubr.bf16.mxu0 0
    %2751 = vmatmul.mubr.bf16.gmra.mrb[0].mxu0 %v1945
    %v2752 = vpop.f32.mrb[0].mxu0
    %v2753 = vadd.f32 0.0, %v2752
    %v2754 = vpop.f32.mrb[0].mxu0
    %v2755 = vpop.f32.mrb[0].mxu0
    %v2756 = vpop.f32.mrb[0].mxu0
    %2757 = vdwg.mxu0
    %v2758 = vld [vmem:[#allocation3] sm:$0xff]
    %v2759 = vadd.f32 %v2758, %v2753
    %v2760 = vxor.u32 %v2759, 2147483648
    %v2761 = vmul.f32 %v2760, 1.442695
    %v2762 = vpow.pop %v2761
    %v2763 = vadd.f32 %v2762, 1.0
    %v2764 = vrcp.pop %v2763
    %v2765 = vmul.f32 1.0, %v2764
    %v2766 = vtanh.pop %v2759
    %v2767 = vmul.f32 %v2765, 0.0
    %2769 = vrot.lane.b32.xlu0 %v2766, 64
    %v2770 = vpop.permute.xlu0 %2769
    %v2772 = vmul.f32 %v2765, %v2770
    %2774 = vrot.lane.b32.xlu0 %v2772, 32
    %v2775 = vpop.permute.xlu0 %2774
    %v2777 = vadd.f32 %v2767, %v2775
    %v2778 = vtanh.pop %v2777
    %2780 = vrot.lane.b32.xlu0 %v2778, 64
    %v2781 = vpop.permute.xlu0 %2780
    %v2783 = vmul.f32 %v2765, %v2781
    %v2784 = vpack.c.bf16 %v2783, %v2783
    %v2786 = vunpack.c.l.b16 %v2784
    %v2787 = vpack.c.b16 %v2786, %v2786
    %2788 = vrot.lane.b32.xlu0 %v2787, 32
    %v2789 = vpop.permute.xlu0 %2788
    %2791 = vst.msk [vmem:[#allocation2] sm:$0xf] %vm492, %v2789
    %2792 = vrot.lane.b32.xlu0 %v2784, 32
    %v2793 = vpop.permute.xlu0 %2792
    %v2795 = vsel %vm415, %v2793, 0
    %2797 = vmatprep.subr.bf16.mxu0 0
    %2798 = vmatpush1.bf16.msra.mxu0 %v2714
    %2799 = vmatprep.subr.bf16.mxu0 0
    %2800 = vmatpush1.bf16.msra.mxu0 %v2715
    %2801 = vmatprep.subr.bf16.mxu0 0
    %2802 = vmatpush1.bf16.msra.mxu0 0
    %2803 = vmatprep.subr.bf16.mxu0 0
    %2804 = vmatpush1.bf16.msra.mxu0 0
    %2805 = vmatprep.subr.bf16.mxu0 0
    %2806 = vmatpush1.bf16.msra.mxu0 0
    %2807 = vmatprep.subr.bf16.mxu0 0
    %2808 = vmatpush1.bf16.msra.mxu0 0
    %2809 = vmatprep.subr.bf16.mxu0 0
    %2810 = vmatpush1.bf16.msra.mxu0 0
    %2811 = vmatprep.subr.bf16.mxu0 0
    %2812 = vmatpush1.bf16.msra.mxu0 0
    %2813 = vmatprep.subr.bf16.mxu0 0
    %2814 = vmatpush1.bf16.msra.mxu0 0
    %2815 = vmatprep.subr.bf16.mxu0 0
    %2816 = vmatpush1.bf16.msra.mxu0 0
    %2817 = vmatprep.subr.bf16.mxu0 0
    %2818 = vmatpush1.bf16.msra.mxu0 0
    %2819 = vmatprep.subr.bf16.mxu0 0
    %2820 = vmatpush1.bf16.msra.mxu0 0
    %2821 = vmatprep.subr.bf16.mxu0 0
    %2822 = vmatpush1.bf16.msra.mxu0 0
    %2823 = vmatprep.subr.bf16.mxu0 0
    %2824 = vmatpush1.bf16.msra.mxu0 0
    %2825 = vmatprep.subr.bf16.mxu0 0
    %2826 = vmatpush1.bf16.msra.mxu0 0
    %2827 = vmatprep.subr.bf16.mxu0 0
    %2828 = vmatpush1.bf16.msra.mxu0 0
    %2829 = vmatprep.mubr.bf16.mxu0 0
    %2830 = vmatmul.mubr.bf16.gmra.mrb[0].mxu0 %v2795
    %v2831 = vpop.f32.mrb[0].mxu0
    %v2832 = vadd.f32 0.0, %v2831
    %v2833 = vpop.f32.mrb[0].mxu0
    %v2834 = vpop.f32.mrb[0].mxu0
    %v2835 = vpop.f32.mrb[0].mxu0
    %2836 = vdwg.mxu0
    %v2837 = vld [vmem:[%s539] sm:$0xff]
    %v2838 = vadd.f32 %v2837, %v2832
    %v2839 = vxor.u32 %v2838, 2147483648
    %v2840 = vmul.f32 %v2839, 1.442695
    %v2841 = vpow.pop %v2840
    %v2842 = vadd.f32 %v2841, 1.0
    %v2843 = vrcp.pop %v2842
    %v2844 = vmul.f32 1.0, %v2843
    %v2845 = vtanh.pop %v2838
    %v2846 = vmul.f32 %v2844, %v2777
    %2848 = vrot.lane.b32.xlu0 %v2845, 64
    %v2849 = vpop.permute.xlu0 %2848
    %v2851 = vmul.f32 %v2844, %v2849
    %2853 = vrot.lane.b32.xlu0 %v2851, 32
    %v2854 = vpop.permute.xlu0 %2853
    %v2856 = vadd.f32 %v2846, %v2854
    %v2857 = vtanh.pop %v2856
    %2859 = vrot.lane.b32.xlu0 %v2857, 64
    %v2860 = vpop.permute.xlu0 %2859
    %v2862 = vmul.f32 %v2844, %v2860
    %v2863 = vpack.c.bf16 %v2862, %v2862
    %v2865 = vunpack.c.l.b16 %v2863
    %v2866 = vpack.c.b16 %v2865, %v2865
    %2867 = vrot.lane.b32.xlu0 %v2866, 32
    %v2868 = vpop.permute.xlu0 %2867
    %2870 = vst.msk [vmem:[%s573] sm:$0xf] %vm492, %v2868
    %2871 = vrot.lane.b32.xlu0 %v2863, 32
    %v2872 = vpop.permute.xlu0 %2871
    %v2874 = vsel %vm415, %v2872, 0
    %2876 = vmatprep.subr.bf16.mxu0 0
    %2877 = vmatpush1.bf16.msra.mxu0 %v2714
    %2878 = vmatprep.subr.bf16.mxu0 0
    %2879 = vmatpush1.bf16.msra.mxu0 %v2715
    %2880 = vmatprep.subr.bf16.mxu0 0
    %2881 = vmatpush1.bf16.msra.mxu0 0
    %2882 = vmatprep.subr.bf16.mxu0 0
    %2883 = vmatpush1.bf16.msra.mxu0 0
    %2884 = vmatprep.subr.bf16.mxu0 0
    %2885 = vmatpush1.bf16.msra.mxu0 0
    %2886 = vmatprep.subr.bf16.mxu0 0
    %2887 = vmatpush1.bf16.msra.mxu0 0
    %2888 = vmatprep.subr.bf16.mxu0 0
    %2889 = vmatpush1.bf16.msra.mxu0 0
    %2890 = vmatprep.subr.bf16.mxu0 0
    %2891 = vmatpush1.bf16.msra.mxu0 0
    %2892 = vmatprep.subr.bf16.mxu0 0
    %2893 = vmatpush1.bf16.msra.mxu0 0
    %2894 = vmatprep.subr.bf16.mxu0 0
    %2895 = vmatpush1.bf16.msra.mxu0 0
    %2896 = vmatprep.subr.bf16.mxu0 0
    %2897 = vmatpush1.bf16.msra.mxu0 0
    %2898 = vmatprep.subr.bf16.mxu0 0
    %2899 = vmatpush1.bf16.msra.mxu0 0
    %2900 = vmatprep.subr.bf16.mxu0 0
    %2901 = vmatpush1.bf16.msra.mxu0 0
    %2902 = vmatprep.subr.bf16.mxu0 0
    %2903 = vmatpush1.bf16.msra.mxu0 0
    %2904 = vmatprep.subr.bf16.mxu0 0
    %2905 = vmatpush1.bf16.msra.mxu0 0
    %2906 = vmatprep.subr.bf16.mxu0 0
    %2907 = vmatpush1.bf16.msra.mxu0 0
    %2908 = vmatprep.mubr.bf16.mxu0 0
    %2909 = vmatmul.mubr.bf16.gmra.mrb[0].mxu0 %v2874
    %v2910 = vpop.f32.mrb[0].mxu0
    %v2911 = vadd.f32 0.0, %v2910
    %v2912 = vpop.f32.mrb[0].mxu0
    %v2913 = vpop.f32.mrb[0].mxu0
    %v2914 = vpop.f32.mrb[0].mxu0
    %2915 = vdwg.mxu0
    %v2916 = vld [vmem:[%s620] sm:$0xff]
    %v2917 = vadd.f32 %v2916, %v2911
    %v2918 = vxor.u32 %v2917, 2147483648
    %v2919 = vmul.f32 %v2918, 1.442695
    %v2920 = vpow.pop %v2919
    %v2921 = vadd.f32 %v2920, 1.0
    %v2922 = vrcp.pop %v2921
    %v2923 = vmul.f32 1.0, %v2922
    %v2924 = vtanh.pop %v2917
    %v2925 = vmul.f32 %v2923, %v2856
    %2927 = vrot.lane.b32.xlu0 %v2924, 64
    %v2928 = vpop.permute.xlu0 %2927
    %v2930 = vmul.f32 %v2923, %v2928
    %2932 = vrot.lane.b32.xlu0 %v2930, 32
    %v2933 = vpop.permute.xlu0 %2932
    %v2935 = vadd.f32 %v2925, %v2933
    %v2936 = vtanh.pop %v2935
    %2938 = vrot.lane.b32.xlu0 %v2936, 64
    %v2939 = vpop.permute.xlu0 %2938
    %v2941 = vmul.f32 %v2923, %v2939
    %v2942 = vpack.c.bf16 %v2941, %v2941
    %v2944 = vunpack.c.l.b16 %v2942
    %v2945 = vpack.c.b16 %v2944, %v2944
    %2946 = vrot.lane.b32.xlu0 %v2945, 32
    %v2947 = vpop.permute.xlu0 %2946
    %2949 = vst.msk [vmem:[%s654] sm:$0xf] %vm492, %v2947
    %2950 = vrot.lane.b32.xlu0 %v2942, 32
    %v2951 = vpop.permute.xlu0 %2950
    %v2953 = vsel %vm415, %v2951, 0
    %2955 = vmatprep.subr.bf16.mxu0 0
    %2956 = vmatpush1.bf16.msra.mxu0 %v2714
    %2957 = vmatprep.subr.bf16.mxu0 0
    %2958 = vmatpush1.bf16.msra.mxu0 %v2715
    %2959 = vmatprep.subr.bf16.mxu0 0
    %2960 = vmatpush1.bf16.msra.mxu0 0
    %2961 = vmatprep.subr.bf16.mxu0 0
    %2962 = vmatpush1.bf16.msra.mxu0 0
    %2963 = vmatprep.subr.bf16.mxu0 0
    %2964 = vmatpush1.bf16.msra.mxu0 0
    %2965 = vmatprep.subr.bf16.mxu0 0
    %2966 = vmatpush1.bf16.msra.mxu0 0
    %2967 = vmatprep.subr.bf16.mxu0 0
    %2968 = vmatpush1.bf16.msra.mxu0 0
    %2969 = vmatprep.subr.bf16.mxu0 0
    %2970 = vmatpush1.bf16.msra.mxu0 0
    %2971 = vmatprep.subr.bf16.mxu0 0
    %2972 = vmatpush1.bf16.msra.mxu0 0
    %2973 = vmatprep.subr.bf16.mxu0 0
    %2974 = vmatpush1.bf16.msra.mxu0 0
    %2975 = vmatprep.subr.bf16.mxu0 0
    %2976 = vmatpush1.bf16.msra.mxu0 0
    %2977 = vmatprep.subr.bf16.mxu0 0
    %2978 = vmatpush1.bf16.msra.mxu0 0
    %2979 = vmatprep.subr.bf16.mxu0 0
    %2980 = vmatpush1.bf16.msra.mxu0 0
    %2981 = vmatprep.subr.bf16.mxu0 0
    %2982 = vmatpush1.bf16.msra.mxu0 0
    %2983 = vmatprep.subr.bf16.mxu0 0
    %2984 = vmatpush1.bf16.msra.mxu0 0
    %2985 = vmatprep.subr.bf16.mxu0 0
    %2986 = vmatpush1.bf16.msra.mxu0 0
    %2987 = vmatprep.mubr.bf16.mxu0 0
    %2988 = vmatmul.mubr.bf16.gmra.mrb[0].mxu0 %v2953
    %v2989 = vpop.f32.mrb[0].mxu0
    %v2990 = vadd.f32 0.0, %v2989
    %v2991 = vpop.f32.mrb[0].mxu0
    %v2992 = vpop.f32.mrb[0].mxu0
    %v2993 = vpop.f32.mrb[0].mxu0
    %2994 = vdwg.mxu0
    %v2995 = vld [vmem:[%s701] sm:$0xff]
    %v2996 = vadd.f32 %v2995, %v2990
    %v2997 = vxor.u32 %v2996, 2147483648
    %v2998 = vmul.f32 %v2997, 1.442695
    %v2999 = vpow.pop %v2998
    %v3000 = vadd.f32 %v2999, 1.0
    %v3001 = vrcp.pop %v3000
    %v3002 = vmul.f32 1.0, %v3001
    %v3003 = vtanh.pop %v2996
    %v3004 = vmul.f32 %v3002, %v2935
    %3006 = vrot.lane.b32.xlu0 %v3003, 64
    %v3007 = vpop.permute.xlu0 %3006
    %v3009 = vmul.f32 %v3002, %v3007
    %3011 = vrot.lane.b32.xlu0 %v3009, 32
    %v3012 = vpop.permute.xlu0 %3011
    %v3014 = vadd.f32 %v3004, %v3012
    %v3015 = vtanh.pop %v3014
    %3017 = vrot.lane.b32.xlu0 %v3015, 64
    %v3018 = vpop.permute.xlu0 %3017
    %v3020 = vmul.f32 %v3002, %v3018
    %v3021 = vpack.c.bf16 %v3020, %v3020
    %v3023 = vunpack.c.l.b16 %v3021
    %v3024 = vpack.c.b16 %v3023, %v3023
    %3025 = vrot.lane.b32.xlu0 %v3024, 32
    %v3026 = vpop.permute.xlu0 %3025
    %3028 = vst.msk [vmem:[%s735] sm:$0xf] %vm492, %v3026
    %3029 = vrot.lane.b32.xlu0 %v3021, 32
    %v3030 = vpop.permute.xlu0 %3029
    %v3032 = vsel %vm415, %v3030, 0
    %3034 = vmatprep.subr.bf16.mxu0 0
    %3035 = vmatpush1.bf16.msra.mxu0 %v2714
    %3036 = vmatprep.subr.bf16.mxu0 0
    %3037 = vmatpush1.bf16.msra.mxu0 %v2715
    %3038 = vmatprep.subr.bf16.mxu0 0
    %3039 = vmatpush1.bf16.msra.mxu0 0
    %3040 = vmatprep.subr.bf16.mxu0 0
    %3041 = vmatpush1.bf16.msra.mxu0 0
    %3042 = vmatprep.subr.bf16.mxu0 0
    %3043 = vmatpush1.bf16.msra.mxu0 0
    %3044 = vmatprep.subr.bf16.mxu0 0
    %3045 = vmatpush1.bf16.msra.mxu0 0
    %3046 = vmatprep.subr.bf16.mxu0 0
    %3047 = vmatpush1.bf16.msra.mxu0 0
    %3048 = vmatprep.subr.bf16.mxu0 0
    %3049 = vmatpush1.bf16.msra.mxu0 0
    %3050 = vmatprep.subr.bf16.mxu0 0
    %3051 = vmatpush1.bf16.msra.mxu0 0
    %3052 = vmatprep.subr.bf16.mxu0 0
    %3053 = vmatpush1.bf16.msra.mxu0 0
    %3054 = vmatprep.subr.bf16.mxu0 0
    %3055 = vmatpush1.bf16.msra.mxu0 0
    %3056 = vmatprep.subr.bf16.mxu0 0
    %3057 = vmatpush1.bf16.msra.mxu0 0
    %3058 = vmatprep.subr.bf16.mxu0 0
    %3059 = vmatpush1.bf16.msra.mxu0 0
    %3060 = vmatprep.subr.bf16.mxu0 0
    %3061 = vmatpush1.bf16.msra.mxu0 0
    %3062 = vmatprep.subr.bf16.mxu0 0
    %3063 = vmatpush1.bf16.msra.mxu0 0
    %3064 = vmatprep.subr.bf16.mxu0 0
    %3065 = vmatpush1.bf16.msra.mxu0 0
    %3066 = vmatprep.mubr.bf16.mxu0 0
    %3067 = vmatmul.mubr.bf16.gmra.mrb[0].mxu0 %v3032
    %v3068 = vpop.f32.mrb[0].mxu0
    %v3069 = vadd.f32 0.0, %v3068
    %v3070 = vpop.f32.mrb[0].mxu0
    %v3071 = vpop.f32.mrb[0].mxu0
    %v3072 = vpop.f32.mrb[0].mxu0
    %3073 = vdwg.mxu0
    %v3074 = vld [vmem:[%s782] sm:$0xff]
    %v3075 = vadd.f32 %v3074, %v3069
    %v3076 = vxor.u32 %v3075, 2147483648
    %v3077 = vmul.f32 %v3076, 1.442695
    %v3078 = vpow.pop %v3077
    %v3079 = vadd.f32 %v3078, 1.0
    %v3080 = vrcp.pop %v3079
    %v3081 = vmul.f32 1.0, %v3080
    %v3082 = vtanh.pop %v3075
    %v3083 = vmul.f32 %v3081, %v3014
    %3085 = vrot.lane.b32.xlu0 %v3082, 64
    %v3086 = vpop.permute.xlu0 %3085
    %v3088 = vmul.f32 %v3081, %v3086
    %3090 = vrot.lane.b32.xlu0 %v3088, 32
    %v3091 = vpop.permute.xlu0 %3090
    %v3093 = vadd.f32 %v3083, %v3091
    %v3094 = vtanh.pop %v3093
    %3096 = vrot.lane.b32.xlu0 %v3094, 64
    %v3097 = vpop.permute.xlu0 %3096
    %v3099 = vmul.f32 %v3081, %v3097
    %v3100 = vpack.c.bf16 %v3099, %v3099
    %v3102 = vunpack.c.l.b16 %v3100
    %v3103 = vpack.c.b16 %v3102, %v3102
    %3104 = vrot.lane.b32.xlu0 %v3103, 32
    %v3105 = vpop.permute.xlu0 %3104
    %3107 = vst.msk [vmem:[%s816] sm:$0xf] %vm492, %v3105
    %3108 = vrot.lane.b32.xlu0 %v3100, 32
    %v3109 = vpop.permute.xlu0 %3108
    %v3111 = vsel %vm415, %v3109, 0
    %3113 = vmatprep.subr.bf16.mxu0 0
    %3114 = vmatpush1.bf16.msra.mxu0 %v2714
    %3115 = vmatprep.subr.bf16.mxu0 0
    %3116 = vmatpush1.bf16.msra.mxu0 %v2715
    %3117 = vmatprep.subr.bf16.mxu0 0
    %3118 = vmatpush1.bf16.msra.mxu0 0
    %3119 = vmatprep.subr.bf16.mxu0 0
    %3120 = vmatpush1.bf16.msra.mxu0 0
    %3121 = vmatprep.subr.bf16.mxu0 0
    %3122 = vmatpush1.bf16.msra.mxu0 0
    %3123 = vmatprep.subr.bf16.mxu0 0
    %3124 = vmatpush1.bf16.msra.mxu0 0
    %3125 = vmatprep.subr.bf16.mxu0 0
    %3126 = vmatpush1.bf16.msra.mxu0 0
    %3127 = vmatprep.subr.bf16.mxu0 0
    %3128 = vmatpush1.bf16.msra.mxu0 0
    %3129 = vmatprep.subr.bf16.mxu0 0
    %3130 = vmatpush1.bf16.msra.mxu0 0
    %3131 = vmatprep.subr.bf16.mxu0 0
    %3132 = vmatpush1.bf16.msra.mxu0 0
    %3133 = vmatprep.subr.bf16.mxu0 0
    %3134 = vmatpush1.bf16.msra.mxu0 0
    %3135 = vmatprep.subr.bf16.mxu0 0
    %3136 = vmatpush1.bf16.msra.mxu0 0
    %3137 = vmatprep.subr.bf16.mxu0 0
    %3138 = vmatpush1.bf16.msra.mxu0 0
    %3139 = vmatprep.subr.bf16.mxu0 0
    %3140 = vmatpush1.bf16.msra.mxu0 0
    %3141 = vmatprep.subr.bf16.mxu0 0
    %3142 = vmatpush1.bf16.msra.mxu0 0
    %3143 = vmatprep.subr.bf16.mxu0 0
    %3144 = vmatpush1.bf16.msra.mxu0 0
    %3145 = vmatprep.mubr.bf16.mxu0 0
    %3146 = vmatmul.mubr.bf16.gmra.mrb[0].mxu0 %v3111
    %v3147 = vpop.f32.mrb[0].mxu0
    %v3148 = vadd.f32 0.0, %v3147
    %v3149 = vpop.f32.mrb[0].mxu0
    %v3150 = vpop.f32.mrb[0].mxu0
    %v3151 = vpop.f32.mrb[0].mxu0
    %3152 = vdwg.mxu0
    %v3153 = vld [vmem:[%s863] sm:$0xff]
    %v3154 = vadd.f32 %v3153, %v3148
    %v3155 = vxor.u32 %v3154, 2147483648
    %v3156 = vmul.f32 %v3155, 1.442695
    %v3157 = vpow.pop %v3156
    %v3158 = vadd.f32 %v3157, 1.0
    %v3159 = vrcp.pop %v3158
    %v3160 = vmul.f32 1.0, %v3159
    %v3161 = vtanh.pop %v3154
    %v3162 = vmul.f32 %v3160, %v3093
    %3164 = vrot.lane.b32.xlu0 %v3161, 64
    %v3165 = vpop.permute.xlu0 %3164
    %v3167 = vmul.f32 %v3160, %v3165
    %3169 = vrot.lane.b32.xlu0 %v3167, 32
    %v3170 = vpop.permute.xlu0 %3169
    %v3172 = vadd.f32 %v3162, %v3170
    %v3173 = vtanh.pop %v3172
    %3175 = vrot.lane.b32.xlu0 %v3173, 64
    %v3176 = vpop.permute.xlu0 %3175
    %v3178 = vmul.f32 %v3160, %v3176
    %v3179 = vpack.c.bf16 %v3178, %v3178
    %v3181 = vunpack.c.l.b16 %v3179
    %v3182 = vpack.c.b16 %v3181, %v3181
    %3183 = vrot.lane.b32.xlu0 %v3182, 32
    %v3184 = vpop.permute.xlu0 %3183
    %3186 = vst.msk [vmem:[%s897] sm:$0xf] %vm492, %v3184
    %3187 = vrot.lane.b32.xlu0 %v3179, 32
    %v3188 = vpop.permute.xlu0 %3187
    %v3190 = vsel %vm415, %v3188, 0
    %3192 = vmatprep.subr.bf16.mxu0 0
    %3193 = vmatpush1.bf16.msra.mxu0 %v2714
    %3194 = vmatprep.subr.bf16.mxu0 0
    %3195 = vmatpush1.bf16.msra.mxu0 %v2715
    %3196 = vmatprep.subr.bf16.mxu0 0
    %3197 = vmatpush1.bf16.msra.mxu0 0
    %3198 = vmatprep.subr.bf16.mxu0 0
    %3199 = vmatpush1.bf16.msra.mxu0 0
    %3200 = vmatprep.subr.bf16.mxu0 0
    %3201 = vmatpush1.bf16.msra.mxu0 0
    %3202 = vmatprep.subr.bf16.mxu0 0
    %3203 = vmatpush1.bf16.msra.mxu0 0
    %3204 = vmatprep.subr.bf16.mxu0 0
    %3205 = vmatpush1.bf16.msra.mxu0 0
    %3206 = vmatprep.subr.bf16.mxu0 0
    %3207 = vmatpush1.bf16.msra.mxu0 0
    %3208 = vmatprep.subr.bf16.mxu0 0
    %3209 = vmatpush1.bf16.msra.mxu0 0
    %3210 = vmatprep.subr.bf16.mxu0 0
    %3211 = vmatpush1.bf16.msra.mxu0 0
    %3212 = vmatprep.subr.bf16.mxu0 0
    %3213 = vmatpush1.bf16.msra.mxu0 0
    %3214 = vmatprep.subr.bf16.mxu0 0
    %3215 = vmatpush1.bf16.msra.mxu0 0
    %3216 = vmatprep.subr.bf16.mxu0 0
    %3217 = vmatpush1.bf16.msra.mxu0 0
    %3218 = vmatprep.subr.bf16.mxu0 0
    %3219 = vmatpush1.bf16.msra.mxu0 0
    %3220 = vmatprep.subr.bf16.mxu0 0
    %3221 = vmatpush1.bf16.msra.mxu0 0
    %3222 = vmatprep.subr.bf16.mxu0 0
    %3223 = vmatpush1.bf16.msra.mxu0 0
    %3224 = vmatprep.mubr.bf16.mxu0 0
    %3225 = vmatmul.mubr.bf16.gmra.mrb[0].mxu0 %v3190
    %v3226 = vpop.f32.mrb[0].mxu0
    %v3227 = vadd.f32 0.0, %v3226
    %v3228 = vpop.f32.mrb[0].mxu0
    %v3229 = vpop.f32.mrb[0].mxu0
    %v3230 = vpop.f32.mrb[0].mxu0
    %3231 = vdwg.mxu0
    %v3232 = vld [vmem:[%s944] sm:$0xff]
    %v3233 = vadd.f32 %v3232, %v3227
    %v3234 = vxor.u32 %v3233, 2147483648
    %v3235 = vmul.f32 %v3234, 1.442695
    %v3236 = vpow.pop %v3235
    %v3237 = vadd.f32 %v3236, 1.0
    %v3238 = vrcp.pop %v3237
    %v3239 = vmul.f32 1.0, %v3238
    %v3240 = vtanh.pop %v3233
    %v3241 = vmul.f32 %v3239, %v3172
    %3243 = vrot.lane.b32.xlu0 %v3240, 64
    %v3244 = vpop.permute.xlu0 %3243
    %v3246 = vmul.f32 %v3239, %v3244
    %3248 = vrot.lane.b32.xlu0 %v3246, 32
    %v3249 = vpop.permute.xlu0 %3248
    %v3251 = vadd.f32 %v3241, %v3249
    %v3252 = vtanh.pop %v3251
    %3254 = vrot.lane.b32.xlu0 %v3252, 64
    %v3255 = vpop.permute.xlu0 %3254
    %v3257 = vmul.f32 %v3239, %v3255
    %v3258 = vpack.c.bf16 %v3257, %v3257
    %v3260 = vunpack.c.l.b16 %v3258
    %v3261 = vpack.c.b16 %v3260, %v3260
    %3262 = vrot.lane.b32.xlu0 %v3261, 32
    %v3263 = vpop.permute.xlu0 %3262
    %3265 = vst.msk [vmem:[%s978] sm:$0xf] %vm492, %v3263
    %3266 = vrot.lane.b32.xlu0 %v3258, 32
    %v3267 = vpop.permute.xlu0 %3266
    %v3269 = vsel %vm415, %v3267, 0
    %3271 = vmatprep.subr.bf16.mxu0 0
    %3272 = vmatpush1.bf16.msra.mxu0 %v2714
    %3273 = vmatprep.subr.bf16.mxu0 0
    %3274 = vmatpush1.bf16.msra.mxu0 %v2715
    %3275 = vmatprep.subr.bf16.mxu0 0
    %3276 = vmatpush1.bf16.msra.mxu0 0
    %3277 = vmatprep.subr.bf16.mxu0 0
    %3278 = vmatpush1.bf16.msra.mxu0 0
    %3279 = vmatprep.subr.bf16.mxu0 0
    %3280 = vmatpush1.bf16.msra.mxu0 0
    %3281 = vmatprep.subr.bf16.mxu0 0
    %3282 = vmatpush1.bf16.msra.mxu0 0
    %3283 = vmatprep.subr.bf16.mxu0 0
    %3284 = vmatpush1.bf16.msra.mxu0 0
    %3285 = vmatprep.subr.bf16.mxu0 0
    %3286 = vmatpush1.bf16.msra.mxu0 0
    %3287 = vmatprep.subr.bf16.mxu0 0
    %3288 = vmatpush1.bf16.msra.mxu0 0
    %3289 = vmatprep.subr.bf16.mxu0 0
    %3290 = vmatpush1.bf16.msra.mxu0 0
    %3291 = vmatprep.subr.bf16.mxu0 0
    %3292 = vmatpush1.bf16.msra.mxu0 0
    %3293 = vmatprep.subr.bf16.mxu0 0
    %3294 = vmatpush1.bf16.msra.mxu0 0
    %3295 = vmatprep.subr.bf16.mxu0 0
    %3296 = vmatpush1.bf16.msra.mxu0 0
    %3297 = vmatprep.subr.bf16.mxu0 0
    %3298 = vmatpush1.bf16.msra.mxu0 0
    %3299 = vmatprep.subr.bf16.mxu0 0
    %3300 = vmatpush1.bf16.msra.mxu0 0
    %3301 = vmatprep.subr.bf16.mxu0 0
    %3302 = vmatpush1.bf16.msra.mxu0 0
    %3303 = vmatprep.mubr.bf16.mxu0 0
    %3304 = vmatmul.mubr.bf16.gmra.mrb[0].mxu0 %v3269
    %v3305 = vpop.f32.mrb[0].mxu0
    %v3306 = vadd.f32 0.0, %v3305
    %v3307 = vpop.f32.mrb[0].mxu0
    %v3308 = vpop.f32.mrb[0].mxu0
    %v3309 = vpop.f32.mrb[0].mxu0
    %3310 = vdwg.mxu0
    %v3311 = vld [vmem:[%s1025] sm:$0xff]
    %v3312 = vadd.f32 %v3311, %v3306
    %v3313 = vxor.u32 %v3312, 2147483648
    %v3314 = vmul.f32 %v3313, 1.442695
    %v3315 = vpow.pop %v3314
    %v3316 = vadd.f32 %v3315, 1.0
    %v3317 = vrcp.pop %v3316
    %v3318 = vmul.f32 1.0, %v3317
    %v3319 = vtanh.pop %v3312
    %v3320 = vmul.f32 %v3318, %v3251
    %3322 = vrot.lane.b32.xlu0 %v3319, 64
    %v3323 = vpop.permute.xlu0 %3322
    %v3325 = vmul.f32 %v3318, %v3323
    %3327 = vrot.lane.b32.xlu0 %v3325, 32
    %v3328 = vpop.permute.xlu0 %3327
    %v3330 = vadd.f32 %v3320, %v3328
    %v3331 = vtanh.pop %v3330
    %3333 = vrot.lane.b32.xlu0 %v3331, 64
    %v3334 = vpop.permute.xlu0 %3333
    %v3336 = vmul.f32 %v3318, %v3334
    %v3337 = vpack.c.bf16 %v3336, %v3336
    %v3339 = vunpack.c.l.b16 %v3337
    %v3340 = vpack.c.b16 %v3339, %v3339
    %3341 = vrot.lane.b32.xlu0 %v3340, 32
    %v3342 = vpop.permute.xlu0 %3341
    %3344 = vst.msk [vmem:[%s1059] sm:$0xf] %vm492, %v3342
    %v3345 = vld [vmem:[#allocation2] sm:$0xf]
    %v3346 = vld [vmem:[#allocation2 + $0x4] sm:$0xf]
    %v3347 = vld [vmem:[#allocation2 + $0x8] sm:$0xf]
    %v3348 = vld [vmem:[#allocation2 + $0xc] sm:$0xf]
    %v3349 = vld [vmem:[#allocation2 + $0x10] sm:$0xf]
    %v3350 = vld [vmem:[#allocation2 + $0x14] sm:$0xf]
    %v3351 = vld [vmem:[#allocation2 + $0x18] sm:$0xf]
    %v3352 = vld [vmem:[#allocation2 + $0x1c] sm:$0xf]
    %v3353 = vld [vmem:[#allocation30] sm:$0xf]
    %v3354 = vld [vmem:[#allocation30 + $0x4] sm:$0xf]
    %v3355 = vld [vmem:[#allocation30 + $0x8] sm:$0xf]
    %v3356 = vld [vmem:[#allocation30 + $0xc] sm:$0xf]
    %v3357 = vld [vmem:[#allocation31] sm:$0x1]
    %v3359 = vlaneseq
    %v3360 = vshrl.u32 %v3359, 7
    %v3361 = vsub.s32 0, %v3360
    %v3362 = vrot.slane %v3357, %v3361
    %v3372 = vunpack.c.l.b16 %v3345
    %v3373 = vunpack.c.l.b16 %v3346
    %v3374 = vunpack.c.l.b16 %v3347
    %v3375 = vunpack.c.l.b16 %v3348
    %v3376 = vunpack.c.l.b16 %v3349
    %v3377 = vunpack.c.l.b16 %v3350
    %v3378 = vunpack.c.l.b16 %v3351
    %v3379 = vunpack.c.l.b16 %v3352
    %v3380 = vpack.c.b16 %v3373, %v3372
    %v3381 = vpack.c.b16 %v3375, %v3374
    %v3382 = vpack.c.b16 %v3377, %v3376
    %v3383 = vpack.c.b16 %v3379, %v3378
    %v3388 = vunpack.c.l.b16 %v3353
    %v3389 = vunpack.c.l.b16 %v3354
    %v3390 = vunpack.c.l.b16 %v3355
    %v3391 = vunpack.c.l.b16 %v3356
    %v3392 = vpack.c.b16 %v3389, %v3388
    %v3393 = vpack.c.b16 %v3391, %v3390
    %v3397 = vsel %vm415, %v3380, 0
    %v3400 = vsel %vm415, %v3381, 0
    %v3403 = vsel %vm415, %v3382, 0
    %v3406 = vsel %vm415, %v3383, 0
    %3408 = vmatprep.subr.bf16.mxu0 0
    %3409 = vmatpush1.bf16.msra.mxu0 %v3392
    %3410 = vmatprep.subr.bf16.mxu0 0
    %3411 = vmatpush1.bf16.msra.mxu0 %v3393
    %3412 = vmatprep.subr.bf16.mxu0 0
    %3413 = vmatpush1.bf16.msra.mxu0 0
    %3414 = vmatprep.subr.bf16.mxu0 0
    %3415 = vmatpush1.bf16.msra.mxu0 0
    %3416 = vmatprep.subr.bf16.mxu0 0
    %3417 = vmatpush1.bf16.msra.mxu0 0
    %3418 = vmatprep.subr.bf16.mxu0 0
    %3419 = vmatpush1.bf16.msra.mxu0 0
    %3420 = vmatprep.subr.bf16.mxu0 0
    %3421 = vmatpush1.bf16.msra.mxu0 0
    %3422 = vmatprep.subr.bf16.mxu0 0
    %3423 = vmatpush1.bf16.msra.mxu0 0
    %3424 = vmatprep.subr.bf16.mxu0 0
    %3425 = vmatpush1.bf16.msra.mxu0 0
    %3426 = vmatprep.subr.bf16.mxu0 0
    %3427 = vmatpush1.bf16.msra.mxu0 0
    %3428 = vmatprep.subr.bf16.mxu0 0
    %3429 = vmatpush1.bf16.msra.mxu0 0
    %3430 = vmatprep.subr.bf16.mxu0 0
    %3431 = vmatpush1.bf16.msra.mxu0 0
    %3432 = vmatprep.subr.bf16.mxu0 0
    %3433 = vmatpush1.bf16.msra.mxu0 0
    %3434 = vmatprep.subr.bf16.mxu0 0
    %3435 = vmatpush1.bf16.msra.mxu0 0
    %3436 = vmatprep.subr.bf16.mxu0 0
    %3437 = vmatpush1.bf16.msra.mxu0 0
    %3438 = vmatprep.subr.bf16.mxu0 0
    %3439 = vmatpush1.bf16.msra.mxu0 0
    %3440 = vmatprep.mubr.bf16.mxu0 0
    %3441 = vmatmul.mubr.bf16.gmra.mrb[0].mxu0 %v3397
    %v3442 = vpop.f32.mrb[0].mxu0
    %v3443 = vadd.f32 %v3362, %v3442
    %v3444 = vpop.f32.mrb[0].mxu0
    %v3445 = vpop.f32.mrb[0].mxu0
    %v3446 = vadd.f32 %v3362, %v3445
    %v3447 = vpop.f32.mrb[0].mxu0
    %3448 = vmatprep.mubr.bf16.mxu0 0
    %3449 = vmatmul.mubr.bf16.gmra.mrb[0].mxu0 %v3400
    %v3450 = vpop.f32.mrb[0].mxu0
    %v3451 = vadd.f32 %v3362, %v3450
    %v3452 = vpop.f32.mrb[0].mxu0
    %v3453 = vpop.f32.mrb[0].mxu0
    %v3454 = vadd.f32 %v3362, %v3453
    %v3455 = vpop.f32.mrb[0].mxu0
    %3456 = vmatprep.mubr.bf16.mxu0 0
    %3457 = vmatmul.mubr.bf16.gmra.mrb[0].mxu0 %v3403
    %v3458 = vpop.f32.mrb[0].mxu0
    %v3459 = vadd.f32 %v3362, %v3458
    %v3460 = vpop.f32.mrb[0].mxu0
    %v3461 = vpop.f32.mrb[0].mxu0
    %v3462 = vadd.f32 %v3362, %v3461
    %v3463 = vpop.f32.mrb[0].mxu0
    %3464 = vmatprep.mubr.bf16.mxu0 0
    %3465 = vmatmul.mubr.bf16.gmra.mrb[0].mxu0 %v3406
    %v3466 = vpop.f32.mrb[0].mxu0
    %v3467 = vadd.f32 %v3362, %v3466
    %v3468 = vpop.f32.mrb[0].mxu0
    %v3469 = vpop.f32.mrb[0].mxu0
    %v3470 = vadd.f32 %v3362, %v3469
    %v3471 = vpop.f32.mrb[0].mxu0
    %3472 = vdwg.mxu0
    %3473 = vst [vmem:[#allocation33] sm:$0xff] %v3443
    %3474 = vst [vmem:[#allocation33 + $0x8] sm:$0xff] %v3446
    %3475 = vst [vmem:[#allocation33 + $0x10] sm:$0xff] %v3451
    %3476 = vst [vmem:[#allocation33 + $0x18] sm:$0xff] %v3454
    %3477 = vst [vmem:[#allocation33 + $0x20] sm:$0xff] %v3459
    %3478 = vst [vmem:[#allocation33 + $0x28] sm:$0xff] %v3462
    %3479 = vst [vmem:[#allocation33 + $0x30] sm:$0xff] %v3467
    %3480 = vst [vmem:[#allocation33 + $0x38] sm:$0xff] %v3470
    // Predicated region
    $region146: #{lstm_autoencoder_forward.1} parent=1 // pred_check
      _
    $region147: #{lstm_autoencoder_forward.1} parent=1 // pred_check_branch
      %3482 = sbr.rel (0) target = $region149
    $region148: #{lstm_autoencoder_forward.1} parent=1 // pred_region
      %s3484 = ssub.s32 1024, 1024
      %3485 = vsyncadd [#allocation6], %s3484
      %s3486 = sshll.u32 [#allocation33], 4
      %s3487 = int_to_ptr.vmem [resolvable:$true] %s3486
      %3492 = dma.vmem_to_hbm [thread:$0]  %s3487, 1024, %s18, [#allocation6], 128, 128, 8
    $region149: #{lstm_autoencoder_forward.1} parent=1 // pred_fallthru
      _
    // Predicated region
    $region150: #{lstm_autoencoder_forward.1} parent=1 // pred_check
      _
    $region151: #{lstm_autoencoder_forward.1} parent=1 // pred_check_branch
      %3494 = sbr.rel (0) target = $region153
    $region152: #{lstm_autoencoder_forward.1} parent=1 // pred_region
      %3495 = dma.done [#allocation6], 1024
    $region153: #{lstm_autoencoder_forward.1} parent=1 // pred_fallthru
      _
    %3496 = vsyncpa [#allocation5], 1
    %3497 = vsyncpa [#allocation8], 1
    %3498 = vsyncpa [#allocation11], 1
    %3499 = vsyncpa [#allocation14], 1
    %3500 = vsyncpa [#allocation17], 1
    %3501 = vsyncpa [#allocation20], 1
    %3502 = vsyncpa [#allocation23], 1
    %3503 = vsyncpa [#allocation26], 1
    %3504 = vsyncpa [#allocation29], 1
    %3505 = vsyncpa [#allocation32], 1
    %3506 = vsyncpa [#allocation6], 1

</llo_original>
